<compile_context>
chip_gen: v7x
topology: tpu7x:2x2x1
jax: 0.10.0
libtpu: 0.0.40
codegen_flags: <defaults>
</compile_context>

<pallas_src>
import functools

import numpy as np
import jax
import jax.numpy as jnp
from jax.experimental import pallas as pl
from jax.experimental.pallas import tpu as pltpu

# Set to jnp.bfloat16 on v6e/v7x for ~2-4x MXU throughput + half the operand
# bytes (accumulation stays f32); the correctness check then needs ~2e-2 tol.
COMPUTE_DTYPE = jnp.float32
LANE = 128


def _round_up(x, m):
    return ((x + m - 1) // m) * m


# --------------------------- glue: phase im2col -----------------------------

def _phase_operands(x_nhwc, w, phase, sh):
    """Row matrix + packed weight for one H-phase of a stride-(sh,1)
    ConvTranspose2d (PyTorch weight layout [Cin, Cout, KH, KW], bias=False).

    All KH taps belonging to this output-row phase and all KW taps are packed
    along the contraction (lane) dimension, so the whole phase becomes a
    single MXU matmul inside the kernel.  No H-dilation zeros are built.
    Returns rows (N, HOp*WO, nt*KW*Cin), weight (nt*KW*Cin, Cout), HOp, WO.
    """
    N, H, W_, Cin = x_nhwc.shape
    Cout, KH, KW = w.shape[1], w.shape[2], w.shape[3]
    HO = (H - 1) * sh + KH
    WO = W_ + KW - 1
    khs = [k for k in range(KH) if k % sh == phase]
    nt = len(khs)
    assert nt > 0, "phase has no taps"
    HOp = len(range(phase, HO, sh))          # number of output rows in phase
    top, bot = nt - 1, HOp - H
    assert bot >= 0
    xp = jnp.pad(x_nhwc, ((0, 0), (top, bot), (KW - 1, KW - 1), (0, 0)))
    cols, wts = [], []
    for v in range(nt):                      # increasing padded-H window start
        kh = phase + sh * (nt - 1 - v)
        for s in range(KW):                  # increasing padded-W window start
            cols.append(xp[:, v:v + HOp, s:s + WO, :])
            wts.append(w[:, :, kh, KW - 1 - s])          # (Cin, Cout)
    rows = jnp.concatenate(cols, axis=-1).reshape(N, HOp * WO, nt * KW * Cin)
    wmat = jnp.concatenate(wts, axis=0)      # (nt*KW*Cin, Cout), (v,s,ci) order
    return rows, wmat, HOp, WO


def _pad_rows(rows, rp, kp):
    n, r, k = rows.shape
    return jnp.pad(rows, ((0, 0), (0, rp - r), (0, kp - k))).astype(COMPUTE_DTYPE)


def _pad_mat(m, rp, cp):
    return jnp.pad(m, ((0, rp - m.shape[0]), (0, cp - m.shape[1]))).astype(COMPUTE_DTYPE)


# ------------------------------ fused kernel --------------------------------

def _fused_kernel(x1e_ref, x2e_ref, x2o_ref, w1e_ref, w2e_ref, w2o_ref,
                  w3_ref, o_ref, vs_ref, *,
                  n_even, n_odd, wo_v, ws, off, kh3, kw3, m3):
    """Whole forward pass for one batch element; everything stays in VMEM."""
    f32 = jnp.float32

    # conv_t_1 + conv_t_2 + add: one lane-packed matmul per H-phase.
    ve = (jnp.dot(x1e_ref[0], w1e_ref[...], preferred_element_type=f32) +
          jnp.dot(x2e_ref[0], w2e_ref[...], preferred_element_type=f32))
    vo = jnp.dot(x2o_ref[0], w2o_ref[...], preferred_element_type=f32)

    # Lay vsum out as zero-padded rows with row-stride `ws` so every conv_t_3
    # tap is a uniform row shift of one matrix.  Zero first (padding rows and
    # the inter-row gaps must be 0 on every grid step).
    vs_ref[...] = jnp.zeros_like(vs_ref)
    for m in range(n_even):                  # even vsum rows: v1 + v2_even
        vs_ref[pl.ds(off + (2 * m) * ws, wo_v), :] = (
            ve[m * wo_v:(m + 1) * wo_v, :].astype(vs_ref.dtype))
    for m in range(n_odd):                   # odd vsum rows: v2_odd (KH1 == 1)
        vs_ref[pl.ds(off + (2 * m + 1) * ws, wo_v), :] = (
            vo[m * wo_v:(m + 1) * wo_v, :].astype(vs_ref.dtype))

    # conv_t_3: KH3*KW3 row-shifted tap matmuls accumulated into o_ref.
    for kh in range(kh3):
        for kw in range(kw3):
            start = off - kh * ws - kw
            contrib = jnp.dot(vs_ref[pl.ds(start, m3), :],
                              w3_ref[kh * kw3 + kw],
                              preferred_element_type=f32)
            if kh == 0 and kw == 0:
                o_ref[0] = contrib
            else:
                o_ref[0] += contrib

    # Fused epilogue: the double torch.where chain.
    v = o_ref[0]
    v = jnp.where(v > 0, v, v * -1.65)
    o_ref[0] = jnp.where(v > 0, v, v * 0.5)


# ------------------------------- forward ------------------------------------

@jax.jit
def model_forward(x1_nchw, x2_nchw, w1, w2, w3):
    """Pallas implementation of Model.forward (NCHW in / NCHW out)."""
    nhwc = lambda t: jnp.transpose(t, (0, 2, 3, 1))
    x1, x2 = nhwc(x1_nchw), nhwc(x2_nchw)
    N = x1.shape[0]
    Cm = w1.shape[1]
    Co3, KH3, KW3 = w3.shape[1], w3.shape[2], w3.shape[3]
    assert w1.shape[2] == 1, "conv_t_1 sub-pixel path assumes KH == 1"
    assert w2.shape[1] == Cm and w3.shape[0] == Cm
    assert KW3 - 1 <= 8

    # H-phase im2col of the two external inputs (static, tiny glue).
    r1e, w1e_m, he1, wo1 = _phase_operands(x1, w1, phase=0, sh=2)
    r2e, w2e_m, he2, wo2 = _phase_operands(x2, w2, phase=0, sh=2)
    r2o, w2o_m, ho2, wo2b = _phase_operands(x2, w2, phase=1, sh=2)
    assert he1 == he2 and wo1 == wo2 == wo2b, "v1/v2 spatial shapes must match"
    n_even, n_odd, wo_v = he1, ho2, wo1
    hv = n_even + n_odd                        # vsum H rows (11)

    # conv_t_3 geometry: output (ho3, wo3), computed over a padded row grid
    # with stride ws so all KH3*KW3 taps are uniform, mostly-aligned shifts.
    ho3, wo3 = hv + KH3 - 1, wo_v + KW3 - 1    # 13, 9
    ws = _round_up(max(wo3, wo_v + 1), 8)      # 16
    off = (KH3 - 1) * ws + 8                   # 8-aligned store base >= tap shift
    m3 = ho3 * ws                              # 208 output rows (junk cols incl.)
    rs = _round_up(off + m3, 8)                # scratch rows

    # Lane packing: whole contraction of each phase fits one 128-lane block.
    for k in (r1e.shape[2], r2e.shape[2], r2o.shape[2]):
        assert k <= LANE  # TODO(synk): split contraction over several 128-lane blocks if exceeded
    rep = _round_up(n_even * wo_v, 8)
    rop = _round_up(n_odd * wo_v, 8)
    x1e = _pad_rows(r1e, rep, LANE)
    x2e = _pad_rows(r2e, rep, LANE)
    x2o = _pad_rows(r2o, rop, LANE)
    w1e = _pad_mat(w1e_m, LANE, LANE)
    w2e = _pad_mat(w2e_m, LANE, LANE)
    w2o = _pad_mat(w2o_m, LANE, LANE)
    w3r = jnp.stack([_pad_mat(w3[:, :, kh, kw], LANE, LANE)
                     for kh in range(KH3) for kw in range(KW3)])  # (KH3*KW3,128,128)

    kernel = functools.partial(
        _fused_kernel, n_even=n_even, n_odd=n_odd, wo_v=wo_v,
        ws=ws, off=off, kh3=KH3, kw3=KW3, m3=m3)

    out_rows = pl.pallas_call(
        kernel,
        out_shape=jax.ShapeDtypeStruct((N, m3, LANE), jnp.float32),
        grid=(N,),
        in_specs=[
            pl.BlockSpec((1, rep, LANE), lambda n: (n, 0, 0)),
            pl.BlockSpec((1, rep, LANE), lambda n: (n, 0, 0)),
            pl.BlockSpec((1, rop, LANE), lambda n: (n, 0, 0)),
            pl.BlockSpec((LANE, LANE), lambda n: (0, 0)),          # resident
            pl.BlockSpec((LANE, LANE), lambda n: (0, 0)),          # resident
            pl.BlockSpec((LANE, LANE), lambda n: (0, 0)),          # resident
            pl.BlockSpec((KH3 * KW3, LANE, LANE), lambda n: (0, 0, 0)),
        ],
        out_specs=pl.BlockSpec((1, m3, LANE), lambda n: (n, 0, 0)),
        scratch_shapes=[pltpu.VMEM((rs, LANE), COMPUTE_DTYPE)],
        compiler_params=pltpu.CompilerParams(
            dimension_semantics=("parallel",),
            vmem_limit_bytes=32 * 1024 * 1024),
    )(x1e, x2e, x2o, w1e, w2e, w2o, w3r)

    # Only the final output is sliced / transposed in XLA.
    out = out_rows.reshape(N, ho3, ws, LANE)[:, :, :wo3, :Co3]
    return jnp.transpose(out, (0, 3, 1, 2))


# ---------------------------- pure-JAX reference ----------------------------

@jax.jit
def ref_forward(x1, x2, w1, w2, w3):
    def ct(x, w, stride):
        kh, kw = w.shape[2], w.shape[3]
        w_oihw = jnp.transpose(jnp.flip(w, axis=(2, 3)), (1, 0, 2, 3))
        return jax.lax.conv_general_dilated(
            x, w_oihw, window_strides=(1, 1),
            padding=[(kh - 1, kh - 1), (kw - 1, kw - 1)],
            lhs_dilation=stride,
            dimension_numbers=("NCHW", "OIHW", "NCHW"))
    v1 = ct(x1, w1, (2, 1))
    v2 = ct(x2, w2, (2, 1))
    v3 = ct(v1 + v2, w3, (1, 1))
    v4 = jnp.where(v3 > 0, v3, v3 * -1.65)
    return jnp.where(v4 > 0, v4, v4 * 0.5)


# ----------------------------------- main ------------------------------------

if __name__ == "__main__":
    # NOTE: the original module's channel counts are internally inconsistent
    # (conv_t_1 emits 509 channels, conv_t_2 emits 357, yet they are added and
    # fed to a 357-input conv_t_3, and input2 is the int 1).  We keep the
    # exact op structure (kernel sizes, strides, add, where-chain) with small,
    # consistent channel counts and compatible spatial sizes.
    key = jax.random.PRNGKey(0)
    k1, k2, k3, k4, k5 = jax.random.split(key, 5)

    N = 2
    C_IN1, C_MID, C_OUT = 8, 16, 8
    # Spatial sizes chosen so v1 and v2 have matching (H, W) = (11, 8).
    x1 = jax.random.normal(k1, (N, C_IN1, 6, 5), jnp.float32)   # -> conv_t_1
    x2 = jax.random.normal(k2, (N, C_MID, 4, 7), jnp.float32)   # -> conv_t_2

    # ConvTranspose2d weights, PyTorch layout [Cin, Cout, KH, KW], bias=False.
    w1 = jax.random.normal(k3, (C_IN1, C_MID, 1, 4), jnp.float32) * 0.1
    w2 = jax.random.normal(k4, (C_MID, C_MID, 5, 2), jnp.float32) * 0.1
    w3 = jax.random.normal(k5, (C_MID, C_OUT, 3, 2), jnp.float32) * 0.1

    out = jax.block_until_ready(model_forward(x1, x2, w1, w2, w3))
    ref = jax.block_until_ready(ref_forward(x1, x2, w1, w2, w3))

    assert out.shape == ref.shape == (N, C_OUT, 13, 9), (out.shape, ref.shape)
    tol = 2e-4 if COMPUTE_DTYPE == jnp.float32 else 2e-2
    np.testing.assert_allclose(np.asarray(out), np.asarray(ref),
                               rtol=tol, atol=tol)
    print("KERNEL_OK")
</pallas_src>

<mosaic_0001>
module attributes {stable_mosaic.version = 11 : i64} {
  func.func @_fused_kernel(%arg0: i32, %arg1: memref<1x48x128xf32, #tpu.memory_space<vmem>>, %arg2: memref<1x48x128xf32, #tpu.memory_space<vmem>>, %arg3: memref<1x40x128xf32, #tpu.memory_space<vmem>>, %arg4: memref<128x128xf32, #tpu.memory_space<vmem>>, %arg5: memref<128x128xf32, #tpu.memory_space<vmem>>, %arg6: memref<128x128xf32, #tpu.memory_space<vmem>>, %arg7: memref<6x128x128xf32, #tpu.memory_space<vmem>>, %arg8: memref<1x208x128xf32, #tpu.memory_space<vmem>>, %arg9: memref<248x128xf32, #tpu.memory_space<vmem>>) attributes {dimension_semantics = [#tpu.dimension_semantics<parallel>], iteration_bounds = array<i64: 2>, scalar_prefetch = 0 : i64, scratch_operands = 1 : i64, tpu.core_type = #tpu.core_type<tc>, window_params = [{transform_indices = @transform_0, window_bounds = array<i64: 1, 48, 128>}, {transform_indices = @transform_1, window_bounds = array<i64: 1, 48, 128>}, {transform_indices = @transform_2, window_bounds = array<i64: 1, 40, 128>}, {pipeline_mode = #tpu.pipeline_mode<synchronous>, transform_indices = @transform_3, window_bounds = array<i64: 128, 128>}, {pipeline_mode = #tpu.pipeline_mode<synchronous>, transform_indices = @transform_4, window_bounds = array<i64: 128, 128>}, {pipeline_mode = #tpu.pipeline_mode<synchronous>, transform_indices = @transform_5, window_bounds = array<i64: 128, 128>}, {pipeline_mode = #tpu.pipeline_mode<synchronous>, transform_indices = @transform_6, window_bounds = array<i64: 6, 128, 128>}, {transform_indices = @transform_7, window_bounds = array<i64: 1, 208, 128>}]} {
    %c0 = arith.constant 0 : index
    %c0_0 = arith.constant 0 : index
    %c0_1 = arith.constant 0 : index
    %0 = vector.load %arg1[%c0, %c0_0, %c0_1] : memref<1x48x128xf32, #tpu.memory_space<vmem>>, vector<1x48x128xf32>
    %1 = vector.shape_cast %0 : vector<1x48x128xf32> to vector<48x128xf32>
    %c0_2 = arith.constant 0 : index
    %c0_3 = arith.constant 0 : index
    %2 = vector.load %arg4[%c0_2, %c0_3] : memref<128x128xf32, #tpu.memory_space<vmem>>, vector<128x128xf32>
    %cst = arith.constant dense<0.000000e+00> : vector<48x128xf32>
    %3 = tpu.matmul %1, %2, %cst {dimension_numbers = #tpu.dot_dimension_numbers<[1], [0], [0], [1], [0, 0, 1, 1], [], []>} : vector<48x128xf32>, vector<128x128xf32>, vector<48x128xf32> -> vector<48x128xf32>
    %c0_4 = arith.constant 0 : index
    %c0_5 = arith.constant 0 : index
    %c0_6 = arith.constant 0 : index
    %4 = vector.load %arg2[%c0_4, %c0_5, %c0_6] : memref<1x48x128xf32, #tpu.memory_space<vmem>>, vector<1x48x128xf32>
    %5 = vector.shape_cast %4 : vector<1x48x128xf32> to vector<48x128xf32>
    %c0_7 = arith.constant 0 : index
    %c0_8 = arith.constant 0 : index
    %6 = vector.load %arg5[%c0_7, %c0_8] : memref<128x128xf32, #tpu.memory_space<vmem>>, vector<128x128xf32>
    %cst_9 = arith.constant dense<0.000000e+00> : vector<48x128xf32>
    %7 = tpu.matmul %5, %6, %cst_9 {dimension_numbers = #tpu.dot_dimension_numbers<[1], [0], [0], [1], [0, 0, 1, 1], [], []>} : vector<48x128xf32>, vector<128x128xf32>, vector<48x128xf32> -> vector<48x128xf32>
    %8 = arith.addf %3, %7 : vector<48x128xf32>
    %c0_10 = arith.constant 0 : index
    %c0_11 = arith.constant 0 : index
    %c0_12 = arith.constant 0 : index
    %9 = vector.load %arg3[%c0_10, %c0_11, %c0_12] : memref<1x40x128xf32, #tpu.memory_space<vmem>>, vector<1x40x128xf32>
    %10 = vector.shape_cast %9 : vector<1x40x128xf32> to vector<40x128xf32>
    %c0_13 = arith.constant 0 : index
    %c0_14 = arith.constant 0 : index
    %11 = vector.load %arg6[%c0_13, %c0_14] : memref<128x128xf32, #tpu.memory_space<vmem>>, vector<128x128xf32>
    %cst_15 = arith.constant dense<0.000000e+00> : vector<40x128xf32>
    %12 = tpu.matmul %10, %11, %cst_15 {dimension_numbers = #tpu.dot_dimension_numbers<[1], [0], [0], [1], [0, 0, 1, 1], [], []>} : vector<40x128xf32>, vector<128x128xf32>, vector<40x128xf32> -> vector<40x128xf32>
    %cst_16 = arith.constant 0.000000e+00 : f32
    %13 = vector.broadcast %cst_16 : f32 to vector<248x128xf32>
    %c0_17 = arith.constant 0 : index
    %c0_18 = arith.constant 0 : index
    %14 = vector.load %arg9[%c0_17, %c0_18] : memref<248x128xf32, #tpu.memory_space<vmem>>, vector<248x128xf32>
    tpu.vector_store %arg9[%c0_17, %c0_18], %13 {strides = array<i32>} : memref<248x128xf32, #tpu.memory_space<vmem>>, vector<248x128xf32>,
    %15 = vector.extract_strided_slice %8 {offsets = [0, 0], sizes = [8, 128], strides = [1, 1]} : vector<48x128xf32> to vector<8x128xf32>
    %c40 = arith.constant 40 : index
    %c0_19 = arith.constant 0 : index
    %16 = vector.load %arg9[%c40, %c0_19] : memref<248x128xf32, #tpu.memory_space<vmem>>, vector<8x128xf32>
    tpu.vector_store %arg9[%c40, %c0_19], %15 {strides = array<i32>} : memref<248x128xf32, #tpu.memory_space<vmem>>, vector<8x128xf32>,
    %17 = vector.extract_strided_slice %8 {offsets = [8, 0], sizes = [8, 128], strides = [1, 1]} : vector<48x128xf32> to vector<8x128xf32>
    %c72 = arith.constant 72 : index
    %c0_20 = arith.constant 0 : index
    %18 = vector.load %arg9[%c72, %c0_20] : memref<248x128xf32, #tpu.memory_space<vmem>>, vector<8x128xf32>
    tpu.vector_store %arg9[%c72, %c0_20], %17 {strides = array<i32>} : memref<248x128xf32, #tpu.memory_space<vmem>>, vector<8x128xf32>,
    %19 = vector.extract_strided_slice %8 {offsets = [16, 0], sizes = [8, 128], strides = [1, 1]} : vector<48x128xf32> to vector<8x128xf32>
    %c104 = arith.constant 104 : index
    %c0_21 = arith.constant 0 : index
    %20 = vector.load %arg9[%c104, %c0_21] : memref<248x128xf32, #tpu.memory_space<vmem>>, vector<8x128xf32>
    tpu.vector_store %arg9[%c104, %c0_21], %19 {strides = array<i32>} : memref<248x128xf32, #tpu.memory_space<vmem>>, vector<8x128xf32>,
    %21 = vector.extract_strided_slice %8 {offsets = [24, 0], sizes = [8, 128], strides = [1, 1]} : vector<48x128xf32> to vector<8x128xf32>
    %c136 = arith.constant 136 : index
    %c0_22 = arith.constant 0 : index
    %22 = vector.load %arg9[%c136, %c0_22] : memref<248x128xf32, #tpu.memory_space<vmem>>, vector<8x128xf32>
    tpu.vector_store %arg9[%c136, %c0_22], %21 {strides = array<i32>} : memref<248x128xf32, #tpu.memory_space<vmem>>, vector<8x128xf32>,
    %23 = vector.extract_strided_slice %8 {offsets = [32, 0], sizes = [8, 128], strides = [1, 1]} : vector<48x128xf32> to vector<8x128xf32>
    %c168 = arith.constant 168 : index
    %c0_23 = arith.constant 0 : index
    %24 = vector.load %arg9[%c168, %c0_23] : memref<248x128xf32, #tpu.memory_space<vmem>>, vector<8x128xf32>
    tpu.vector_store %arg9[%c168, %c0_23], %23 {strides = array<i32>} : memref<248x128xf32, #tpu.memory_space<vmem>>, vector<8x128xf32>,
    %25 = vector.extract_strided_slice %8 {offsets = [40, 0], sizes = [8, 128], strides = [1, 1]} : vector<48x128xf32> to vector<8x128xf32>
    %c200 = arith.constant 200 : index
    %c0_24 = arith.constant 0 : index
    %26 = vector.load %arg9[%c200, %c0_24] : memref<248x128xf32, #tpu.memory_space<vmem>>, vector<8x128xf32>
    tpu.vector_store %arg9[%c200, %c0_24], %25 {strides = array<i32>} : memref<248x128xf32, #tpu.memory_space<vmem>>, vector<8x128xf32>,
    %27 = vector.extract_strided_slice %12 {offsets = [0, 0], sizes = [8, 128], strides = [1, 1]} : vector<40x128xf32> to vector<8x128xf32>
    %c56 = arith.constant 56 : index
    %c0_25 = arith.constant 0 : index
    %28 = vector.load %arg9[%c56, %c0_25] : memref<248x128xf32, #tpu.memory_space<vmem>>, vector<8x128xf32>
    tpu.vector_store %arg9[%c56, %c0_25], %27 {strides = array<i32>} : memref<248x128xf32, #tpu.memory_space<vmem>>, vector<8x128xf32>,
    %29 = vector.extract_strided_slice %12 {offsets = [8, 0], sizes = [8, 128], strides = [1, 1]} : vector<40x128xf32> to vector<8x128xf32>
    %c88 = arith.constant 88 : index
    %c0_26 = arith.constant 0 : index
    %30 = vector.load %arg9[%c88, %c0_26] : memref<248x128xf32, #tpu.memory_space<vmem>>, vector<8x128xf32>
    tpu.vector_store %arg9[%c88, %c0_26], %29 {strides = array<i32>} : memref<248x128xf32, #tpu.memory_space<vmem>>, vector<8x128xf32>,
    %31 = vector.extract_strided_slice %12 {offsets = [16, 0], sizes = [8, 128], strides = [1, 1]} : vector<40x128xf32> to vector<8x128xf32>
    %c120 = arith.constant 120 : index
    %c0_27 = arith.constant 0 : index
    %32 = vector.load %arg9[%c120, %c0_27] : memref<248x128xf32, #tpu.memory_space<vmem>>, vector<8x128xf32>
    tpu.vector_store %arg9[%c120, %c0_27], %31 {strides = array<i32>} : memref<248x128xf32, #tpu.memory_space<vmem>>, vector<8x128xf32>,
    %33 = vector.extract_strided_slice %12 {offsets = [24, 0], sizes = [8, 128], strides = [1, 1]} : vector<40x128xf32> to vector<8x128xf32>
    %c152 = arith.constant 152 : index
    %c0_28 = arith.constant 0 : index
    %34 = vector.load %arg9[%c152, %c0_28] : memref<248x128xf32, #tpu.memory_space<vmem>>, vector<8x128xf32>
    tpu.vector_store %arg9[%c152, %c0_28], %33 {strides = array<i32>} : memref<248x128xf32, #tpu.memory_space<vmem>>, vector<8x128xf32>,
    %35 = vector.extract_strided_slice %12 {offsets = [32, 0], sizes = [8, 128], strides = [1, 1]} : vector<40x128xf32> to vector<8x128xf32>
    %c184 = arith.constant 184 : index
    %c0_29 = arith.constant 0 : index
    %36 = vector.load %arg9[%c184, %c0_29] : memref<248x128xf32, #tpu.memory_space<vmem>>, vector<8x128xf32>
    tpu.vector_store %arg9[%c184, %c0_29], %35 {strides = array<i32>} : memref<248x128xf32, #tpu.memory_space<vmem>>, vector<8x128xf32>,
    %c40_30 = arith.constant 40 : index
    %c0_31 = arith.constant 0 : index
    %37 = vector.load %arg9[%c40_30, %c0_31] : memref<248x128xf32, #tpu.memory_space<vmem>>, vector<208x128xf32>
    %c0_32 = arith.constant 0 : index
    %c0_33 = arith.constant 0 : index
    %c0_34 = arith.constant 0 : index
    %38 = vector.load %arg7[%c0_32, %c0_33, %c0_34] : memref<6x128x128xf32, #tpu.memory_space<vmem>>, vector<1x128x128xf32>
    %39 = vector.shape_cast %38 : vector<1x128x128xf32> to vector<128x128xf32>
    %cst_35 = arith.constant dense<0.000000e+00> : vector<208x128xf32>
    %40 = tpu.matmul %37, %39, %cst_35 {dimension_numbers = #tpu.dot_dimension_numbers<[1], [0], [0], [1], [0, 0, 1, 1], [], []>} : vector<208x128xf32>, vector<128x128xf32>, vector<208x128xf32> -> vector<208x128xf32>
    %c0_36 = arith.constant 0 : index
    %c0_37 = arith.constant 0 : index
    %c0_38 = arith.constant 0 : index
    %41 = vector.load %arg8[%c0_36, %c0_37, %c0_38] : memref<1x208x128xf32, #tpu.memory_space<vmem>>, vector<1x208x128xf32>
    %42 = vector.shape_cast %41 : vector<1x208x128xf32> to vector<208x128xf32>
    %43 = vector.shape_cast %40 : vector<208x128xf32> to vector<1x208x128xf32>
    tpu.vector_store %arg8[%c0_36, %c0_37, %c0_38], %43 {strides = array<i32>} : memref<1x208x128xf32, #tpu.memory_space<vmem>>, vector<1x208x128xf32>,
    %c39 = arith.constant 39 : index
    %c0_39 = arith.constant 0 : index
    %44 = vector.load %arg9[%c39, %c0_39] : memref<248x128xf32, #tpu.memory_space<vmem>>, vector<208x128xf32>
    %c1 = arith.constant 1 : index
    %c0_40 = arith.constant 0 : index
    %c0_41 = arith.constant 0 : index
    %45 = vector.load %arg7[%c1, %c0_40, %c0_41] : memref<6x128x128xf32, #tpu.memory_space<vmem>>, vector<1x128x128xf32>
    %46 = vector.shape_cast %45 : vector<1x128x128xf32> to vector<128x128xf32>
    %cst_42 = arith.constant dense<0.000000e+00> : vector<208x128xf32>
    %47 = tpu.matmul %44, %46, %cst_42 {dimension_numbers = #tpu.dot_dimension_numbers<[1], [0], [0], [1], [0, 0, 1, 1], [], []>} : vector<208x128xf32>, vector<128x128xf32>, vector<208x128xf32> -> vector<208x128xf32>
    %c0_43 = arith.constant 0 : index
    %c0_44 = arith.constant 0 : index
    %c0_45 = arith.constant 0 : index
    %48 = vector.load %arg8[%c0_43, %c0_44, %c0_45] : memref<1x208x128xf32, #tpu.memory_space<vmem>>, vector<1x208x128xf32>
    %49 = vector.shape_cast %48 : vector<1x208x128xf32> to vector<208x128xf32>
    %50 = arith.addf %49, %47 : vector<208x128xf32>
    %c0_46 = arith.constant 0 : index
    %c0_47 = arith.constant 0 : index
    %c0_48 = arith.constant 0 : index
    %51 = vector.load %arg8[%c0_46, %c0_47, %c0_48] : memref<1x208x128xf32, #tpu.memory_space<vmem>>, vector<1x208x128xf32>
    %52 = vector.shape_cast %51 : vector<1x208x128xf32> to vector<208x128xf32>
    %53 = vector.shape_cast %50 : vector<208x128xf32> to vector<1x208x128xf32>
    tpu.vector_store %arg8[%c0_46, %c0_47, %c0_48], %53 {strides = array<i32>} : memref<1x208x128xf32, #tpu.memory_space<vmem>>, vector<1x208x128xf32>,
    %c24 = arith.constant 24 : index
    %c0_49 = arith.constant 0 : index
    %54 = vector.load %arg9[%c24, %c0_49] : memref<248x128xf32, #tpu.memory_space<vmem>>, vector<208x128xf32>
    %c2 = arith.constant 2 : index
    %c0_50 = arith.constant 0 : index
    %c0_51 = arith.constant 0 : index
    %55 = vector.load %arg7[%c2, %c0_50, %c0_51] : memref<6x128x128xf32, #tpu.memory_space<vmem>>, vector<1x128x128xf32>
    %56 = vector.shape_cast %55 : vector<1x128x128xf32> to vector<128x128xf32>
    %cst_52 = arith.constant dense<0.000000e+00> : vector<208x128xf32>
    %57 = tpu.matmul %54, %56, %cst_52 {dimension_numbers = #tpu.dot_dimension_numbers<[1], [0], [0], [1], [0, 0, 1, 1], [], []>} : vector<208x128xf32>, vector<128x128xf32>, vector<208x128xf32> -> vector<208x128xf32>
    %c0_53 = arith.constant 0 : index
    %c0_54 = arith.constant 0 : index
    %c0_55 = arith.constant 0 : index
    %58 = vector.load %arg8[%c0_53, %c0_54, %c0_55] : memref<1x208x128xf32, #tpu.memory_space<vmem>>, vector<1x208x128xf32>
    %59 = vector.shape_cast %58 : vector<1x208x128xf32> to vector<208x128xf32>
    %60 = arith.addf %59, %57 : vector<208x128xf32>
    %c0_56 = arith.constant 0 : index
    %c0_57 = arith.constant 0 : index
    %c0_58 = arith.constant 0 : index
    %61 = vector.load %arg8[%c0_56, %c0_57, %c0_58] : memref<1x208x128xf32, #tpu.memory_space<vmem>>, vector<1x208x128xf32>
    %62 = vector.shape_cast %61 : vector<1x208x128xf32> to vector<208x128xf32>
    %63 = vector.shape_cast %60 : vector<208x128xf32> to vector<1x208x128xf32>
    tpu.vector_store %arg8[%c0_56, %c0_57, %c0_58], %63 {strides = array<i32>} : memref<1x208x128xf32, #tpu.memory_space<vmem>>, vector<1x208x128xf32>,
    %c23 = arith.constant 23 : index
    %c0_59 = arith.constant 0 : index
    %64 = vector.load %arg9[%c23, %c0_59] : memref<248x128xf32, #tpu.memory_space<vmem>>, vector<208x128xf32>
    %c3 = arith.constant 3 : index
    %c0_60 = arith.constant 0 : index
    %c0_61 = arith.constant 0 : index
    %65 = vector.load %arg7[%c3, %c0_60, %c0_61] : memref<6x128x128xf32, #tpu.memory_space<vmem>>, vector<1x128x128xf32>
    %66 = vector.shape_cast %65 : vector<1x128x128xf32> to vector<128x128xf32>
    %cst_62 = arith.constant dense<0.000000e+00> : vector<208x128xf32>
    %67 = tpu.matmul %64, %66, %cst_62 {dimension_numbers = #tpu.dot_dimension_numbers<[1], [0], [0], [1], [0, 0, 1, 1], [], []>} : vector<208x128xf32>, vector<128x128xf32>, vector<208x128xf32> -> vector<208x128xf32>
    %c0_63 = arith.constant 0 : index
    %c0_64 = arith.constant 0 : index
    %c0_65 = arith.constant 0 : index
    %68 = vector.load %arg8[%c0_63, %c0_64, %c0_65] : memref<1x208x128xf32, #tpu.memory_space<vmem>>, vector<1x208x128xf32>
    %69 = vector.shape_cast %68 : vector<1x208x128xf32> to vector<208x128xf32>
    %70 = arith.addf %69, %67 : vector<208x128xf32>
    %c0_66 = arith.constant 0 : index
    %c0_67 = arith.constant 0 : index
    %c0_68 = arith.constant 0 : index
    %71 = vector.load %arg8[%c0_66, %c0_67, %c0_68] : memref<1x208x128xf32, #tpu.memory_space<vmem>>, vector<1x208x128xf32>
    %72 = vector.shape_cast %71 : vector<1x208x128xf32> to vector<208x128xf32>
    %73 = vector.shape_cast %70 : vector<208x128xf32> to vector<1x208x128xf32>
    tpu.vector_store %arg8[%c0_66, %c0_67, %c0_68], %73 {strides = array<i32>} : memref<1x208x128xf32, #tpu.memory_space<vmem>>, vector<1x208x128xf32>,
    %c8 = arith.constant 8 : index
    %c0_69 = arith.constant 0 : index
    %74 = vector.load %arg9[%c8, %c0_69] : memref<248x128xf32, #tpu.memory_space<vmem>>, vector<208x128xf32>
    %c4 = arith.constant 4 : index
    %c0_70 = arith.constant 0 : index
    %c0_71 = arith.constant 0 : index
    %75 = vector.load %arg7[%c4, %c0_70, %c0_71] : memref<6x128x128xf32, #tpu.memory_space<vmem>>, vector<1x128x128xf32>
    %76 = vector.shape_cast %75 : vector<1x128x128xf32> to vector<128x128xf32>
    %cst_72 = arith.constant dense<0.000000e+00> : vector<208x128xf32>
    %77 = tpu.matmul %74, %76, %cst_72 {dimension_numbers = #tpu.dot_dimension_numbers<[1], [0], [0], [1], [0, 0, 1, 1], [], []>} : vector<208x128xf32>, vector<128x128xf32>, vector<208x128xf32> -> vector<208x128xf32>
    %c0_73 = arith.constant 0 : index
    %c0_74 = arith.constant 0 : index
    %c0_75 = arith.constant 0 : index
    %78 = vector.load %arg8[%c0_73, %c0_74, %c0_75] : memref<1x208x128xf32, #tpu.memory_space<vmem>>, vector<1x208x128xf32>
    %79 = vector.shape_cast %78 : vector<1x208x128xf32> to vector<208x128xf32>
    %80 = arith.addf %79, %77 : vector<208x128xf32>
    %c0_76 = arith.constant 0 : index
    %c0_77 = arith.constant 0 : index
    %c0_78 = arith.constant 0 : index
    %81 = vector.load %arg8[%c0_76, %c0_77, %c0_78] : memref<1x208x128xf32, #tpu.memory_space<vmem>>, vector<1x208x128xf32>
    %82 = vector.shape_cast %81 : vector<1x208x128xf32> to vector<208x128xf32>
    %83 = vector.shape_cast %80 : vector<208x128xf32> to vector<1x208x128xf32>
    tpu.vector_store %arg8[%c0_76, %c0_77, %c0_78], %83 {strides = array<i32>} : memref<1x208x128xf32, #tpu.memory_space<vmem>>, vector<1x208x128xf32>,
    %c7 = arith.constant 7 : index
    %c0_79 = arith.constant 0 : index
    %84 = vector.load %arg9[%c7, %c0_79] : memref<248x128xf32, #tpu.memory_space<vmem>>, vector<208x128xf32>
    %c5 = arith.constant 5 : index
    %c0_80 = arith.constant 0 : index
    %c0_81 = arith.constant 0 : index
    %85 = vector.load %arg7[%c5, %c0_80, %c0_81] : memref<6x128x128xf32, #tpu.memory_space<vmem>>, vector<1x128x128xf32>
    %86 = vector.shape_cast %85 : vector<1x128x128xf32> to vector<128x128xf32>
    %cst_82 = arith.constant dense<0.000000e+00> : vector<208x128xf32>
    %87 = tpu.matmul %84, %86, %cst_82 {dimension_numbers = #tpu.dot_dimension_numbers<[1], [0], [0], [1], [0, 0, 1, 1], [], []>} : vector<208x128xf32>, vector<128x128xf32>, vector<208x128xf32> -> vector<208x128xf32>
    %c0_83 = arith.constant 0 : index
    %c0_84 = arith.constant 0 : index
    %c0_85 = arith.constant 0 : index
    %88 = vector.load %arg8[%c0_83, %c0_84, %c0_85] : memref<1x208x128xf32, #tpu.memory_space<vmem>>, vector<1x208x128xf32>
    %89 = vector.shape_cast %88 : vector<1x208x128xf32> to vector<208x128xf32>
    %90 = arith.addf %89, %87 : vector<208x128xf32>
    %c0_86 = arith.constant 0 : index
    %c0_87 = arith.constant 0 : index
    %c0_88 = arith.constant 0 : index
    %91 = vector.load %arg8[%c0_86, %c0_87, %c0_88] : memref<1x208x128xf32, #tpu.memory_space<vmem>>, vector<1x208x128xf32>
    %92 = vector.shape_cast %91 : vector<1x208x128xf32> to vector<208x128xf32>
    %93 = vector.shape_cast %90 : vector<208x128xf32> to vector<1x208x128xf32>
    tpu.vector_store %arg8[%c0_86, %c0_87, %c0_88], %93 {strides = array<i32>} : memref<1x208x128xf32, #tpu.memory_space<vmem>>, vector<1x208x128xf32>,
    %c0_89 = arith.constant 0 : index
    %c0_90 = arith.constant 0 : index
    %c0_91 = arith.constant 0 : index
    %94 = vector.load %arg8[%c0_89, %c0_90, %c0_91] : memref<1x208x128xf32, #tpu.memory_space<vmem>>, vector<1x208x128xf32>
    %95 = vector.shape_cast %94 : vector<1x208x128xf32> to vector<208x128xf32>
    %cst_92 = arith.constant 0.000000e+00 : f32
    %96 = vector.broadcast %cst_92 : f32 to vector<208x128xf32>
    %97 = arith.cmpf ogt, %95, %96 : vector<208x128xf32>
    %cst_93 = arith.constant -1.650000e+00 : f32
    %98 = vector.broadcast %cst_93 : f32 to vector<208x128xf32>
    %99 = arith.mulf %95, %98 : vector<208x128xf32>
    %100 = arith.select %97, %95, %99 : vector<208x128xi1>, vector<208x128xf32>
    %cst_94 = arith.constant 0.000000e+00 : f32
    %101 = vector.broadcast %cst_94 : f32 to vector<208x128xf32>
    %102 = arith.cmpf ogt, %100, %101 : vector<208x128xf32>
    %cst_95 = arith.constant 5.000000e-01 : f32
    %103 = vector.broadcast %cst_95 : f32 to vector<208x128xf32>
    %104 = arith.mulf %100, %103 : vector<208x128xf32>
    %105 = arith.select %102, %100, %104 : vector<208x128xi1>, vector<208x128xf32>
    %c0_96 = arith.constant 0 : index
    %c0_97 = arith.constant 0 : index
    %c0_98 = arith.constant 0 : index
    %106 = vector.load %arg8[%c0_96, %c0_97, %c0_98] : memref<1x208x128xf32, #tpu.memory_space<vmem>>, vector<1x208x128xf32>
    %107 = vector.shape_cast %106 : vector<1x208x128xf32> to vector<208x128xf32>
    %108 = vector.shape_cast %105 : vector<208x128xf32> to vector<1x208x128xf32>
    tpu.vector_store %arg8[%c0_96, %c0_97, %c0_98], %108 {strides = array<i32>} : memref<1x208x128xf32, #tpu.memory_space<vmem>>, vector<1x208x128xf32>,
    return
  }
  func.func @transform_0(%arg0: i32) -> (i32, i32, i32) {
    %c0_i32 = arith.constant 0 : i32
    %c0_i32_0 = arith.constant 0 : i32
    %c0_i32_1 = arith.constant 0 : i32
    return %arg0, %c0_i32, %c0_i32_0 : i32, i32, i32
  }
  func.func @transform_1(%arg0: i32) -> (i32, i32, i32) {
    %c0_i32 = arith.constant 0 : i32
    %c0_i32_0 = arith.constant 0 : i32
    %c0_i32_1 = arith.constant 0 : i32
    return %arg0, %c0_i32, %c0_i32_0 : i32, i32, i32
  }
  func.func @transform_2(%arg0: i32) -> (i32, i32, i32) {
    %c0_i32 = arith.constant 0 : i32
    %c0_i32_0 = arith.constant 0 : i32
    %c0_i32_1 = arith.constant 0 : i32
    return %arg0, %c0_i32, %c0_i32_0 : i32, i32, i32
  }
  func.func @transform_3(%arg0: i32) -> (i32, i32) {
    %c0_i32 = arith.constant 0 : i32
    %c0_i32_0 = arith.constant 0 : i32
    %c0_i32_1 = arith.constant 0 : i32
    return %c0_i32, %c0_i32_0 : i32, i32
  }
  func.func @transform_4(%arg0: i32) -> (i32, i32) {
    %c0_i32 = arith.constant 0 : i32
    %c0_i32_0 = arith.constant 0 : i32
    %c0_i32_1 = arith.constant 0 : i32
    return %c0_i32, %c0_i32_0 : i32, i32
  }
  func.func @transform_5(%arg0: i32) -> (i32, i32) {
    %c0_i32 = arith.constant 0 : i32
    %c0_i32_0 = arith.constant 0 : i32
    %c0_i32_1 = arith.constant 0 : i32
    return %c0_i32, %c0_i32_0 : i32, i32
  }
  func.func @transform_6(%arg0: i32) -> (i32, i32, i32) {
    %c0_i32 = arith.constant 0 : i32
    %c0_i32_0 = arith.constant 0 : i32
    %c0_i32_1 = arith.constant 0 : i32
    %c0_i32_2 = arith.constant 0 : i32
    return %c0_i32, %c0_i32_0, %c0_i32_1 : i32, i32, i32
  }
  func.func @transform_7(%arg0: i32) -> (i32, i32, i32) {
    %c0_i32 = arith.constant 0 : i32
    %c0_i32_0 = arith.constant 0 : i32
    %c0_i32_1 = arith.constant 0 : i32
    return %arg0, %c0_i32, %c0_i32_0 : i32, i32, i32
  }
}

</mosaic_0001>

<llo_original>
// kernel: model_forward.1
$region0: #{model_forward.1}
  #allocation0 [shape = 'u32[]', space=smem, size = 0x4, offset = 0x4, fixed_abs, tag = 'smem constant byte address 0x4 - core index']
  #allocation1 [shape = 'u32[144,128]{1,0:T(1,128)}', space=vmem, size = 0x12000, scoped, tag = 'internal scratch']
  #allocation2 [shape = 'f32[248,128]{1,0:T(8,128)}', space=vmem, size = 0x1f000, scoped, tag = 'scratch operand']
  %s0 = inlined_call_operand.vmem [shape: f32[2,48,128], index: 0, kind: input, shape index: {}]
  %s1 = inlined_call_operand.vmem [shape: f32[2,48,128], index: 1, kind: input, shape index: {}]
  %s2 = inlined_call_operand.vmem [shape: f32[2,40,128], index: 2, kind: input, shape index: {}]
  %s3 = inlined_call_operand.vmem [shape: f32[128,128], index: 3, kind: input, shape index: {}]
  %s4 = inlined_call_operand.vmem [shape: f32[128,128], index: 4, kind: input, shape index: {}]
  %s5 = inlined_call_operand.vmem [shape: f32[128,128], index: 5, kind: input, shape index: {}]
  %s6 = inlined_call_operand.vmem [shape: f32[6,128,128], index: 6, kind: input, shape index: {}]
  %s7 = inlined_call_operand.vmem [shape: f32[2,208,128], index: 7, kind: output, shape index: {}]
  %s8 = sld [smem:[#allocation0]]
  $region61: #{model_forward.1} parent=0
    _
  %s10 = ssub.s32 1, %s8
  %s11 = scalar_select 0, %s10, %s8
  loop: start=0, step=1, limit=4
  $region2: #{model_forward.1} parent=0 // loop_pre_header
    _
  $region3: #{model_forward.1} parent=0 // loop_header
    %s13 = sphi 0, %s17
    %p14 = scmp.ge.s32.totalorder %s13, 4
    %s23 = sphi 0, %s25
    %s26 = sphi 0, %s23
    %s27 = sphi 0, %s26
    %s43 = sphi 0, %s27
    %s49 = sphi 0, %s51
    %s52 = sphi 0, %s49
    %s53 = sphi 0, %s52
    %s69 = sphi 0, %s53
    %s75 = sphi 0, %s77
    %s78 = sphi 0, %s75
    %s79 = sphi 0, %s78
    %s95 = sphi 0, %s79
    %s99 = sphi 0, %s99
    %s101 = sphi 0, %s99
    %s102 = sphi 0, %s101
    %s116 = sphi 0, %s102
    %s120 = sphi 0, %s120
    %s122 = sphi 0, %s120
    %s123 = sphi 0, %s122
    %s137 = sphi 0, %s123
    %s141 = sphi 0, %s141
    %s143 = sphi 0, %s141
    %s144 = sphi 0, %s143
    %s158 = sphi 0, %s144
    %s162 = sphi 0, %s162
    %s164 = sphi 0, %s162
    %s165 = sphi 0, %s164
    %s179 = sphi 0, %s165
    %s185 = sphi 0, %s187
    %s188 = sphi 0, %s185
    %s189 = sphi 0, %s188
    %s205 = sphi 0, %s189
  $region4: #{model_forward.1} parent=0 // loop_header_branch
    %16 = sbr.rel (%p14) target = $region8
  $region5: #{model_forward.1} parent=0 // loop_body
    %s18 = ssub.s32 %s13, 1
    %s19 = ssub.s32 %s13, 2
    %s20 = sadd.s32 %s13, 1
    %s21 = ssub.s32 %s13, %s20
    %p22 = scmp.eq.s32.totalorder %s21, 0
    %s24 = sadd.s32 %s23, 1
    %s25 = scalar_select %p22, %s23, %s24
    %p28 = pneg %p22
    %p29 = scmp.eq.s32.totalorder %s13, 1
    %p30 = por %p28, %p29
    %p31 = scmp.ne.s32.totalorder %s23, %s26
    %p32 = scmp.eq.s32.totalorder %s13, 0
    %p33 = por %p31, %p32
    %p34 = scmp.ne.s32.totalorder %s23, %s26
    %p35 = scmp.eq.s32.totalorder %s18, 1
    %p36 = por %p34, %p35
    %p37 = scmp.ne.s32.totalorder %s26, %s27
    %p38 = scmp.eq.s32.totalorder %s18, 0
    %p39 = por %p37, %p38
    %p40 = scmp.ne.s32.totalorder %s26, %s27
    %p41 = scmp.eq.s32.totalorder %s19, 1
    %p42 = por %p40, %p41
    %p44 = scmp.ne.s32.totalorder %s27, %s43
    %p45 = scmp.eq.s32.totalorder %s19, 0
    %p46 = por %p44, %p45
    %s47 = ssub.s32 %s13, %s20
    %p48 = scmp.eq.s32.totalorder %s47, 0
    %s50 = sadd.s32 %s49, 1
    %s51 = scalar_select %p48, %s49, %s50
    %p54 = pneg %p48
    %p55 = scmp.eq.s32.totalorder %s13, 1
    %p56 = por %p54, %p55
    %p57 = scmp.ne.s32.totalorder %s49, %s52
    %p58 = scmp.eq.s32.totalorder %s13, 0
    %p59 = por %p57, %p58
    %p60 = scmp.ne.s32.totalorder %s49, %s52
    %p61 = scmp.eq.s32.totalorder %s18, 1
    %p62 = por %p60, %p61
    %p63 = scmp.ne.s32.totalorder %s52, %s53
    %p64 = scmp.eq.s32.totalorder %s18, 0
    %p65 = por %p63, %p64
    %p66 = scmp.ne.s32.totalorder %s52, %s53
    %p67 = scmp.eq.s32.totalorder %s19, 1
    %p68 = por %p66, %p67
    %p70 = scmp.ne.s32.totalorder %s53, %s69
    %p71 = scmp.eq.s32.totalorder %s19, 0
    %p72 = por %p70, %p71
    %s73 = ssub.s32 %s13, %s20
    %p74 = scmp.eq.s32.totalorder %s73, 0
    %s76 = sadd.s32 %s75, 1
    %s77 = scalar_select %p74, %s75, %s76
    %p80 = pneg %p74
    %p81 = scmp.eq.s32.totalorder %s13, 1
    %p82 = por %p80, %p81
    %p83 = scmp.ne.s32.totalorder %s75, %s78
    %p84 = scmp.eq.s32.totalorder %s13, 0
    %p85 = por %p83, %p84
    %p86 = scmp.ne.s32.totalorder %s75, %s78
    %p87 = scmp.eq.s32.totalorder %s18, 1
    %p88 = por %p86, %p87
    %p89 = scmp.ne.s32.totalorder %s78, %s79
    %p90 = scmp.eq.s32.totalorder %s18, 0
    %p91 = por %p89, %p90
    %p92 = scmp.ne.s32.totalorder %s78, %s79
    %p93 = scmp.eq.s32.totalorder %s19, 1
    %p94 = por %p92, %p93
    %p96 = scmp.ne.s32.totalorder %s79, %s95
    %p97 = scmp.eq.s32.totalorder %s19, 0
    %p98 = por %p96, %p97
    %s100 = sadd.s32 %s99, 1
    %p103 = scmp.eq.s32.totalorder %s13, 1
    %p104 = scmp.ne.s32.totalorder %s99, %s101
    %p105 = scmp.eq.s32.totalorder %s13, 0
    %p106 = por %p104, %p105
    %p107 = scmp.ne.s32.totalorder %s99, %s101
    %p108 = scmp.eq.s32.totalorder %s18, 1
    %p109 = por %p107, %p108
    %p110 = scmp.ne.s32.totalorder %s101, %s102
    %p111 = scmp.eq.s32.totalorder %s18, 0
    %p112 = por %p110, %p111
    %p113 = scmp.ne.s32.totalorder %s101, %s102
    %p114 = scmp.eq.s32.totalorder %s19, 1
    %p115 = por %p113, %p114
    %p117 = scmp.ne.s32.totalorder %s102, %s116
    %p118 = scmp.eq.s32.totalorder %s19, 0
    %p119 = por %p117, %p118
    %s121 = sadd.s32 %s120, 1
    %p124 = scmp.eq.s32.totalorder %s13, 1
    %p125 = scmp.ne.s32.totalorder %s120, %s122
    %p126 = scmp.eq.s32.totalorder %s13, 0
    %p127 = por %p125, %p126
    %p128 = scmp.ne.s32.totalorder %s120, %s122
    %p129 = scmp.eq.s32.totalorder %s18, 1
    %p130 = por %p128, %p129
    %p131 = scmp.ne.s32.totalorder %s122, %s123
    %p132 = scmp.eq.s32.totalorder %s18, 0
    %p133 = por %p131, %p132
    %p134 = scmp.ne.s32.totalorder %s122, %s123
    %p135 = scmp.eq.s32.totalorder %s19, 1
    %p136 = por %p134, %p135
    %p138 = scmp.ne.s32.totalorder %s123, %s137
    %p139 = scmp.eq.s32.totalorder %s19, 0
    %p140 = por %p138, %p139
    %s142 = sadd.s32 %s141, 1
    %p145 = scmp.eq.s32.totalorder %s13, 1
    %p146 = scmp.ne.s32.totalorder %s141, %s143
    %p147 = scmp.eq.s32.totalorder %s13, 0
    %p148 = por %p146, %p147
    %p149 = scmp.ne.s32.totalorder %s141, %s143
    %p150 = scmp.eq.s32.totalorder %s18, 1
    %p151 = por %p149, %p150
    %p152 = scmp.ne.s32.totalorder %s143, %s144
    %p153 = scmp.eq.s32.totalorder %s18, 0
    %p154 = por %p152, %p153
    %p155 = scmp.ne.s32.totalorder %s143, %s144
    %p156 = scmp.eq.s32.totalorder %s19, 1
    %p157 = por %p155, %p156
    %p159 = scmp.ne.s32.totalorder %s144, %s158
    %p160 = scmp.eq.s32.totalorder %s19, 0
    %p161 = por %p159, %p160
    %s163 = sadd.s32 %s162, 1
    %p166 = scmp.eq.s32.totalorder %s13, 1
    %p167 = scmp.ne.s32.totalorder %s162, %s164
    %p168 = scmp.eq.s32.totalorder %s13, 0
    %p169 = por %p167, %p168
    %p170 = scmp.ne.s32.totalorder %s162, %s164
    %p171 = scmp.eq.s32.totalorder %s18, 1
    %p172 = por %p170, %p171
    %p173 = scmp.ne.s32.totalorder %s164, %s165
    %p174 = scmp.eq.s32.totalorder %s18, 0
    %p175 = por %p173, %p174
    %p176 = scmp.ne.s32.totalorder %s164, %s165
    %p177 = scmp.eq.s32.totalorder %s19, 1
    %p178 = por %p176, %p177
    %p180 = scmp.ne.s32.totalorder %s165, %s179
    %p181 = scmp.eq.s32.totalorder %s19, 0
    %p182 = por %p180, %p181
    %s183 = ssub.s32 %s13, %s20
    %p184 = scmp.eq.s32.totalorder %s183, 0
    %s186 = sadd.s32 %s185, 1
    %s187 = scalar_select %p184, %s185, %s186
    %p190 = pneg %p184
    %p191 = scmp.eq.s32.totalorder %s13, 1
    %p192 = por %p190, %p191
    %p193 = scmp.ne.s32.totalorder %s185, %s188
    %p194 = scmp.eq.s32.totalorder %s13, 0
    %p195 = por %p193, %p194
    %p196 = scmp.ne.s32.totalorder %s185, %s188
    %p197 = scmp.eq.s32.totalorder %s18, 1
    %p198 = por %p196, %p197
    %p199 = scmp.ne.s32.totalorder %s188, %s189
    %p200 = scmp.eq.s32.totalorder %s18, 0
    %p201 = por %p199, %p200
    %p202 = scmp.ne.s32.totalorder %s188, %s189
    %p203 = scmp.eq.s32.totalorder %s19, 1
    %p204 = por %p202, %p203
    %p206 = scmp.ne.s32.totalorder %s189, %s205
    %p207 = scmp.eq.s32.totalorder %s19, 0
    %p208 = por %p206, %p207
    %p209 = scmp.le.s32.totalorder 1, %s13
    %p210 = scmp.lt.s32.totalorder %s13, 3
    %p211 = pnand %p209, %p210
    %p212 = pneg %p211
    // Predicated region
    $region9: #{model_forward.1} parent=5 // pred_check
      _
    $region10: #{model_forward.1} parent=5 // pred_check_branch
      %214 = sbr.rel (%p211) target = $region12
    $region11: #{model_forward.1} parent=5 // pred_region
      %s215 = ssub.s32 %s13, 1
      // Predicated region
      $region13: #{model_forward.1} parent=11 // pred_check
        %p216 = pneg %p112
      $region14: #{model_forward.1} parent=11 // pred_check_branch
        %218 = sbr.rel (%p216) target = $region16
      $region15: #{model_forward.1} parent=11 // pred_region
        _
      $region16: #{model_forward.1} parent=11 // pred_fallthru
        _
      // Predicated region
      $region17: #{model_forward.1} parent=11 // pred_check
        %p219 = pneg %p133
      $region18: #{model_forward.1} parent=11 // pred_check_branch
        %221 = sbr.rel (%p219) target = $region20
      $region19: #{model_forward.1} parent=11 // pred_region
        _
      $region20: #{model_forward.1} parent=11 // pred_fallthru
        _
      // Predicated region
      $region21: #{model_forward.1} parent=11 // pred_check
        %p222 = pneg %p154
      $region22: #{model_forward.1} parent=11 // pred_check_branch
        %224 = sbr.rel (%p222) target = $region24
      $region23: #{model_forward.1} parent=11 // pred_region
        _
      $region24: #{model_forward.1} parent=11 // pred_fallthru
        _
      // Predicated region
      $region25: #{model_forward.1} parent=11 // pred_check
        %p225 = pneg %p175
      $region26: #{model_forward.1} parent=11 // pred_check_branch
        %227 = sbr.rel (%p225) target = $region28
      $region27: #{model_forward.1} parent=11 // pred_region
        _
      $region28: #{model_forward.1} parent=11 // pred_fallthru
        _
    $region12: #{model_forward.1} parent=5 // pred_fallthru
      _
    %p228 = scmp.lt.s32.totalorder %s13, 2
    // Predicated region
    $region29: #{model_forward.1} parent=5 // pred_check
      %p229 = pneg %p228
    $region30: #{model_forward.1} parent=5 // pred_check_branch
      %231 = sbr.rel (%p229) target = $region32
    $region31: #{model_forward.1} parent=5 // pred_region
      // Predicated region
      $region33: #{model_forward.1} parent=31 // pred_check
        %p232 = pneg %p33
      $region34: #{model_forward.1} parent=31 // pred_check_branch
        %234 = sbr.rel (%p232) target = $region36
      $region35: #{model_forward.1} parent=31 // pred_region
        %p235 = scmp.lt.s32.totalorder %s13, 1
        %s236 = scalar_select %p235, %s13, 1
        %s237 = smul.addr %s236, 6
        %s238 = smul.addr %s237, 8
        %s239 = scalar_lea.vmem %s0, %s238
      $region36: #{model_forward.1} parent=31 // pred_fallthru
        _
      // Predicated region
      $region37: #{model_forward.1} parent=31 // pred_check
        %p240 = pneg %p59
      $region38: #{model_forward.1} parent=31 // pred_check_branch
        %242 = sbr.rel (%p240) target = $region40
      $region39: #{model_forward.1} parent=31 // pred_region
        %p243 = scmp.lt.s32.totalorder %s13, 1
        %s244 = scalar_select %p243, %s13, 1
        %s245 = smul.addr %s244, 6
        %s246 = smul.addr %s245, 8
        %s247 = scalar_lea.vmem %s1, %s246
      $region40: #{model_forward.1} parent=31 // pred_fallthru
        _
      // Predicated region
      $region41: #{model_forward.1} parent=31 // pred_check
        %p248 = pneg %p85
      $region42: #{model_forward.1} parent=31 // pred_check_branch
        %250 = sbr.rel (%p248) target = $region44
      $region43: #{model_forward.1} parent=31 // pred_region
        %p251 = scmp.lt.s32.totalorder %s13, 1
        %s252 = scalar_select %p251, %s13, 1
        %s253 = smul.addr %s252, 5
        %s254 = smul.addr %s253, 8
        %s255 = scalar_lea.vmem %s2, %s254
      $region44: #{model_forward.1} parent=31 // pred_fallthru
        _
    $region32: #{model_forward.1} parent=5 // pred_fallthru
      _
    %p256 = scmp.le.s32.totalorder 1, %s13
    %p257 = scmp.lt.s32.totalorder %s13, 3
    %p258 = pnand %p256, %p257
    %p259 = pneg %p258
    // Predicated region
    $region45: #{model_forward.1} parent=5 // pred_check
      _
    $region46: #{model_forward.1} parent=5 // pred_check_branch
      %261 = sbr.rel (%p258) target = $region48
    $region47: #{model_forward.1} parent=5 // pred_region
      %s262 = ssub.s32 %s13, 1
      %p263 = scmp.lt.s32.totalorder %s18, 1
      %s264 = scalar_select %p263, %s18, 1
      %s265 = smul.addr %s264, 6
      %s266 = smul.addr %s265, 8
      %s267 = scalar_lea.vmem %s0, %s266
      %p268 = pneg %p39
      %p269 = pneg %p36
      %p270 = scmp.lt.s32.totalorder %s18, 1
      %s271 = scalar_select %p270, %s18, 1
      %s272 = smul.addr %s271, 6
      %s273 = smul.addr %s272, 8
      %s274 = scalar_lea.vmem %s1, %s273
      %p275 = pneg %p65
      %p276 = pneg %p62
      %p277 = scmp.lt.s32.totalorder %s18, 1
      %s278 = scalar_select %p277, %s18, 1
      %s279 = smul.addr %s278, 5
      %s280 = smul.addr %s279, 8
      %s281 = scalar_lea.vmem %s2, %s280
      %p282 = pneg %p91
      %p283 = pneg %p88
      %p284 = pneg %p112
      %p285 = pneg %p109
      %p286 = pneg %p133
      %p287 = pneg %p130
      %p288 = pneg %p154
      %p289 = pneg %p151
      %p290 = pneg %p175
      %p291 = pneg %p172
      %p292 = pneg %p201
      %p293 = pneg %p198
      %p294 = scmp.lt.s32.totalorder %s18, 1
      %s295 = scalar_select %p294, %s18, 1
      %s296 = smul.addr %s295, 26
      %s297 = smul.addr %s296, 8
      %s298 = scalar_lea.vmem %s7, %s297
      %p299 = scmp.lt.s32.totalorder %s18, 1
      %s300 = scalar_select %p299, %s18, 1
      %s301 = smul.addr %s300, 6
      %s302 = smul.addr %s301, 8
      %s303 = scalar_lea.vmem %s0, %s302
      %p304 = scmp.lt.s32.totalorder %s18, 1
      %s305 = scalar_select %p304, %s18, 1
      %s306 = smul.addr %s305, 6
      %s307 = smul.addr %s306, 8
      %s308 = scalar_lea.vmem %s1, %s307
      %p309 = scmp.lt.s32.totalorder %s18, 1
      %s310 = scalar_select %p309, %s18, 1
      %s311 = smul.addr %s310, 5
      %s312 = smul.addr %s311, 8
      %s313 = scalar_lea.vmem %s2, %s312
      %p314 = scmp.lt.s32.totalorder %s18, 1
      %s315 = scalar_select %p314, %s18, 1
      %s316 = smul.addr %s315, 26
      %s317 = smul.addr %s316, 8
      %s318 = scalar_lea.vmem %s7, %s317
      %v319 = vld [vmem:[%s303] sm:$0xff]
      %v320 = vld [vmem:[%s303 + $0x8] sm:$0xff]
      %v321 = vld [vmem:[%s303 + $0x10] sm:$0xff]
      %v322 = vld [vmem:[%s303 + $0x18] sm:$0xff]
      %v323 = vld [vmem:[%s303 + $0x20] sm:$0xff]
      %v324 = vld [vmem:[%s303 + $0x28] sm:$0xff]
      %v325 = vld [vmem:[%s3] sm:$0xff]
      %v326 = vld [vmem:[%s3 + $0x8] sm:$0xff]
      %v327 = vld [vmem:[%s3 + $0x10] sm:$0xff]
      %v328 = vld [vmem:[%s3 + $0x18] sm:$0xff]
      %v329 = vld [vmem:[%s3 + $0x20] sm:$0xff]
      %v330 = vld [vmem:[%s3 + $0x28] sm:$0xff]
      %v331 = vld [vmem:[%s3 + $0x30] sm:$0xff]
      %v332 = vld [vmem:[%s3 + $0x38] sm:$0xff]
      %v333 = vld [vmem:[%s3 + $0x40] sm:$0xff]
      %v334 = vld [vmem:[%s3 + $0x48] sm:$0xff]
      %v335 = vld [vmem:[%s3 + $0x50] sm:$0xff]
      %v336 = vld [vmem:[%s3 + $0x58] sm:$0xff]
      %v337 = vld [vmem:[%s3 + $0x60] sm:$0xff]
      %v338 = vld [vmem:[%s3 + $0x68] sm:$0xff]
      %v339 = vld [vmem:[%s3 + $0x70] sm:$0xff]
      %v340 = vld [vmem:[%s3 + $0x78] sm:$0xff]
      %v341 = vld [vmem:[%s308] sm:$0xff]
      %v342 = vld [vmem:[%s308 + $0x8] sm:$0xff]
      %v343 = vld [vmem:[%s308 + $0x10] sm:$0xff]
      %v344 = vld [vmem:[%s308 + $0x18] sm:$0xff]
      %v345 = vld [vmem:[%s308 + $0x20] sm:$0xff]
      %v346 = vld [vmem:[%s308 + $0x28] sm:$0xff]
      %v347 = vld [vmem:[%s4] sm:$0xff]
      %v348 = vld [vmem:[%s4 + $0x8] sm:$0xff]
      %v349 = vld [vmem:[%s4 + $0x10] sm:$0xff]
      %v350 = vld [vmem:[%s4 + $0x18] sm:$0xff]
      %v351 = vld [vmem:[%s4 + $0x20] sm:$0xff]
      %v352 = vld [vmem:[%s4 + $0x28] sm:$0xff]
      %v353 = vld [vmem:[%s4 + $0x30] sm:$0xff]
      %v354 = vld [vmem:[%s4 + $0x38] sm:$0xff]
      %v355 = vld [vmem:[%s4 + $0x40] sm:$0xff]
      %v356 = vld [vmem:[%s4 + $0x48] sm:$0xff]
      %v357 = vld [vmem:[%s4 + $0x50] sm:$0xff]
      %v358 = vld [vmem:[%s4 + $0x58] sm:$0xff]
      %v359 = vld [vmem:[%s4 + $0x60] sm:$0xff]
      %v360 = vld [vmem:[%s4 + $0x68] sm:$0xff]
      %v361 = vld [vmem:[%s4 + $0x70] sm:$0xff]
      %v362 = vld [vmem:[%s4 + $0x78] sm:$0xff]
      %363 = vmatprep.subr.mxu0 0.0
      %364 = vmatpush1.msra.mxu0 %v347
      %365 = vmatprep.subr.mxu0 0.0
      %366 = vmatpush1.msra.mxu0 %v348
      %367 = vmatprep.subr.mxu0 0.0
      %368 = vmatpush1.msra.mxu0 %v349
      %369 = vmatprep.subr.mxu0 0.0
      %370 = vmatpush1.msra.mxu0 %v350
      %371 = vmatprep.subr.mxu0 0.0
      %372 = vmatpush1.msra.mxu0 %v351
      %373 = vmatprep.subr.mxu0 0.0
      %374 = vmatpush1.msra.mxu0 %v352
      %375 = vmatprep.subr.mxu0 0.0
      %376 = vmatpush1.msra.mxu0 %v353
      %377 = vmatprep.subr.mxu0 0.0
      %378 = vmatpush1.msra.mxu0 %v354
      %379 = vmatprep.subr.mxu0 0.0
      %380 = vmatpush1.msra.mxu0 %v355
      %381 = vmatprep.subr.mxu0 0.0
      %382 = vmatpush1.msra.mxu0 %v356
      %383 = vmatprep.subr.mxu0 0.0
      %384 = vmatpush1.msra.mxu0 %v357
      %385 = vmatprep.subr.mxu0 0.0
      %386 = vmatpush1.msra.mxu0 %v358
      %387 = vmatprep.subr.mxu0 0.0
      %388 = vmatpush1.msra.mxu0 %v359
      %389 = vmatprep.subr.mxu0 0.0
      %390 = vmatpush1.msra.mxu0 %v360
      %391 = vmatprep.subr.mxu0 0.0
      %392 = vmatpush1.msra.mxu0 %v361
      %393 = vmatprep.subr.mxu0 0.0
      %394 = vmatpush1.msra.mxu0 %v362
      %395 = vmatprep.subr.mxu0 0.0
      %396 = vmatpush1.msra.mxu0 0.0
      %397 = vmatprep.subr.mxu0 0.0
      %398 = vmatpush1.msra.mxu0 0.0
      %399 = vmatprep.subr.mxu0 0.0
      %400 = vmatpush1.msra.mxu0 0.0
      %401 = vmatprep.subr.mxu0 0.0
      %402 = vmatpush1.msra.mxu0 0.0
      %403 = vmatprep.subr.mxu0 0.0
      %404 = vmatpush1.msra.mxu0 0.0
      %405 = vmatprep.subr.mxu0 0.0
      %406 = vmatpush1.msra.mxu0 0.0
      %407 = vmatprep.subr.mxu0 0.0
      %408 = vmatpush1.msra.mxu0 0.0
      %409 = vmatprep.subr.mxu0 0.0
      %410 = vmatpush1.msra.mxu0 0.0
      %411 = vmatprep.subr.mxu0 0.0
      %412 = vmatpush1.msra.mxu0 0.0
      %413 = vmatprep.subr.mxu0 0.0
      %414 = vmatpush1.msra.mxu0 0.0
      %415 = vmatprep.subr.mxu0 0.0
      %416 = vmatpush1.msra.mxu0 0.0
      %417 = vmatprep.subr.mxu0 0.0
      %418 = vmatpush1.msra.mxu0 0.0
      %419 = vmatprep.subr.mxu0 0.0
      %420 = vmatpush1.msra.mxu0 0.0
      %421 = vmatprep.subr.mxu0 0.0
      %422 = vmatpush1.msra.mxu0 0.0
      %423 = vmatprep.subr.mxu0 0.0
      %424 = vmatpush1.msra.mxu0 0.0
      %425 = vmatprep.subr.mxu0 0.0
      %426 = vmatpush1.msra.mxu0 0.0
      %427 = vmatprep.mubr.f32.mxu0 0.0
      %428 = vmatmul.mubr.f32.gmra.mrb[0].mxu0 %v341
      %v429 = vpop.f32.mrb[0].mxu0
      %v430 = vadd.f32 0.0, %v429
      %v431 = vpop.f32.mrb[0].mxu0
      %432 = vmatprep.mubr.f32.mxu0 0.0
      %433 = vmatmul.mubr.f32.gmra.mrb[0].mxu0 %v342
      %v434 = vpop.f32.mrb[0].mxu0
      %v435 = vadd.f32 0.0, %v434
      %v436 = vpop.f32.mrb[0].mxu0
      %437 = vmatprep.mubr.f32.mxu0 0.0
      %438 = vmatmul.mubr.f32.gmra.mrb[0].mxu0 %v343
      %v439 = vpop.f32.mrb[0].mxu0
      %v440 = vadd.f32 0.0, %v439
      %v441 = vpop.f32.mrb[0].mxu0
      %442 = vmatprep.mubr.f32.mxu0 0.0
      %443 = vmatmul.mubr.f32.gmra.mrb[0].mxu0 %v344
      %v444 = vpop.f32.mrb[0].mxu0
      %v445 = vadd.f32 0.0, %v444
      %v446 = vpop.f32.mrb[0].mxu0
      %447 = vmatprep.mubr.f32.mxu0 0.0
      %448 = vmatmul.mubr.f32.gmra.mrb[0].mxu0 %v345
      %v449 = vpop.f32.mrb[0].mxu0
      %v450 = vadd.f32 0.0, %v449
      %v451 = vpop.f32.mrb[0].mxu0
      %452 = vmatprep.mubr.f32.mxu0 0.0
      %453 = vmatmul.mubr.f32.gmra.mrb[0].mxu0 %v346
      %v454 = vpop.f32.mrb[0].mxu0
      %v455 = vadd.f32 0.0, %v454
      %v456 = vpop.f32.mrb[0].mxu0
      %457 = vdwg.mxu0
      %458 = vmatprep.subr.mxu0 0.0
      %459 = vmatpush1.msra.mxu0 %v325
      %460 = vmatprep.subr.mxu0 0.0
      %461 = vmatpush1.msra.mxu0 %v326
      %462 = vmatprep.subr.mxu0 0.0
      %463 = vmatpush1.msra.mxu0 %v327
      %464 = vmatprep.subr.mxu0 0.0
      %465 = vmatpush1.msra.mxu0 %v328
      %466 = vmatprep.subr.mxu0 0.0
      %467 = vmatpush1.msra.mxu0 %v329
      %468 = vmatprep.subr.mxu0 0.0
      %469 = vmatpush1.msra.mxu0 %v330
      %470 = vmatprep.subr.mxu0 0.0
      %471 = vmatpush1.msra.mxu0 %v331
      %472 = vmatprep.subr.mxu0 0.0
      %473 = vmatpush1.msra.mxu0 %v332
      %474 = vmatprep.subr.mxu0 0.0
      %475 = vmatpush1.msra.mxu0 %v333
      %476 = vmatprep.subr.mxu0 0.0
      %477 = vmatpush1.msra.mxu0 %v334
      %478 = vmatprep.subr.mxu0 0.0
      %479 = vmatpush1.msra.mxu0 %v335
      %480 = vmatprep.subr.mxu0 0.0
      %481 = vmatpush1.msra.mxu0 %v336
      %482 = vmatprep.subr.mxu0 0.0
      %483 = vmatpush1.msra.mxu0 %v337
      %484 = vmatprep.subr.mxu0 0.0
      %485 = vmatpush1.msra.mxu0 %v338
      %486 = vmatprep.subr.mxu0 0.0
      %487 = vmatpush1.msra.mxu0 %v339
      %488 = vmatprep.subr.mxu0 0.0
      %489 = vmatpush1.msra.mxu0 %v340
      %490 = vmatprep.subr.mxu0 0.0
      %491 = vmatpush1.msra.mxu0 0.0
      %492 = vmatprep.subr.mxu0 0.0
      %493 = vmatpush1.msra.mxu0 0.0
      %494 = vmatprep.subr.mxu0 0.0
      %495 = vmatpush1.msra.mxu0 0.0
      %496 = vmatprep.subr.mxu0 0.0
      %497 = vmatpush1.msra.mxu0 0.0
      %498 = vmatprep.subr.mxu0 0.0
      %499 = vmatpush1.msra.mxu0 0.0
      %500 = vmatprep.subr.mxu0 0.0
      %501 = vmatpush1.msra.mxu0 0.0
      %502 = vmatprep.subr.mxu0 0.0
      %503 = vmatpush1.msra.mxu0 0.0
      %504 = vmatprep.subr.mxu0 0.0
      %505 = vmatpush1.msra.mxu0 0.0
      %506 = vmatprep.subr.mxu0 0.0
      %507 = vmatpush1.msra.mxu0 0.0
      %508 = vmatprep.subr.mxu0 0.0
      %509 = vmatpush1.msra.mxu0 0.0
      %510 = vmatprep.subr.mxu0 0.0
      %511 = vmatpush1.msra.mxu0 0.0
      %512 = vmatprep.subr.mxu0 0.0
      %513 = vmatpush1.msra.mxu0 0.0
      %514 = vmatprep.subr.mxu0 0.0
      %515 = vmatpush1.msra.mxu0 0.0
      %516 = vmatprep.subr.mxu0 0.0
      %517 = vmatpush1.msra.mxu0 0.0
      %518 = vmatprep.subr.mxu0 0.0
      %519 = vmatpush1.msra.mxu0 0.0
      %520 = vmatprep.subr.mxu0 0.0
      %521 = vmatpush1.msra.mxu0 0.0
      %522 = vmatprep.mubr.f32.mxu0 0.0
      %523 = vmatmul.mubr.f32.gmra.mrb[0].mxu0 %v319
      %v524 = vpop.f32.mrb[0].mxu0
      %v525 = vadd.f32 %v430, %v524
      %v526 = vpop.f32.mrb[0].mxu0
      %527 = vmatprep.mubr.f32.mxu0 0.0
      %528 = vmatmul.mubr.f32.gmra.mrb[0].mxu0 %v320
      %v529 = vpop.f32.mrb[0].mxu0
      %v530 = vadd.f32 %v435, %v529
      %v531 = vpop.f32.mrb[0].mxu0
      %532 = vmatprep.mubr.f32.mxu0 0.0
      %533 = vmatmul.mubr.f32.gmra.mrb[0].mxu0 %v321
      %v534 = vpop.f32.mrb[0].mxu0
      %v535 = vadd.f32 %v440, %v534
      %v536 = vpop.f32.mrb[0].mxu0
      %537 = vmatprep.mubr.f32.mxu0 0.0
      %538 = vmatmul.mubr.f32.gmra.mrb[0].mxu0 %v322
      %v539 = vpop.f32.mrb[0].mxu0
      %v540 = vadd.f32 %v445, %v539
      %v541 = vpop.f32.mrb[0].mxu0
      %542 = vmatprep.mubr.f32.mxu0 0.0
      %543 = vmatmul.mubr.f32.gmra.mrb[0].mxu0 %v323
      %v544 = vpop.f32.mrb[0].mxu0
      %v545 = vadd.f32 %v450, %v544
      %v546 = vpop.f32.mrb[0].mxu0
      %547 = vmatprep.mubr.f32.mxu0 0.0
      %548 = vmatmul.mubr.f32.gmra.mrb[0].mxu0 %v324
      %v549 = vpop.f32.mrb[0].mxu0
      %v550 = vadd.f32 %v455, %v549
      %v551 = vpop.f32.mrb[0].mxu0
      %552 = vdwg.mxu0
      %v553 = vld [vmem:[%s313] sm:$0xff]
      %v554 = vld [vmem:[%s313 + $0x8] sm:$0xff]
      %v555 = vld [vmem:[%s313 + $0x10] sm:$0xff]
      %v556 = vld [vmem:[%s313 + $0x18] sm:$0xff]
      %v557 = vld [vmem:[%s313 + $0x20] sm:$0xff]
      %v558 = vld [vmem:[%s5] sm:$0xff]
      %v559 = vld [vmem:[%s5 + $0x8] sm:$0xff]
      %v560 = vld [vmem:[%s5 + $0x10] sm:$0xff]
      %v561 = vld [vmem:[%s5 + $0x18] sm:$0xff]
      %v562 = vld [vmem:[%s5 + $0x20] sm:$0xff]
      %v563 = vld [vmem:[%s5 + $0x28] sm:$0xff]
      %v564 = vld [vmem:[%s5 + $0x30] sm:$0xff]
      %v565 = vld [vmem:[%s5 + $0x38] sm:$0xff]
      %v566 = vld [vmem:[%s5 + $0x40] sm:$0xff]
      %v567 = vld [vmem:[%s5 + $0x48] sm:$0xff]
      %v568 = vld [vmem:[%s5 + $0x50] sm:$0xff]
      %v569 = vld [vmem:[%s5 + $0x58] sm:$0xff]
      %v570 = vld [vmem:[%s5 + $0x60] sm:$0xff]
      %v571 = vld [vmem:[%s5 + $0x68] sm:$0xff]
      %v572 = vld [vmem:[%s5 + $0x70] sm:$0xff]
      %v573 = vld [vmem:[%s5 + $0x78] sm:$0xff]
      %574 = vmatprep.subr.mxu0 0.0
      %575 = vmatpush1.msra.mxu0 %v558
      %576 = vmatprep.subr.mxu0 0.0
      %577 = vmatpush1.msra.mxu0 %v559
      %578 = vmatprep.subr.mxu0 0.0
      %579 = vmatpush1.msra.mxu0 %v560
      %580 = vmatprep.subr.mxu0 0.0
      %581 = vmatpush1.msra.mxu0 %v561
      %582 = vmatprep.subr.mxu0 0.0
      %583 = vmatpush1.msra.mxu0 %v562
      %584 = vmatprep.subr.mxu0 0.0
      %585 = vmatpush1.msra.mxu0 %v563
      %586 = vmatprep.subr.mxu0 0.0
      %587 = vmatpush1.msra.mxu0 %v564
      %588 = vmatprep.subr.mxu0 0.0
      %589 = vmatpush1.msra.mxu0 %v565
      %590 = vmatprep.subr.mxu0 0.0
      %591 = vmatpush1.msra.mxu0 %v566
      %592 = vmatprep.subr.mxu0 0.0
      %593 = vmatpush1.msra.mxu0 %v567
      %594 = vmatprep.subr.mxu0 0.0
      %595 = vmatpush1.msra.mxu0 %v568
      %596 = vmatprep.subr.mxu0 0.0
      %597 = vmatpush1.msra.mxu0 %v569
      %598 = vmatprep.subr.mxu0 0.0
      %599 = vmatpush1.msra.mxu0 %v570
      %600 = vmatprep.subr.mxu0 0.0
      %601 = vmatpush1.msra.mxu0 %v571
      %602 = vmatprep.subr.mxu0 0.0
      %603 = vmatpush1.msra.mxu0 %v572
      %604 = vmatprep.subr.mxu0 0.0
      %605 = vmatpush1.msra.mxu0 %v573
      %606 = vmatprep.subr.mxu0 0.0
      %607 = vmatpush1.msra.mxu0 0.0
      %608 = vmatprep.subr.mxu0 0.0
      %609 = vmatpush1.msra.mxu0 0.0
      %610 = vmatprep.subr.mxu0 0.0
      %611 = vmatpush1.msra.mxu0 0.0
      %612 = vmatprep.subr.mxu0 0.0
      %613 = vmatpush1.msra.mxu0 0.0
      %614 = vmatprep.subr.mxu0 0.0
      %615 = vmatpush1.msra.mxu0 0.0
      %616 = vmatprep.subr.mxu0 0.0
      %617 = vmatpush1.msra.mxu0 0.0
      %618 = vmatprep.subr.mxu0 0.0
      %619 = vmatpush1.msra.mxu0 0.0
      %620 = vmatprep.subr.mxu0 0.0
      %621 = vmatpush1.msra.mxu0 0.0
      %622 = vmatprep.subr.mxu0 0.0
      %623 = vmatpush1.msra.mxu0 0.0
      %624 = vmatprep.subr.mxu0 0.0
      %625 = vmatpush1.msra.mxu0 0.0
      %626 = vmatprep.subr.mxu0 0.0
      %627 = vmatpush1.msra.mxu0 0.0
      %628 = vmatprep.subr.mxu0 0.0
      %629 = vmatpush1.msra.mxu0 0.0
      %630 = vmatprep.subr.mxu0 0.0
      %631 = vmatpush1.msra.mxu0 0.0
      %632 = vmatprep.subr.mxu0 0.0
      %633 = vmatpush1.msra.mxu0 0.0
      %634 = vmatprep.subr.mxu0 0.0
      %635 = vmatpush1.msra.mxu0 0.0
      %636 = vmatprep.subr.mxu0 0.0
      %637 = vmatpush1.msra.mxu0 0.0
      %638 = vmatprep.mubr.f32.mxu0 0.0
      %639 = vmatmul.mubr.f32.gmra.mrb[0].mxu0 %v553
      %v640 = vpop.f32.mrb[0].mxu0
      %v641 = vadd.f32 0.0, %v640
      %v642 = vpop.f32.mrb[0].mxu0
      %643 = vmatprep.mubr.f32.mxu0 0.0
      %644 = vmatmul.mubr.f32.gmra.mrb[0].mxu0 %v554
      %v645 = vpop.f32.mrb[0].mxu0
      %v646 = vadd.f32 0.0, %v645
      %v647 = vpop.f32.mrb[0].mxu0
      %648 = vmatprep.mubr.f32.mxu0 0.0
      %649 = vmatmul.mubr.f32.gmra.mrb[0].mxu0 %v555
      %v650 = vpop.f32.mrb[0].mxu0
      %v651 = vadd.f32 0.0, %v650
      %v652 = vpop.f32.mrb[0].mxu0
      %653 = vmatprep.mubr.f32.mxu0 0.0
      %654 = vmatmul.mubr.f32.gmra.mrb[0].mxu0 %v556
      %v655 = vpop.f32.mrb[0].mxu0
      %v656 = vadd.f32 0.0, %v655
      %v657 = vpop.f32.mrb[0].mxu0
      %658 = vmatprep.mubr.f32.mxu0 0.0
      %659 = vmatmul.mubr.f32.gmra.mrb[0].mxu0 %v557
      %v660 = vpop.f32.mrb[0].mxu0
      %v661 = vadd.f32 0.0, %v660
      %v662 = vpop.f32.mrb[0].mxu0
      %663 = vdwg.mxu0
      %664 = vst [vmem:[#allocation2] sm:$0xff] 0.0
      %665 = vst [vmem:[#allocation2 + $0x8] sm:$0xff] 0.0
      %666 = vst [vmem:[#allocation2 + $0x10] sm:$0xff] 0.0
      %667 = vst [vmem:[#allocation2 + $0x18] sm:$0xff] 0.0
      %668 = vst [vmem:[#allocation2 + $0x20] sm:$0xff] 0.0
      %669 = vst [vmem:[#allocation2 + $0x28] sm:$0xff] 0.0
      %670 = vst [vmem:[#allocation2 + $0x30] sm:$0xff] 0.0
      %671 = vst [vmem:[#allocation2 + $0x38] sm:$0xff] 0.0
      %672 = vst [vmem:[#allocation2 + $0x40] sm:$0xff] 0.0
      %673 = vst [vmem:[#allocation2 + $0x48] sm:$0xff] 0.0
      %674 = vst [vmem:[#allocation2 + $0x50] sm:$0xff] 0.0
      %675 = vst [vmem:[#allocation2 + $0x58] sm:$0xff] 0.0
      %676 = vst [vmem:[#allocation2 + $0x60] sm:$0xff] 0.0
      %677 = vst [vmem:[#allocation2 + $0x68] sm:$0xff] 0.0
      %678 = vst [vmem:[#allocation2 + $0x70] sm:$0xff] 0.0
      %679 = vst [vmem:[#allocation2 + $0x78] sm:$0xff] 0.0
      %680 = vst [vmem:[#allocation2 + $0x80] sm:$0xff] 0.0
      %681 = vst [vmem:[#allocation2 + $0x88] sm:$0xff] 0.0
      %682 = vst [vmem:[#allocation2 + $0x90] sm:$0xff] 0.0
      %683 = vst [vmem:[#allocation2 + $0x98] sm:$0xff] 0.0
      %684 = vst [vmem:[#allocation2 + $0xa0] sm:$0xff] 0.0
      %685 = vst [vmem:[#allocation2 + $0xa8] sm:$0xff] 0.0
      %686 = vst [vmem:[#allocation2 + $0xb0] sm:$0xff] 0.0
      %687 = vst [vmem:[#allocation2 + $0xb8] sm:$0xff] 0.0
      %688 = vst [vmem:[#allocation2 + $0xc0] sm:$0xff] 0.0
      %689 = vst [vmem:[#allocation2 + $0xc8] sm:$0xff] 0.0
      %690 = vst [vmem:[#allocation2 + $0xd0] sm:$0xff] 0.0
      %691 = vst [vmem:[#allocation2 + $0xd8] sm:$0xff] 0.0
      %692 = vst [vmem:[#allocation2 + $0xe0] sm:$0xff] 0.0
      %693 = vst [vmem:[#allocation2 + $0xe8] sm:$0xff] 0.0
      %694 = vst [vmem:[#allocation2 + $0xf0] sm:$0xff] 0.0
      %695 = vst [vmem:[#allocation2 + $0x28] sm:$0xff] %v525
      %696 = vst [vmem:[#allocation2 + $0x48] sm:$0xff] %v530
      %697 = vst [vmem:[#allocation2 + $0x68] sm:$0xff] %v535
      %698 = vst [vmem:[#allocation2 + $0x88] sm:$0xff] %v540
      %699 = vst [vmem:[#allocation2 + $0xa8] sm:$0xff] %v545
      %700 = vst [vmem:[#allocation2 + $0xc8] sm:$0xff] %v550
      %701 = vst [vmem:[#allocation2 + $0x38] sm:$0xff] %v641
      %702 = vst [vmem:[#allocation2 + $0x58] sm:$0xff] %v646
      %703 = vst [vmem:[#allocation2 + $0x78] sm:$0xff] %v651
      %704 = vst [vmem:[#allocation2 + $0x98] sm:$0xff] %v656
      %705 = vst [vmem:[#allocation2 + $0xb8] sm:$0xff] %v661
      %v706 = vld [vmem:[#allocation2 + $0x28] sm:$0xff]
      %v707 = vld [vmem:[#allocation2 + $0x30] sm:$0xff]
      %v708 = vld [vmem:[#allocation2 + $0x38] sm:$0xff]
      %v709 = vld [vmem:[#allocation2 + $0x40] sm:$0xff]
      %v710 = vld [vmem:[#allocation2 + $0x48] sm:$0xff]
      %v711 = vld [vmem:[#allocation2 + $0x50] sm:$0xff]
      %v712 = vld [vmem:[#allocation2 + $0x58] sm:$0xff]
      %v713 = vld [vmem:[#allocation2 + $0x60] sm:$0xff]
      %v714 = vld [vmem:[#allocation2 + $0x68] sm:$0xff]
      %v715 = vld [vmem:[#allocation2 + $0x70] sm:$0xff]
      %v716 = vld [vmem:[#allocation2 + $0x78] sm:$0xff]
      %v717 = vld [vmem:[#allocation2 + $0x80] sm:$0xff]
      %v718 = vld [vmem:[#allocation2 + $0x88] sm:$0xff]
      %v719 = vld [vmem:[#allocation2 + $0x90] sm:$0xff]
      %v720 = vld [vmem:[#allocation2 + $0x98] sm:$0xff]
      %v721 = vld [vmem:[#allocation2 + $0xa0] sm:$0xff]
      %v722 = vld [vmem:[#allocation2 + $0xa8] sm:$0xff]
      %v723 = vld [vmem:[#allocation2 + $0xb0] sm:$0xff]
      %v724 = vld [vmem:[#allocation2 + $0xb8] sm:$0xff]
      %v725 = vld [vmem:[#allocation2 + $0xc0] sm:$0xff]
      %v726 = vld [vmem:[#allocation2 + $0xc8] sm:$0xff]
      %v727 = vld [vmem:[#allocation2 + $0xd0] sm:$0xff]
      %v728 = vld [vmem:[#allocation2 + $0xd8] sm:$0xff]
      %v729 = vld [vmem:[#allocation2 + $0xe0] sm:$0xff]
      %v730 = vld [vmem:[#allocation2 + $0xe8] sm:$0xff]
      %v731 = vld [vmem:[#allocation2 + $0xf0] sm:$0xff]
      %v732 = vld [vmem:[%s6] sm:$0xff]
      %v733 = vld [vmem:[%s6 + $0x8] sm:$0xff]
      %v734 = vld [vmem:[%s6 + $0x10] sm:$0xff]
      %v735 = vld [vmem:[%s6 + $0x18] sm:$0xff]
      %v736 = vld [vmem:[%s6 + $0x20] sm:$0xff]
      %v737 = vld [vmem:[%s6 + $0x28] sm:$0xff]
      %v738 = vld [vmem:[%s6 + $0x30] sm:$0xff]
      %v739 = vld [vmem:[%s6 + $0x38] sm:$0xff]
      %v740 = vld [vmem:[%s6 + $0x40] sm:$0xff]
      %v741 = vld [vmem:[%s6 + $0x48] sm:$0xff]
      %v742 = vld [vmem:[%s6 + $0x50] sm:$0xff]
      %v743 = vld [vmem:[%s6 + $0x58] sm:$0xff]
      %v744 = vld [vmem:[%s6 + $0x60] sm:$0xff]
      %v745 = vld [vmem:[%s6 + $0x68] sm:$0xff]
      %v746 = vld [vmem:[%s6 + $0x70] sm:$0xff]
      %v747 = vld [vmem:[%s6 + $0x78] sm:$0xff]
      %748 = vmatprep.subr.mxu0 0.0
      %749 = vmatpush1.msra.mxu0 %v732
      %750 = vmatprep.subr.mxu0 0.0
      %751 = vmatpush1.msra.mxu0 %v733
      %752 = vmatprep.subr.mxu0 0.0
      %753 = vmatpush1.msra.mxu0 %v734
      %754 = vmatprep.subr.mxu0 0.0
      %755 = vmatpush1.msra.mxu0 %v735
      %756 = vmatprep.subr.mxu0 0.0
      %757 = vmatpush1.msra.mxu0 %v736
      %758 = vmatprep.subr.mxu0 0.0
      %759 = vmatpush1.msra.mxu0 %v737
      %760 = vmatprep.subr.mxu0 0.0
      %761 = vmatpush1.msra.mxu0 %v738
      %762 = vmatprep.subr.mxu0 0.0
      %763 = vmatpush1.msra.mxu0 %v739
      %764 = vmatprep.subr.mxu0 0.0
      %765 = vmatpush1.msra.mxu0 %v740
      %766 = vmatprep.subr.mxu0 0.0
      %767 = vmatpush1.msra.mxu0 %v741
      %768 = vmatprep.subr.mxu0 0.0
      %769 = vmatpush1.msra.mxu0 %v742
      %770 = vmatprep.subr.mxu0 0.0
      %771 = vmatpush1.msra.mxu0 %v743
      %772 = vmatprep.subr.mxu0 0.0
      %773 = vmatpush1.msra.mxu0 %v744
      %774 = vmatprep.subr.mxu0 0.0
      %775 = vmatpush1.msra.mxu0 %v745
      %776 = vmatprep.subr.mxu0 0.0
      %777 = vmatpush1.msra.mxu0 %v746
      %778 = vmatprep.subr.mxu0 0.0
      %779 = vmatpush1.msra.mxu0 %v747
      %780 = vmatprep.subr.mxu0 0.0
      %781 = vmatpush1.msra.mxu0 0.0
      %782 = vmatprep.subr.mxu0 0.0
      %783 = vmatpush1.msra.mxu0 0.0
      %784 = vmatprep.subr.mxu0 0.0
      %785 = vmatpush1.msra.mxu0 0.0
      %786 = vmatprep.subr.mxu0 0.0
      %787 = vmatpush1.msra.mxu0 0.0
      %788 = vmatprep.subr.mxu0 0.0
      %789 = vmatpush1.msra.mxu0 0.0
      %790 = vmatprep.subr.mxu0 0.0
      %791 = vmatpush1.msra.mxu0 0.0
      %792 = vmatprep.subr.mxu0 0.0
      %793 = vmatpush1.msra.mxu0 0.0
      %794 = vmatprep.subr.mxu0 0.0
      %795 = vmatpush1.msra.mxu0 0.0
      %796 = vmatprep.subr.mxu0 0.0
      %797 = vmatpush1.msra.mxu0 0.0
      %798 = vmatprep.subr.mxu0 0.0
      %799 = vmatpush1.msra.mxu0 0.0
      %800 = vmatprep.subr.mxu0 0.0
      %801 = vmatpush1.msra.mxu0 0.0
      %802 = vmatprep.subr.mxu0 0.0
      %803 = vmatpush1.msra.mxu0 0.0
      %804 = vmatprep.subr.mxu0 0.0
      %805 = vmatpush1.msra.mxu0 0.0
      %806 = vmatprep.subr.mxu0 0.0
      %807 = vmatpush1.msra.mxu0 0.0
      %808 = vmatprep.subr.mxu0 0.0
      %809 = vmatpush1.msra.mxu0 0.0
      %810 = vmatprep.subr.mxu0 0.0
      %811 = vmatpush1.msra.mxu0 0.0
      %812 = vmatprep.mubr.f32.mxu0 0.0
      %813 = vmatmul.mubr.f32.gmra.mrb[0].mxu0 %v706
      %v814 = vpop.f32.mrb[0].mxu0
      %v815 = vadd.f32 0.0, %v814
      %v816 = vpop.f32.mrb[0].mxu0
      %817 = vmatprep.mubr.f32.mxu0 0.0
      %818 = vmatmul.mubr.f32.gmra.mrb[0].mxu0 %v707
      %v819 = vpop.f32.mrb[0].mxu0
      %v820 = vadd.f32 0.0, %v819
      %v821 = vpop.f32.mrb[0].mxu0
      %822 = vmatprep.mubr.f32.mxu0 0.0
      %823 = vmatmul.mubr.f32.gmra.mrb[0].mxu0 %v708
      %v824 = vpop.f32.mrb[0].mxu0
      %v825 = vadd.f32 0.0, %v824
      %v826 = vpop.f32.mrb[0].mxu0
      %827 = vmatprep.mubr.f32.mxu0 0.0
      %828 = vmatmul.mubr.f32.gmra.mrb[0].mxu0 %v709
      %v829 = vpop.f32.mrb[0].mxu0
      %v830 = vadd.f32 0.0, %v829
      %v831 = vpop.f32.mrb[0].mxu0
      %832 = vmatprep.mubr.f32.mxu0 0.0
      %833 = vmatmul.mubr.f32.gmra.mrb[0].mxu0 %v710
      %v834 = vpop.f32.mrb[0].mxu0
      %v835 = vadd.f32 0.0, %v834
      %v836 = vpop.f32.mrb[0].mxu0
      %837 = vmatprep.mubr.f32.mxu0 0.0
      %838 = vmatmul.mubr.f32.gmra.mrb[0].mxu0 %v711
      %v839 = vpop.f32.mrb[0].mxu0
      %v840 = vadd.f32 0.0, %v839
      %v841 = vpop.f32.mrb[0].mxu0
      %842 = vmatprep.mubr.f32.mxu0 0.0
      %843 = vmatmul.mubr.f32.gmra.mrb[0].mxu0 %v712
      %v844 = vpop.f32.mrb[0].mxu0
      %v845 = vadd.f32 0.0, %v844
      %v846 = vpop.f32.mrb[0].mxu0
      %847 = vmatprep.mubr.f32.mxu0 0.0
      %848 = vmatmul.mubr.f32.gmra.mrb[0].mxu0 %v713
      %v849 = vpop.f32.mrb[0].mxu0
      %v850 = vadd.f32 0.0, %v849
      %v851 = vpop.f32.mrb[0].mxu0
      %852 = vmatprep.mubr.f32.mxu0 0.0
      %853 = vmatmul.mubr.f32.gmra.mrb[0].mxu0 %v714
      %v854 = vpop.f32.mrb[0].mxu0
      %v855 = vadd.f32 0.0, %v854
      %v856 = vpop.f32.mrb[0].mxu0
      %857 = vmatprep.mubr.f32.mxu0 0.0
      %858 = vmatmul.mubr.f32.gmra.mrb[0].mxu0 %v715
      %v859 = vpop.f32.mrb[0].mxu0
      %v860 = vadd.f32 0.0, %v859
      %v861 = vpop.f32.mrb[0].mxu0
      %862 = vmatprep.mubr.f32.mxu0 0.0
      %863 = vmatmul.mubr.f32.gmra.mrb[0].mxu0 %v716
      %v864 = vpop.f32.mrb[0].mxu0
      %v865 = vadd.f32 0.0, %v864
      %v866 = vpop.f32.mrb[0].mxu0
      %867 = vmatprep.mubr.f32.mxu0 0.0
      %868 = vmatmul.mubr.f32.gmra.mrb[0].mxu0 %v717
      %v869 = vpop.f32.mrb[0].mxu0
      %v870 = vadd.f32 0.0, %v869
      %v871 = vpop.f32.mrb[0].mxu0
      %872 = vmatprep.mubr.f32.mxu0 0.0
      %873 = vmatmul.mubr.f32.gmra.mrb[0].mxu0 %v718
      %v874 = vpop.f32.mrb[0].mxu0
      %v875 = vadd.f32 0.0, %v874
      %v876 = vpop.f32.mrb[0].mxu0
      %877 = vmatprep.mubr.f32.mxu0 0.0
      %878 = vmatmul.mubr.f32.gmra.mrb[0].mxu0 %v719
      %v879 = vpop.f32.mrb[0].mxu0
      %v880 = vadd.f32 0.0, %v879
      %v881 = vpop.f32.mrb[0].mxu0
      %882 = vmatprep.mubr.f32.mxu0 0.0
      %883 = vmatmul.mubr.f32.gmra.mrb[0].mxu0 %v720
      %v884 = vpop.f32.mrb[0].mxu0
      %v885 = vadd.f32 0.0, %v884
      %v886 = vpop.f32.mrb[0].mxu0
      %887 = vmatprep.mubr.f32.mxu0 0.0
      %888 = vmatmul.mubr.f32.gmra.mrb[0].mxu0 %v721
      %v889 = vpop.f32.mrb[0].mxu0
      %v890 = vadd.f32 0.0, %v889
      %v891 = vpop.f32.mrb[0].mxu0
      %892 = vmatprep.mubr.f32.mxu0 0.0
      %893 = vmatmul.mubr.f32.gmra.mrb[0].mxu0 %v722
      %v894 = vpop.f32.mrb[0].mxu0
      %v895 = vadd.f32 0.0, %v894
      %v896 = vpop.f32.mrb[0].mxu0
      %897 = vmatprep.mubr.f32.mxu0 0.0
      %898 = vmatmul.mubr.f32.gmra.mrb[0].mxu0 %v723
      %v899 = vpop.f32.mrb[0].mxu0
      %v900 = vadd.f32 0.0, %v899
      %v901 = vpop.f32.mrb[0].mxu0
      %902 = vmatprep.mubr.f32.mxu0 0.0
      %903 = vmatmul.mubr.f32.gmra.mrb[0].mxu0 %v724
      %v904 = vpop.f32.mrb[0].mxu0
      %v905 = vadd.f32 0.0, %v904
      %v906 = vpop.f32.mrb[0].mxu0
      %907 = vmatprep.mubr.f32.mxu0 0.0
      %908 = vmatmul.mubr.f32.gmra.mrb[0].mxu0 %v725
      %v909 = vpop.f32.mrb[0].mxu0
      %v910 = vadd.f32 0.0, %v909
      %v911 = vpop.f32.mrb[0].mxu0
      %912 = vmatprep.mubr.f32.mxu0 0.0
      %913 = vmatmul.mubr.f32.gmra.mrb[0].mxu0 %v726
      %v914 = vpop.f32.mrb[0].mxu0
      %v915 = vadd.f32 0.0, %v914
      %v916 = vpop.f32.mrb[0].mxu0
      %917 = vmatprep.mubr.f32.mxu0 0.0
      %918 = vmatmul.mubr.f32.gmra.mrb[0].mxu0 %v727
      %v919 = vpop.f32.mrb[0].mxu0
      %v920 = vadd.f32 0.0, %v919
      %v921 = vpop.f32.mrb[0].mxu0
      %922 = vmatprep.mubr.f32.mxu0 0.0
      %923 = vmatmul.mubr.f32.gmra.mrb[0].mxu0 %v728
      %v924 = vpop.f32.mrb[0].mxu0
      %v925 = vadd.f32 0.0, %v924
      %v926 = vpop.f32.mrb[0].mxu0
      %927 = vmatprep.mubr.f32.mxu0 0.0
      %928 = vmatmul.mubr.f32.gmra.mrb[0].mxu0 %v729
      %v929 = vpop.f32.mrb[0].mxu0
      %v930 = vadd.f32 0.0, %v929
      %v931 = vpop.f32.mrb[0].mxu0
      %932 = vmatprep.mubr.f32.mxu0 0.0
      %933 = vmatmul.mubr.f32.gmra.mrb[0].mxu0 %v730
      %v934 = vpop.f32.mrb[0].mxu0
      %v935 = vadd.f32 0.0, %v934
      %v936 = vpop.f32.mrb[0].mxu0
      %937 = vmatprep.mubr.f32.mxu0 0.0
      %938 = vmatmul.mubr.f32.gmra.mrb[0].mxu0 %v731
      %v939 = vpop.f32.mrb[0].mxu0
      %v940 = vadd.f32 0.0, %v939
      %v941 = vpop.f32.mrb[0].mxu0
      %942 = vdwg.mxu0
      %943 = vst [vmem:[%s318] sm:$0xff] %v815
      %944 = vst [vmem:[%s318 + $0x8] sm:$0xff] %v820
      %945 = vst [vmem:[%s318 + $0x10] sm:$0xff] %v825
      %946 = vst [vmem:[%s318 + $0x18] sm:$0xff] %v830
      %947 = vst [vmem:[%s318 + $0x20] sm:$0xff] %v835
      %948 = vst [vmem:[%s318 + $0x28] sm:$0xff] %v840
      %949 = vst [vmem:[%s318 + $0x30] sm:$0xff] %v845
      %950 = vst [vmem:[%s318 + $0x38] sm:$0xff] %v850
      %951 = vst [vmem:[%s318 + $0x40] sm:$0xff] %v855
      %952 = vst [vmem:[%s318 + $0x48] sm:$0xff] %v860
      %953 = vst [vmem:[%s318 + $0x50] sm:$0xff] %v865
      %954 = vst [vmem:[%s318 + $0x58] sm:$0xff] %v870
      %955 = vst [vmem:[%s318 + $0x60] sm:$0xff] %v875
      %956 = vst [vmem:[%s318 + $0x68] sm:$0xff] %v880
      %957 = vst [vmem:[%s318 + $0x70] sm:$0xff] %v885
      %958 = vst [vmem:[%s318 + $0x78] sm:$0xff] %v890
      %959 = vst [vmem:[%s318 + $0x80] sm:$0xff] %v895
      %960 = vst [vmem:[%s318 + $0x88] sm:$0xff] %v900
      %961 = vst [vmem:[%s318 + $0x90] sm:$0xff] %v905
      %962 = vst [vmem:[%s318 + $0x98] sm:$0xff] %v910
      %963 = vst [vmem:[%s318 + $0xa0] sm:$0xff] %v915
      %964 = vst [vmem:[%s318 + $0xa8] sm:$0xff] %v920
      %965 = vst [vmem:[%s318 + $0xb0] sm:$0xff] %v925
      %966 = vst [vmem:[%s318 + $0xb8] sm:$0xff] %v930
      %967 = vst [vmem:[%s318 + $0xc0] sm:$0xff] %v935
      %968 = vst [vmem:[%s318 + $0xc8] sm:$0xff] %v940
      %v969 = vld [vmem:[#allocation2 + $0x27] sm:$0xff]
      %v970 = vld [vmem:[#allocation2 + $0x2f] sm:$0xff]
      %v971 = vld [vmem:[#allocation2 + $0x37] sm:$0xff]
      %v972 = vld [vmem:[#allocation2 + $0x3f] sm:$0xff]
      %v973 = vld [vmem:[#allocation2 + $0x47] sm:$0xff]
      %v974 = vld [vmem:[#allocation2 + $0x4f] sm:$0xff]
      %v975 = vld [vmem:[#allocation2 + $0x57] sm:$0xff]
      %v976 = vld [vmem:[#allocation2 + $0x5f] sm:$0xff]
      %v977 = vld [vmem:[#allocation2 + $0x67] sm:$0xff]
      %v978 = vld [vmem:[#allocation2 + $0x6f] sm:$0xff]
      %v979 = vld [vmem:[#allocation2 + $0x77] sm:$0xff]
      %v980 = vld [vmem:[#allocation2 + $0x7f] sm:$0xff]
      %v981 = vld [vmem:[#allocation2 + $0x87] sm:$0xff]
      %v982 = vld [vmem:[#allocation2 + $0x8f] sm:$0xff]
      %v983 = vld [vmem:[#allocation2 + $0x97] sm:$0xff]
      %v984 = vld [vmem:[#allocation2 + $0x9f] sm:$0xff]
      %v985 = vld [vmem:[#allocation2 + $0xa7] sm:$0xff]
      %v986 = vld [vmem:[#allocation2 + $0xaf] sm:$0xff]
      %v987 = vld [vmem:[#allocation2 + $0xb7] sm:$0xff]
      %v988 = vld [vmem:[#allocation2 + $0xbf] sm:$0xff]
      %v989 = vld [vmem:[#allocation2 + $0xc7] sm:$0xff]
      %v990 = vld [vmem:[#allocation2 + $0xcf] sm:$0xff]
      %v991 = vld [vmem:[#allocation2 + $0xd7] sm:$0xff]
      %v992 = vld [vmem:[#allocation2 + $0xdf] sm:$0xff]
      %v993 = vld [vmem:[#allocation2 + $0xe7] sm:$0xff]
      %v994 = vld [vmem:[#allocation2 + $0xef] sm:$0xff]
      %s995 = scalar_lea.vmem %s6, 128
      %v996 = vld [vmem:[%s995] sm:$0xff]
      %v997 = vld [vmem:[%s995 + $0x8] sm:$0xff]
      %v998 = vld [vmem:[%s995 + $0x10] sm:$0xff]
      %v999 = vld [vmem:[%s995 + $0x18] sm:$0xff]
      %v1000 = vld [vmem:[%s995 + $0x20] sm:$0xff]
      %v1001 = vld [vmem:[%s995 + $0x28] sm:$0xff]
      %v1002 = vld [vmem:[%s995 + $0x30] sm:$0xff]
      %v1003 = vld [vmem:[%s995 + $0x38] sm:$0xff]
      %v1004 = vld [vmem:[%s995 + $0x40] sm:$0xff]
      %v1005 = vld [vmem:[%s995 + $0x48] sm:$0xff]
      %v1006 = vld [vmem:[%s995 + $0x50] sm:$0xff]
      %v1007 = vld [vmem:[%s995 + $0x58] sm:$0xff]
      %v1008 = vld [vmem:[%s995 + $0x60] sm:$0xff]
      %v1009 = vld [vmem:[%s995 + $0x68] sm:$0xff]
      %v1010 = vld [vmem:[%s995 + $0x70] sm:$0xff]
      %v1011 = vld [vmem:[%s995 + $0x78] sm:$0xff]
      %1012 = vmatprep.subr.mxu0 0.0
      %1013 = vmatpush1.msra.mxu0 %v996
      %1014 = vmatprep.subr.mxu0 0.0
      %1015 = vmatpush1.msra.mxu0 %v997
      %1016 = vmatprep.subr.mxu0 0.0
      %1017 = vmatpush1.msra.mxu0 %v998
      %1018 = vmatprep.subr.mxu0 0.0
      %1019 = vmatpush1.msra.mxu0 %v999
      %1020 = vmatprep.subr.mxu0 0.0
      %1021 = vmatpush1.msra.mxu0 %v1000
      %1022 = vmatprep.subr.mxu0 0.0
      %1023 = vmatpush1.msra.mxu0 %v1001
      %1024 = vmatprep.subr.mxu0 0.0
      %1025 = vmatpush1.msra.mxu0 %v1002
      %1026 = vmatprep.subr.mxu0 0.0
      %1027 = vmatpush1.msra.mxu0 %v1003
      %1028 = vmatprep.subr.mxu0 0.0
      %1029 = vmatpush1.msra.mxu0 %v1004
      %1030 = vmatprep.subr.mxu0 0.0
      %1031 = vmatpush1.msra.mxu0 %v1005
      %1032 = vmatprep.subr.mxu0 0.0
      %1033 = vmatpush1.msra.mxu0 %v1006
      %1034 = vmatprep.subr.mxu0 0.0
      %1035 = vmatpush1.msra.mxu0 %v1007
      %1036 = vmatprep.subr.mxu0 0.0
      %1037 = vmatpush1.msra.mxu0 %v1008
      %1038 = vmatprep.subr.mxu0 0.0
      %1039 = vmatpush1.msra.mxu0 %v1009
      %1040 = vmatprep.subr.mxu0 0.0
      %1041 = vmatpush1.msra.mxu0 %v1010
      %1042 = vmatprep.subr.mxu0 0.0
      %1043 = vmatpush1.msra.mxu0 %v1011
      %1044 = vmatprep.subr.mxu0 0.0
      %1045 = vmatpush1.msra.mxu0 0.0
      %1046 = vmatprep.subr.mxu0 0.0
      %1047 = vmatpush1.msra.mxu0 0.0
      %1048 = vmatprep.subr.mxu0 0.0
      %1049 = vmatpush1.msra.mxu0 0.0
      %1050 = vmatprep.subr.mxu0 0.0
      %1051 = vmatpush1.msra.mxu0 0.0
      %1052 = vmatprep.subr.mxu0 0.0
      %1053 = vmatpush1.msra.mxu0 0.0
      %1054 = vmatprep.subr.mxu0 0.0
      %1055 = vmatpush1.msra.mxu0 0.0
      %1056 = vmatprep.subr.mxu0 0.0
      %1057 = vmatpush1.msra.mxu0 0.0
      %1058 = vmatprep.subr.mxu0 0.0
      %1059 = vmatpush1.msra.mxu0 0.0
      %1060 = vmatprep.subr.mxu0 0.0
      %1061 = vmatpush1.msra.mxu0 0.0
      %1062 = vmatprep.subr.mxu0 0.0
      %1063 = vmatpush1.msra.mxu0 0.0
      %1064 = vmatprep.subr.mxu0 0.0
      %1065 = vmatpush1.msra.mxu0 0.0
      %1066 = vmatprep.subr.mxu0 0.0
      %1067 = vmatpush1.msra.mxu0 0.0
      %1068 = vmatprep.subr.mxu0 0.0
      %1069 = vmatpush1.msra.mxu0 0.0
      %1070 = vmatprep.subr.mxu0 0.0
      %1071 = vmatpush1.msra.mxu0 0.0
      %1072 = vmatprep.subr.mxu0 0.0
      %1073 = vmatpush1.msra.mxu0 0.0
      %1074 = vmatprep.subr.mxu0 0.0
      %1075 = vmatpush1.msra.mxu0 0.0
      %1076 = vmatprep.mubr.f32.mxu0 0.0
      %1077 = vmatmul.mubr.f32.gmra.mrb[0].mxu0 %v969
      %v1078 = vpop.f32.mrb[0].mxu0
      %v1079 = vadd.f32 0.0, %v1078
      %v1080 = vpop.f32.mrb[0].mxu0
      %1081 = vmatprep.mubr.f32.mxu0 0.0
      %1082 = vmatmul.mubr.f32.gmra.mrb[0].mxu0 %v970
      %v1083 = vpop.f32.mrb[0].mxu0
      %v1084 = vadd.f32 0.0, %v1083
      %v1085 = vpop.f32.mrb[0].mxu0
      %1086 = vmatprep.mubr.f32.mxu0 0.0
      %1087 = vmatmul.mubr.f32.gmra.mrb[0].mxu0 %v971
      %v1088 = vpop.f32.mrb[0].mxu0
      %v1089 = vadd.f32 0.0, %v1088
      %v1090 = vpop.f32.mrb[0].mxu0
      %1091 = vmatprep.mubr.f32.mxu0 0.0
      %1092 = vmatmul.mubr.f32.gmra.mrb[0].mxu0 %v972
      %v1093 = vpop.f32.mrb[0].mxu0
      %v1094 = vadd.f32 0.0, %v1093
      %v1095 = vpop.f32.mrb[0].mxu0
      %1096 = vmatprep.mubr.f32.mxu0 0.0
      %1097 = vmatmul.mubr.f32.gmra.mrb[0].mxu0 %v973
      %v1098 = vpop.f32.mrb[0].mxu0
      %v1099 = vadd.f32 0.0, %v1098
      %v1100 = vpop.f32.mrb[0].mxu0
      %1101 = vmatprep.mubr.f32.mxu0 0.0
      %1102 = vmatmul.mubr.f32.gmra.mrb[0].mxu0 %v974
      %v1103 = vpop.f32.mrb[0].mxu0
      %v1104 = vadd.f32 0.0, %v1103
      %v1105 = vpop.f32.mrb[0].mxu0
      %1106 = vmatprep.mubr.f32.mxu0 0.0
      %1107 = vmatmul.mubr.f32.gmra.mrb[0].mxu0 %v975
      %v1108 = vpop.f32.mrb[0].mxu0
      %v1109 = vadd.f32 0.0, %v1108
      %v1110 = vpop.f32.mrb[0].mxu0
      %1111 = vmatprep.mubr.f32.mxu0 0.0
      %1112 = vmatmul.mubr.f32.gmra.mrb[0].mxu0 %v976
      %v1113 = vpop.f32.mrb[0].mxu0
      %v1114 = vadd.f32 0.0, %v1113
      %v1115 = vpop.f32.mrb[0].mxu0
      %1116 = vmatprep.mubr.f32.mxu0 0.0
      %1117 = vmatmul.mubr.f32.gmra.mrb[0].mxu0 %v977
      %v1118 = vpop.f32.mrb[0].mxu0
      %v1119 = vadd.f32 0.0, %v1118
      %v1120 = vpop.f32.mrb[0].mxu0
      %1121 = vmatprep.mubr.f32.mxu0 0.0
      %1122 = vmatmul.mubr.f32.gmra.mrb[0].mxu0 %v978
      %v1123 = vpop.f32.mrb[0].mxu0
      %v1124 = vadd.f32 0.0, %v1123
      %v1125 = vpop.f32.mrb[0].mxu0
      %1126 = vmatprep.mubr.f32.mxu0 0.0
      %1127 = vmatmul.mubr.f32.gmra.mrb[0].mxu0 %v979
      %v1128 = vpop.f32.mrb[0].mxu0
      %v1129 = vadd.f32 0.0, %v1128
      %v1130 = vpop.f32.mrb[0].mxu0
      %1131 = vmatprep.mubr.f32.mxu0 0.0
      %1132 = vmatmul.mubr.f32.gmra.mrb[0].mxu0 %v980
      %v1133 = vpop.f32.mrb[0].mxu0
      %v1134 = vadd.f32 0.0, %v1133
      %v1135 = vpop.f32.mrb[0].mxu0
      %1136 = vmatprep.mubr.f32.mxu0 0.0
      %1137 = vmatmul.mubr.f32.gmra.mrb[0].mxu0 %v981
      %v1138 = vpop.f32.mrb[0].mxu0
      %v1139 = vadd.f32 0.0, %v1138
      %v1140 = vpop.f32.mrb[0].mxu0
      %1141 = vmatprep.mubr.f32.mxu0 0.0
      %1142 = vmatmul.mubr.f32.gmra.mrb[0].mxu0 %v982
      %v1143 = vpop.f32.mrb[0].mxu0
      %v1144 = vadd.f32 0.0, %v1143
      %v1145 = vpop.f32.mrb[0].mxu0
      %1146 = vmatprep.mubr.f32.mxu0 0.0
      %1147 = vmatmul.mubr.f32.gmra.mrb[0].mxu0 %v983
      %v1148 = vpop.f32.mrb[0].mxu0
      %v1149 = vadd.f32 0.0, %v1148
      %v1150 = vpop.f32.mrb[0].mxu0
      %1151 = vmatprep.mubr.f32.mxu0 0.0
      %1152 = vmatmul.mubr.f32.gmra.mrb[0].mxu0 %v984
      %v1153 = vpop.f32.mrb[0].mxu0
      %v1154 = vadd.f32 0.0, %v1153
      %v1155 = vpop.f32.mrb[0].mxu0
      %1156 = vmatprep.mubr.f32.mxu0 0.0
      %1157 = vmatmul.mubr.f32.gmra.mrb[0].mxu0 %v985
      %v1158 = vpop.f32.mrb[0].mxu0
      %v1159 = vadd.f32 0.0, %v1158
      %v1160 = vpop.f32.mrb[0].mxu0
      %1161 = vmatprep.mubr.f32.mxu0 0.0
      %1162 = vmatmul.mubr.f32.gmra.mrb[0].mxu0 %v986
      %v1163 = vpop.f32.mrb[0].mxu0
      %v1164 = vadd.f32 0.0, %v1163
      %v1165 = vpop.f32.mrb[0].mxu0
      %1166 = vmatprep.mubr.f32.mxu0 0.0
      %1167 = vmatmul.mubr.f32.gmra.mrb[0].mxu0 %v987
      %v1168 = vpop.f32.mrb[0].mxu0
      %v1169 = vadd.f32 0.0, %v1168
      %v1170 = vpop.f32.mrb[0].mxu0
      %1171 = vmatprep.mubr.f32.mxu0 0.0
      %1172 = vmatmul.mubr.f32.gmra.mrb[0].mxu0 %v988
      %v1173 = vpop.f32.mrb[0].mxu0
      %v1174 = vadd.f32 0.0, %v1173
      %v1175 = vpop.f32.mrb[0].mxu0
      %1176 = vmatprep.mubr.f32.mxu0 0.0
      %1177 = vmatmul.mubr.f32.gmra.mrb[0].mxu0 %v989
      %v1178 = vpop.f32.mrb[0].mxu0
      %v1179 = vadd.f32 0.0, %v1178
      %v1180 = vpop.f32.mrb[0].mxu0
      %1181 = vmatprep.mubr.f32.mxu0 0.0
      %1182 = vmatmul.mubr.f32.gmra.mrb[0].mxu0 %v990
      %v1183 = vpop.f32.mrb[0].mxu0
      %v1184 = vadd.f32 0.0, %v1183
      %v1185 = vpop.f32.mrb[0].mxu0
      %1186 = vmatprep.mubr.f32.mxu0 0.0
      %1187 = vmatmul.mubr.f32.gmra.mrb[0].mxu0 %v991
      %v1188 = vpop.f32.mrb[0].mxu0
      %v1189 = vadd.f32 0.0, %v1188
      %v1190 = vpop.f32.mrb[0].mxu0
      %1191 = vmatprep.mubr.f32.mxu0 0.0
      %1192 = vmatmul.mubr.f32.gmra.mrb[0].mxu0 %v992
      %v1193 = vpop.f32.mrb[0].mxu0
      %v1194 = vadd.f32 0.0, %v1193
      %v1195 = vpop.f32.mrb[0].mxu0
      %1196 = vmatprep.mubr.f32.mxu0 0.0
      %1197 = vmatmul.mubr.f32.gmra.mrb[0].mxu0 %v993
      %v1198 = vpop.f32.mrb[0].mxu0
      %v1199 = vadd.f32 0.0, %v1198
      %v1200 = vpop.f32.mrb[0].mxu0
      %1201 = vmatprep.mubr.f32.mxu0 0.0
      %1202 = vmatmul.mubr.f32.gmra.mrb[0].mxu0 %v994
      %v1203 = vpop.f32.mrb[0].mxu0
      %v1204 = vadd.f32 0.0, %v1203
      %v1205 = vpop.f32.mrb[0].mxu0
      %1206 = vdwg.mxu0
      %v1207 = vld [vmem:[%s318] sm:$0xff]
      %v1208 = vld [vmem:[%s318 + $0x8] sm:$0xff]
      %v1209 = vld [vmem:[%s318 + $0x10] sm:$0xff]
      %v1210 = vld [vmem:[%s318 + $0x18] sm:$0xff]
      %v1211 = vld [vmem:[%s318 + $0x20] sm:$0xff]
      %v1212 = vld [vmem:[%s318 + $0x28] sm:$0xff]
      %v1213 = vld [vmem:[%s318 + $0x30] sm:$0xff]
      %v1214 = vld [vmem:[%s318 + $0x38] sm:$0xff]
      %v1215 = vld [vmem:[%s318 + $0x40] sm:$0xff]
      %v1216 = vld [vmem:[%s318 + $0x48] sm:$0xff]
      %v1217 = vld [vmem:[%s318 + $0x50] sm:$0xff]
      %v1218 = vld [vmem:[%s318 + $0x58] sm:$0xff]
      %v1219 = vld [vmem:[%s318 + $0x60] sm:$0xff]
      %v1220 = vld [vmem:[%s318 + $0x68] sm:$0xff]
      %v1221 = vld [vmem:[%s318 + $0x70] sm:$0xff]
      %v1222 = vld [vmem:[%s318 + $0x78] sm:$0xff]
      %v1223 = vld [vmem:[%s318 + $0x80] sm:$0xff]
      %v1224 = vld [vmem:[%s318 + $0x88] sm:$0xff]
      %v1225 = vld [vmem:[%s318 + $0x90] sm:$0xff]
      %v1226 = vld [vmem:[%s318 + $0x98] sm:$0xff]
      %v1227 = vld [vmem:[%s318 + $0xa0] sm:$0xff]
      %v1228 = vld [vmem:[%s318 + $0xa8] sm:$0xff]
      %v1229 = vld [vmem:[%s318 + $0xb0] sm:$0xff]
      %v1230 = vld [vmem:[%s318 + $0xb8] sm:$0xff]
      %v1231 = vld [vmem:[%s318 + $0xc0] sm:$0xff]
      %v1232 = vld [vmem:[%s318 + $0xc8] sm:$0xff]
      %v1233 = vadd.f32 %v1207, %v1079
      %v1234 = vadd.f32 %v1208, %v1084
      %v1235 = vadd.f32 %v1209, %v1089
      %v1236 = vadd.f32 %v1210, %v1094
      %v1237 = vadd.f32 %v1211, %v1099
      %v1238 = vadd.f32 %v1212, %v1104
      %v1239 = vadd.f32 %v1213, %v1109
      %v1240 = vadd.f32 %v1214, %v1114
      %v1241 = vadd.f32 %v1215, %v1119
      %v1242 = vadd.f32 %v1216, %v1124
      %v1243 = vadd.f32 %v1217, %v1129
      %v1244 = vadd.f32 %v1218, %v1134
      %v1245 = vadd.f32 %v1219, %v1139
      %v1246 = vadd.f32 %v1220, %v1144
      %v1247 = vadd.f32 %v1221, %v1149
      %v1248 = vadd.f32 %v1222, %v1154
      %v1249 = vadd.f32 %v1223, %v1159
      %v1250 = vadd.f32 %v1224, %v1164
      %v1251 = vadd.f32 %v1225, %v1169
      %v1252 = vadd.f32 %v1226, %v1174
      %v1253 = vadd.f32 %v1227, %v1179
      %v1254 = vadd.f32 %v1228, %v1184
      %v1255 = vadd.f32 %v1229, %v1189
      %v1256 = vadd.f32 %v1230, %v1194
      %v1257 = vadd.f32 %v1231, %v1199
      %v1258 = vadd.f32 %v1232, %v1204
      %1259 = vst [vmem:[%s318] sm:$0xff] %v1233
      %1260 = vst [vmem:[%s318 + $0x8] sm:$0xff] %v1234
      %1261 = vst [vmem:[%s318 + $0x10] sm:$0xff] %v1235
      %1262 = vst [vmem:[%s318 + $0x18] sm:$0xff] %v1236
      %1263 = vst [vmem:[%s318 + $0x20] sm:$0xff] %v1237
      %1264 = vst [vmem:[%s318 + $0x28] sm:$0xff] %v1238
      %1265 = vst [vmem:[%s318 + $0x30] sm:$0xff] %v1239
      %1266 = vst [vmem:[%s318 + $0x38] sm:$0xff] %v1240
      %1267 = vst [vmem:[%s318 + $0x40] sm:$0xff] %v1241
      %1268 = vst [vmem:[%s318 + $0x48] sm:$0xff] %v1242
      %1269 = vst [vmem:[%s318 + $0x50] sm:$0xff] %v1243
      %1270 = vst [vmem:[%s318 + $0x58] sm:$0xff] %v1244
      %1271 = vst [vmem:[%s318 + $0x60] sm:$0xff] %v1245
      %1272 = vst [vmem:[%s318 + $0x68] sm:$0xff] %v1246
      %1273 = vst [vmem:[%s318 + $0x70] sm:$0xff] %v1247
      %1274 = vst [vmem:[%s318 + $0x78] sm:$0xff] %v1248
      %1275 = vst [vmem:[%s318 + $0x80] sm:$0xff] %v1249
      %1276 = vst [vmem:[%s318 + $0x88] sm:$0xff] %v1250
      %1277 = vst [vmem:[%s318 + $0x90] sm:$0xff] %v1251
      %1278 = vst [vmem:[%s318 + $0x98] sm:$0xff] %v1252
      %1279 = vst [vmem:[%s318 + $0xa0] sm:$0xff] %v1253
      %1280 = vst [vmem:[%s318 + $0xa8] sm:$0xff] %v1254
      %1281 = vst [vmem:[%s318 + $0xb0] sm:$0xff] %v1255
      %1282 = vst [vmem:[%s318 + $0xb8] sm:$0xff] %v1256
      %1283 = vst [vmem:[%s318 + $0xc0] sm:$0xff] %v1257
      %1284 = vst [vmem:[%s318 + $0xc8] sm:$0xff] %v1258
      %v1285 = vld [vmem:[#allocation2 + $0x18] sm:$0xff]
      %v1286 = vld [vmem:[#allocation2 + $0x20] sm:$0xff]
      %v1287 = vld [vmem:[#allocation2 + $0x28] sm:$0xff]
      %v1288 = vld [vmem:[#allocation2 + $0x30] sm:$0xff]
      %v1289 = vld [vmem:[#allocation2 + $0x38] sm:$0xff]
      %v1290 = vld [vmem:[#allocation2 + $0x40] sm:$0xff]
      %v1291 = vld [vmem:[#allocation2 + $0x48] sm:$0xff]
      %v1292 = vld [vmem:[#allocation2 + $0x50] sm:$0xff]
      %v1293 = vld [vmem:[#allocation2 + $0x58] sm:$0xff]
      %v1294 = vld [vmem:[#allocation2 + $0x60] sm:$0xff]
      %v1295 = vld [vmem:[#allocation2 + $0x68] sm:$0xff]
      %v1296 = vld [vmem:[#allocation2 + $0x70] sm:$0xff]
      %v1297 = vld [vmem:[#allocation2 + $0x78] sm:$0xff]
      %v1298 = vld [vmem:[#allocation2 + $0x80] sm:$0xff]
      %v1299 = vld [vmem:[#allocation2 + $0x88] sm:$0xff]
      %v1300 = vld [vmem:[#allocation2 + $0x90] sm:$0xff]
      %v1301 = vld [vmem:[#allocation2 + $0x98] sm:$0xff]
      %v1302 = vld [vmem:[#allocation2 + $0xa0] sm:$0xff]
      %v1303 = vld [vmem:[#allocation2 + $0xa8] sm:$0xff]
      %v1304 = vld [vmem:[#allocation2 + $0xb0] sm:$0xff]
      %v1305 = vld [vmem:[#allocation2 + $0xb8] sm:$0xff]
      %v1306 = vld [vmem:[#allocation2 + $0xc0] sm:$0xff]
      %v1307 = vld [vmem:[#allocation2 + $0xc8] sm:$0xff]
      %v1308 = vld [vmem:[#allocation2 + $0xd0] sm:$0xff]
      %v1309 = vld [vmem:[#allocation2 + $0xd8] sm:$0xff]
      %v1310 = vld [vmem:[#allocation2 + $0xe0] sm:$0xff]
      %s1311 = scalar_lea.vmem %s6, 256
      %v1312 = vld [vmem:[%s1311] sm:$0xff]
      %v1313 = vld [vmem:[%s1311 + $0x8] sm:$0xff]
      %v1314 = vld [vmem:[%s1311 + $0x10] sm:$0xff]
      %v1315 = vld [vmem:[%s1311 + $0x18] sm:$0xff]
      %v1316 = vld [vmem:[%s1311 + $0x20] sm:$0xff]
      %v1317 = vld [vmem:[%s1311 + $0x28] sm:$0xff]
      %v1318 = vld [vmem:[%s1311 + $0x30] sm:$0xff]
      %v1319 = vld [vmem:[%s1311 + $0x38] sm:$0xff]
      %v1320 = vld [vmem:[%s1311 + $0x40] sm:$0xff]
      %v1321 = vld [vmem:[%s1311 + $0x48] sm:$0xff]
      %v1322 = vld [vmem:[%s1311 + $0x50] sm:$0xff]
      %v1323 = vld [vmem:[%s1311 + $0x58] sm:$0xff]
      %v1324 = vld [vmem:[%s1311 + $0x60] sm:$0xff]
      %v1325 = vld [vmem:[%s1311 + $0x68] sm:$0xff]
      %v1326 = vld [vmem:[%s1311 + $0x70] sm:$0xff]
      %v1327 = vld [vmem:[%s1311 + $0x78] sm:$0xff]
      %1328 = vmatprep.subr.mxu0 0.0
      %1329 = vmatpush1.msra.mxu0 %v1312
      %1330 = vmatprep.subr.mxu0 0.0
      %1331 = vmatpush1.msra.mxu0 %v1313
      %1332 = vmatprep.subr.mxu0 0.0
      %1333 = vmatpush1.msra.mxu0 %v1314
      %1334 = vmatprep.subr.mxu0 0.0
      %1335 = vmatpush1.msra.mxu0 %v1315
      %1336 = vmatprep.subr.mxu0 0.0
      %1337 = vmatpush1.msra.mxu0 %v1316
      %1338 = vmatprep.subr.mxu0 0.0
      %1339 = vmatpush1.msra.mxu0 %v1317
      %1340 = vmatprep.subr.mxu0 0.0
      %1341 = vmatpush1.msra.mxu0 %v1318
      %1342 = vmatprep.subr.mxu0 0.0
      %1343 = vmatpush1.msra.mxu0 %v1319
      %1344 = vmatprep.subr.mxu0 0.0
      %1345 = vmatpush1.msra.mxu0 %v1320
      %1346 = vmatprep.subr.mxu0 0.0
      %1347 = vmatpush1.msra.mxu0 %v1321
      %1348 = vmatprep.subr.mxu0 0.0
      %1349 = vmatpush1.msra.mxu0 %v1322
      %1350 = vmatprep.subr.mxu0 0.0
      %1351 = vmatpush1.msra.mxu0 %v1323
      %1352 = vmatprep.subr.mxu0 0.0
      %1353 = vmatpush1.msra.mxu0 %v1324
      %1354 = vmatprep.subr.mxu0 0.0
      %1355 = vmatpush1.msra.mxu0 %v1325
      %1356 = vmatprep.subr.mxu0 0.0
      %1357 = vmatpush1.msra.mxu0 %v1326
      %1358 = vmatprep.subr.mxu0 0.0
      %1359 = vmatpush1.msra.mxu0 %v1327
      %1360 = vmatprep.subr.mxu0 0.0
      %1361 = vmatpush1.msra.mxu0 0.0
      %1362 = vmatprep.subr.mxu0 0.0
      %1363 = vmatpush1.msra.mxu0 0.0
      %1364 = vmatprep.subr.mxu0 0.0
      %1365 = vmatpush1.msra.mxu0 0.0
      %1366 = vmatprep.subr.mxu0 0.0
      %1367 = vmatpush1.msra.mxu0 0.0
      %1368 = vmatprep.subr.mxu0 0.0
      %1369 = vmatpush1.msra.mxu0 0.0
      %1370 = vmatprep.subr.mxu0 0.0
      %1371 = vmatpush1.msra.mxu0 0.0
      %1372 = vmatprep.subr.mxu0 0.0
      %1373 = vmatpush1.msra.mxu0 0.0
      %1374 = vmatprep.subr.mxu0 0.0
      %1375 = vmatpush1.msra.mxu0 0.0
      %1376 = vmatprep.subr.mxu0 0.0
      %1377 = vmatpush1.msra.mxu0 0.0
      %1378 = vmatprep.subr.mxu0 0.0
      %1379 = vmatpush1.msra.mxu0 0.0
      %1380 = vmatprep.subr.mxu0 0.0
      %1381 = vmatpush1.msra.mxu0 0.0
      %1382 = vmatprep.subr.mxu0 0.0
      %1383 = vmatpush1.msra.mxu0 0.0
      %1384 = vmatprep.subr.mxu0 0.0
      %1385 = vmatpush1.msra.mxu0 0.0
      %1386 = vmatprep.subr.mxu0 0.0
      %1387 = vmatpush1.msra.mxu0 0.0
      %1388 = vmatprep.subr.mxu0 0.0
      %1389 = vmatpush1.msra.mxu0 0.0
      %1390 = vmatprep.subr.mxu0 0.0
      %1391 = vmatpush1.msra.mxu0 0.0
      %1392 = vmatprep.mubr.f32.mxu0 0.0
      %1393 = vmatmul.mubr.f32.gmra.mrb[0].mxu0 %v1285
      %v1394 = vpop.f32.mrb[0].mxu0
      %v1395 = vadd.f32 0.0, %v1394
      %v1396 = vpop.f32.mrb[0].mxu0
      %1397 = vmatprep.mubr.f32.mxu0 0.0
      %1398 = vmatmul.mubr.f32.gmra.mrb[0].mxu0 %v1286
      %v1399 = vpop.f32.mrb[0].mxu0
      %v1400 = vadd.f32 0.0, %v1399
      %v1401 = vpop.f32.mrb[0].mxu0
      %1402 = vmatprep.mubr.f32.mxu0 0.0
      %1403 = vmatmul.mubr.f32.gmra.mrb[0].mxu0 %v1287
      %v1404 = vpop.f32.mrb[0].mxu0
      %v1405 = vadd.f32 0.0, %v1404
      %v1406 = vpop.f32.mrb[0].mxu0
      %1407 = vmatprep.mubr.f32.mxu0 0.0
      %1408 = vmatmul.mubr.f32.gmra.mrb[0].mxu0 %v1288
      %v1409 = vpop.f32.mrb[0].mxu0
      %v1410 = vadd.f32 0.0, %v1409
      %v1411 = vpop.f32.mrb[0].mxu0
      %1412 = vmatprep.mubr.f32.mxu0 0.0
      %1413 = vmatmul.mubr.f32.gmra.mrb[0].mxu0 %v1289
      %v1414 = vpop.f32.mrb[0].mxu0
      %v1415 = vadd.f32 0.0, %v1414
      %v1416 = vpop.f32.mrb[0].mxu0
      %1417 = vmatprep.mubr.f32.mxu0 0.0
      %1418 = vmatmul.mubr.f32.gmra.mrb[0].mxu0 %v1290
      %v1419 = vpop.f32.mrb[0].mxu0
      %v1420 = vadd.f32 0.0, %v1419
      %v1421 = vpop.f32.mrb[0].mxu0
      %1422 = vmatprep.mubr.f32.mxu0 0.0
      %1423 = vmatmul.mubr.f32.gmra.mrb[0].mxu0 %v1291
      %v1424 = vpop.f32.mrb[0].mxu0
      %v1425 = vadd.f32 0.0, %v1424
      %v1426 = vpop.f32.mrb[0].mxu0
      %1427 = vmatprep.mubr.f32.mxu0 0.0
      %1428 = vmatmul.mubr.f32.gmra.mrb[0].mxu0 %v1292
      %v1429 = vpop.f32.mrb[0].mxu0
      %v1430 = vadd.f32 0.0, %v1429
      %v1431 = vpop.f32.mrb[0].mxu0
      %1432 = vmatprep.mubr.f32.mxu0 0.0
      %1433 = vmatmul.mubr.f32.gmra.mrb[0].mxu0 %v1293
      %v1434 = vpop.f32.mrb[0].mxu0
      %v1435 = vadd.f32 0.0, %v1434
      %v1436 = vpop.f32.mrb[0].mxu0
      %1437 = vmatprep.mubr.f32.mxu0 0.0
      %1438 = vmatmul.mubr.f32.gmra.mrb[0].mxu0 %v1294
      %v1439 = vpop.f32.mrb[0].mxu0
      %v1440 = vadd.f32 0.0, %v1439
      %v1441 = vpop.f32.mrb[0].mxu0
      %1442 = vmatprep.mubr.f32.mxu0 0.0
      %1443 = vmatmul.mubr.f32.gmra.mrb[0].mxu0 %v1295
      %v1444 = vpop.f32.mrb[0].mxu0
      %v1445 = vadd.f32 0.0, %v1444
      %v1446 = vpop.f32.mrb[0].mxu0
      %1447 = vmatprep.mubr.f32.mxu0 0.0
      %1448 = vmatmul.mubr.f32.gmra.mrb[0].mxu0 %v1296
      %v1449 = vpop.f32.mrb[0].mxu0
      %v1450 = vadd.f32 0.0, %v1449
      %v1451 = vpop.f32.mrb[0].mxu0
      %1452 = vmatprep.mubr.f32.mxu0 0.0
      %1453 = vmatmul.mubr.f32.gmra.mrb[0].mxu0 %v1297
      %v1454 = vpop.f32.mrb[0].mxu0
      %v1455 = vadd.f32 0.0, %v1454
      %v1456 = vpop.f32.mrb[0].mxu0
      %1457 = vmatprep.mubr.f32.mxu0 0.0
      %1458 = vmatmul.mubr.f32.gmra.mrb[0].mxu0 %v1298
      %v1459 = vpop.f32.mrb[0].mxu0
      %v1460 = vadd.f32 0.0, %v1459
      %v1461 = vpop.f32.mrb[0].mxu0
      %1462 = vmatprep.mubr.f32.mxu0 0.0
      %1463 = vmatmul.mubr.f32.gmra.mrb[0].mxu0 %v1299
      %v1464 = vpop.f32.mrb[0].mxu0
      %v1465 = vadd.f32 0.0, %v1464
      %v1466 = vpop.f32.mrb[0].mxu0
      %1467 = vmatprep.mubr.f32.mxu0 0.0
      %1468 = vmatmul.mubr.f32.gmra.mrb[0].mxu0 %v1300
      %v1469 = vpop.f32.mrb[0].mxu0
      %v1470 = vadd.f32 0.0, %v1469
      %v1471 = vpop.f32.mrb[0].mxu0
      %1472 = vmatprep.mubr.f32.mxu0 0.0
      %1473 = vmatmul.mubr.f32.gmra.mrb[0].mxu0 %v1301
      %v1474 = vpop.f32.mrb[0].mxu0
      %v1475 = vadd.f32 0.0, %v1474
      %v1476 = vpop.f32.mrb[0].mxu0
      %1477 = vmatprep.mubr.f32.mxu0 0.0
      %1478 = vmatmul.mubr.f32.gmra.mrb[0].mxu0 %v1302
      %v1479 = vpop.f32.mrb[0].mxu0
      %v1480 = vadd.f32 0.0, %v1479
      %v1481 = vpop.f32.mrb[0].mxu0
      %1482 = vmatprep.mubr.f32.mxu0 0.0
      %1483 = vmatmul.mubr.f32.gmra.mrb[0].mxu0 %v1303
      %v1484 = vpop.f32.mrb[0].mxu0
      %v1485 = vadd.f32 0.0, %v1484
      %v1486 = vpop.f32.mrb[0].mxu0
      %1487 = vmatprep.mubr.f32.mxu0 0.0
      %1488 = vmatmul.mubr.f32.gmra.mrb[0].mxu0 %v1304
      %v1489 = vpop.f32.mrb[0].mxu0
      %v1490 = vadd.f32 0.0, %v1489
      %v1491 = vpop.f32.mrb[0].mxu0
      %1492 = vmatprep.mubr.f32.mxu0 0.0
      %1493 = vmatmul.mubr.f32.gmra.mrb[0].mxu0 %v1305
      %v1494 = vpop.f32.mrb[0].mxu0
      %v1495 = vadd.f32 0.0, %v1494
      %v1496 = vpop.f32.mrb[0].mxu0
      %1497 = vmatprep.mubr.f32.mxu0 0.0
      %1498 = vmatmul.mubr.f32.gmra.mrb[0].mxu0 %v1306
      %v1499 = vpop.f32.mrb[0].mxu0
      %v1500 = vadd.f32 0.0, %v1499
      %v1501 = vpop.f32.mrb[0].mxu0
      %1502 = vmatprep.mubr.f32.mxu0 0.0
      %1503 = vmatmul.mubr.f32.gmra.mrb[0].mxu0 %v1307
      %v1504 = vpop.f32.mrb[0].mxu0
      %v1505 = vadd.f32 0.0, %v1504
      %v1506 = vpop.f32.mrb[0].mxu0
      %1507 = vmatprep.mubr.f32.mxu0 0.0
      %1508 = vmatmul.mubr.f32.gmra.mrb[0].mxu0 %v1308
      %v1509 = vpop.f32.mrb[0].mxu0
      %v1510 = vadd.f32 0.0, %v1509
      %v1511 = vpop.f32.mrb[0].mxu0
      %1512 = vmatprep.mubr.f32.mxu0 0.0
      %1513 = vmatmul.mubr.f32.gmra.mrb[0].mxu0 %v1309
      %v1514 = vpop.f32.mrb[0].mxu0
      %v1515 = vadd.f32 0.0, %v1514
      %v1516 = vpop.f32.mrb[0].mxu0
      %1517 = vmatprep.mubr.f32.mxu0 0.0
      %1518 = vmatmul.mubr.f32.gmra.mrb[0].mxu0 %v1310
      %v1519 = vpop.f32.mrb[0].mxu0
      %v1520 = vadd.f32 0.0, %v1519
      %v1521 = vpop.f32.mrb[0].mxu0
      %1522 = vdwg.mxu0
      %v1523 = vld [vmem:[%s318] sm:$0xff]
      %v1524 = vld [vmem:[%s318 + $0x8] sm:$0xff]
      %v1525 = vld [vmem:[%s318 + $0x10] sm:$0xff]
      %v1526 = vld [vmem:[%s318 + $0x18] sm:$0xff]
      %v1527 = vld [vmem:[%s318 + $0x20] sm:$0xff]
      %v1528 = vld [vmem:[%s318 + $0x28] sm:$0xff]
      %v1529 = vld [vmem:[%s318 + $0x30] sm:$0xff]
      %v1530 = vld [vmem:[%s318 + $0x38] sm:$0xff]
      %v1531 = vld [vmem:[%s318 + $0x40] sm:$0xff]
      %v1532 = vld [vmem:[%s318 + $0x48] sm:$0xff]
      %v1533 = vld [vmem:[%s318 + $0x50] sm:$0xff]
      %v1534 = vld [vmem:[%s318 + $0x58] sm:$0xff]
      %v1535 = vld [vmem:[%s318 + $0x60] sm:$0xff]
      %v1536 = vld [vmem:[%s318 + $0x68] sm:$0xff]
      %v1537 = vld [vmem:[%s318 + $0x70] sm:$0xff]
      %v1538 = vld [vmem:[%s318 + $0x78] sm:$0xff]
      %v1539 = vld [vmem:[%s318 + $0x80] sm:$0xff]
      %v1540 = vld [vmem:[%s318 + $0x88] sm:$0xff]
      %v1541 = vld [vmem:[%s318 + $0x90] sm:$0xff]
      %v1542 = vld [vmem:[%s318 + $0x98] sm:$0xff]
      %v1543 = vld [vmem:[%s318 + $0xa0] sm:$0xff]
      %v1544 = vld [vmem:[%s318 + $0xa8] sm:$0xff]
      %v1545 = vld [vmem:[%s318 + $0xb0] sm:$0xff]
      %v1546 = vld [vmem:[%s318 + $0xb8] sm:$0xff]
      %v1547 = vld [vmem:[%s318 + $0xc0] sm:$0xff]
      %v1548 = vld [vmem:[%s318 + $0xc8] sm:$0xff]
      %v1549 = vadd.f32 %v1523, %v1395
      %v1550 = vadd.f32 %v1524, %v1400
      %v1551 = vadd.f32 %v1525, %v1405
      %v1552 = vadd.f32 %v1526, %v1410
      %v1553 = vadd.f32 %v1527, %v1415
      %v1554 = vadd.f32 %v1528, %v1420
      %v1555 = vadd.f32 %v1529, %v1425
      %v1556 = vadd.f32 %v1530, %v1430
      %v1557 = vadd.f32 %v1531, %v1435
      %v1558 = vadd.f32 %v1532, %v1440
      %v1559 = vadd.f32 %v1533, %v1445
      %v1560 = vadd.f32 %v1534, %v1450
      %v1561 = vadd.f32 %v1535, %v1455
      %v1562 = vadd.f32 %v1536, %v1460
      %v1563 = vadd.f32 %v1537, %v1465
      %v1564 = vadd.f32 %v1538, %v1470
      %v1565 = vadd.f32 %v1539, %v1475
      %v1566 = vadd.f32 %v1540, %v1480
      %v1567 = vadd.f32 %v1541, %v1485
      %v1568 = vadd.f32 %v1542, %v1490
      %v1569 = vadd.f32 %v1543, %v1495
      %v1570 = vadd.f32 %v1544, %v1500
      %v1571 = vadd.f32 %v1545, %v1505
      %v1572 = vadd.f32 %v1546, %v1510
      %v1573 = vadd.f32 %v1547, %v1515
      %v1574 = vadd.f32 %v1548, %v1520
      %1575 = vst [vmem:[%s318] sm:$0xff] %v1549
      %1576 = vst [vmem:[%s318 + $0x8] sm:$0xff] %v1550
      %1577 = vst [vmem:[%s318 + $0x10] sm:$0xff] %v1551
      %1578 = vst [vmem:[%s318 + $0x18] sm:$0xff] %v1552
      %1579 = vst [vmem:[%s318 + $0x20] sm:$0xff] %v1553
      %1580 = vst [vmem:[%s318 + $0x28] sm:$0xff] %v1554
      %1581 = vst [vmem:[%s318 + $0x30] sm:$0xff] %v1555
      %1582 = vst [vmem:[%s318 + $0x38] sm:$0xff] %v1556
      %1583 = vst [vmem:[%s318 + $0x40] sm:$0xff] %v1557
      %1584 = vst [vmem:[%s318 + $0x48] sm:$0xff] %v1558
      %1585 = vst [vmem:[%s318 + $0x50] sm:$0xff] %v1559
      %1586 = vst [vmem:[%s318 + $0x58] sm:$0xff] %v1560
      %1587 = vst [vmem:[%s318 + $0x60] sm:$0xff] %v1561
      %1588 = vst [vmem:[%s318 + $0x68] sm:$0xff] %v1562
      %1589 = vst [vmem:[%s318 + $0x70] sm:$0xff] %v1563
      %1590 = vst [vmem:[%s318 + $0x78] sm:$0xff] %v1564
      %1591 = vst [vmem:[%s318 + $0x80] sm:$0xff] %v1565
      %1592 = vst [vmem:[%s318 + $0x88] sm:$0xff] %v1566
      %1593 = vst [vmem:[%s318 + $0x90] sm:$0xff] %v1567
      %1594 = vst [vmem:[%s318 + $0x98] sm:$0xff] %v1568
      %1595 = vst [vmem:[%s318 + $0xa0] sm:$0xff] %v1569
      %1596 = vst [vmem:[%s318 + $0xa8] sm:$0xff] %v1570
      %1597 = vst [vmem:[%s318 + $0xb0] sm:$0xff] %v1571
      %1598 = vst [vmem:[%s318 + $0xb8] sm:$0xff] %v1572
      %1599 = vst [vmem:[%s318 + $0xc0] sm:$0xff] %v1573
      %1600 = vst [vmem:[%s318 + $0xc8] sm:$0xff] %v1574
      %v1601 = vld [vmem:[#allocation2 + $0x17] sm:$0xff]
      %v1602 = vld [vmem:[#allocation2 + $0x1f] sm:$0xff]
      %v1603 = vld [vmem:[#allocation2 + $0x27] sm:$0xff]
      %v1604 = vld [vmem:[#allocation2 + $0x2f] sm:$0xff]
      %v1605 = vld [vmem:[#allocation2 + $0x37] sm:$0xff]
      %v1606 = vld [vmem:[#allocation2 + $0x3f] sm:$0xff]
      %v1607 = vld [vmem:[#allocation2 + $0x47] sm:$0xff]
      %v1608 = vld [vmem:[#allocation2 + $0x4f] sm:$0xff]
      %v1609 = vld [vmem:[#allocation2 + $0x57] sm:$0xff]
      %v1610 = vld [vmem:[#allocation2 + $0x5f] sm:$0xff]
      %v1611 = vld [vmem:[#allocation2 + $0x67] sm:$0xff]
      %v1612 = vld [vmem:[#allocation2 + $0x6f] sm:$0xff]
      %v1613 = vld [vmem:[#allocation2 + $0x77] sm:$0xff]
      %v1614 = vld [vmem:[#allocation2 + $0x7f] sm:$0xff]
      %v1615 = vld [vmem:[#allocation2 + $0x87] sm:$0xff]
      %v1616 = vld [vmem:[#allocation2 + $0x8f] sm:$0xff]
      %v1617 = vld [vmem:[#allocation2 + $0x97] sm:$0xff]
      %v1618 = vld [vmem:[#allocation2 + $0x9f] sm:$0xff]
      %v1619 = vld [vmem:[#allocation2 + $0xa7] sm:$0xff]
      %v1620 = vld [vmem:[#allocation2 + $0xaf] sm:$0xff]
      %v1621 = vld [vmem:[#allocation2 + $0xb7] sm:$0xff]
      %v1622 = vld [vmem:[#allocation2 + $0xbf] sm:$0xff]
      %v1623 = vld [vmem:[#allocation2 + $0xc7] sm:$0xff]
      %v1624 = vld [vmem:[#allocation2 + $0xcf] sm:$0xff]
      %v1625 = vld [vmem:[#allocation2 + $0xd7] sm:$0xff]
      %v1626 = vld [vmem:[#allocation2 + $0xdf] sm:$0xff]
      %s1627 = scalar_lea.vmem %s6, 384
      %v1628 = vld [vmem:[%s1627] sm:$0xff]
      %v1629 = vld [vmem:[%s1627 + $0x8] sm:$0xff]
      %v1630 = vld [vmem:[%s1627 + $0x10] sm:$0xff]
      %v1631 = vld [vmem:[%s1627 + $0x18] sm:$0xff]
      %v1632 = vld [vmem:[%s1627 + $0x20] sm:$0xff]
      %v1633 = vld [vmem:[%s1627 + $0x28] sm:$0xff]
      %v1634 = vld [vmem:[%s1627 + $0x30] sm:$0xff]
      %v1635 = vld [vmem:[%s1627 + $0x38] sm:$0xff]
      %v1636 = vld [vmem:[%s1627 + $0x40] sm:$0xff]
      %v1637 = vld [vmem:[%s1627 + $0x48] sm:$0xff]
      %v1638 = vld [vmem:[%s1627 + $0x50] sm:$0xff]
      %v1639 = vld [vmem:[%s1627 + $0x58] sm:$0xff]
      %v1640 = vld [vmem:[%s1627 + $0x60] sm:$0xff]
      %v1641 = vld [vmem:[%s1627 + $0x68] sm:$0xff]
      %v1642 = vld [vmem:[%s1627 + $0x70] sm:$0xff]
      %v1643 = vld [vmem:[%s1627 + $0x78] sm:$0xff]
      %1644 = vmatprep.subr.mxu0 0.0
      %1645 = vmatpush1.msra.mxu0 %v1628
      %1646 = vmatprep.subr.mxu0 0.0
      %1647 = vmatpush1.msra.mxu0 %v1629
      %1648 = vmatprep.subr.mxu0 0.0
      %1649 = vmatpush1.msra.mxu0 %v1630
      %1650 = vmatprep.subr.mxu0 0.0
      %1651 = vmatpush1.msra.mxu0 %v1631
      %1652 = vmatprep.subr.mxu0 0.0
      %1653 = vmatpush1.msra.mxu0 %v1632
      %1654 = vmatprep.subr.mxu0 0.0
      %1655 = vmatpush1.msra.mxu0 %v1633
      %1656 = vmatprep.subr.mxu0 0.0
      %1657 = vmatpush1.msra.mxu0 %v1634
      %1658 = vmatprep.subr.mxu0 0.0
      %1659 = vmatpush1.msra.mxu0 %v1635
      %1660 = vmatprep.subr.mxu0 0.0
      %1661 = vmatpush1.msra.mxu0 %v1636
      %1662 = vmatprep.subr.mxu0 0.0
      %1663 = vmatpush1.msra.mxu0 %v1637
      %1664 = vmatprep.subr.mxu0 0.0
      %1665 = vmatpush1.msra.mxu0 %v1638
      %1666 = vmatprep.subr.mxu0 0.0
      %1667 = vmatpush1.msra.mxu0 %v1639
      %1668 = vmatprep.subr.mxu0 0.0
      %1669 = vmatpush1.msra.mxu0 %v1640
      %1670 = vmatprep.subr.mxu0 0.0
      %1671 = vmatpush1.msra.mxu0 %v1641
      %1672 = vmatprep.subr.mxu0 0.0
      %1673 = vmatpush1.msra.mxu0 %v1642
      %1674 = vmatprep.subr.mxu0 0.0
      %1675 = vmatpush1.msra.mxu0 %v1643
      %1676 = vmatprep.subr.mxu0 0.0
      %1677 = vmatpush1.msra.mxu0 0.0
      %1678 = vmatprep.subr.mxu0 0.0
      %1679 = vmatpush1.msra.mxu0 0.0
      %1680 = vmatprep.subr.mxu0 0.0
      %1681 = vmatpush1.msra.mxu0 0.0
      %1682 = vmatprep.subr.mxu0 0.0
      %1683 = vmatpush1.msra.mxu0 0.0
      %1684 = vmatprep.subr.mxu0 0.0
      %1685 = vmatpush1.msra.mxu0 0.0
      %1686 = vmatprep.subr.mxu0 0.0
      %1687 = vmatpush1.msra.mxu0 0.0
      %1688 = vmatprep.subr.mxu0 0.0
      %1689 = vmatpush1.msra.mxu0 0.0
      %1690 = vmatprep.subr.mxu0 0.0
      %1691 = vmatpush1.msra.mxu0 0.0
      %1692 = vmatprep.subr.mxu0 0.0
      %1693 = vmatpush1.msra.mxu0 0.0
      %1694 = vmatprep.subr.mxu0 0.0
      %1695 = vmatpush1.msra.mxu0 0.0
      %1696 = vmatprep.subr.mxu0 0.0
      %1697 = vmatpush1.msra.mxu0 0.0
      %1698 = vmatprep.subr.mxu0 0.0
      %1699 = vmatpush1.msra.mxu0 0.0
      %1700 = vmatprep.subr.mxu0 0.0
      %1701 = vmatpush1.msra.mxu0 0.0
      %1702 = vmatprep.subr.mxu0 0.0
      %1703 = vmatpush1.msra.mxu0 0.0
      %1704 = vmatprep.subr.mxu0 0.0
      %1705 = vmatpush1.msra.mxu0 0.0
      %1706 = vmatprep.subr.mxu0 0.0
      %1707 = vmatpush1.msra.mxu0 0.0
      %1708 = vmatprep.mubr.f32.mxu0 0.0
      %1709 = vmatmul.mubr.f32.gmra.mrb[0].mxu0 %v1601
      %v1710 = vpop.f32.mrb[0].mxu0
      %v1711 = vadd.f32 0.0, %v1710
      %v1712 = vpop.f32.mrb[0].mxu0
      %1713 = vmatprep.mubr.f32.mxu0 0.0
      %1714 = vmatmul.mubr.f32.gmra.mrb[0].mxu0 %v1602
      %v1715 = vpop.f32.mrb[0].mxu0
      %v1716 = vadd.f32 0.0, %v1715
      %v1717 = vpop.f32.mrb[0].mxu0
      %1718 = vmatprep.mubr.f32.mxu0 0.0
      %1719 = vmatmul.mubr.f32.gmra.mrb[0].mxu0 %v1603
      %v1720 = vpop.f32.mrb[0].mxu0
      %v1721 = vadd.f32 0.0, %v1720
      %v1722 = vpop.f32.mrb[0].mxu0
      %1723 = vmatprep.mubr.f32.mxu0 0.0
      %1724 = vmatmul.mubr.f32.gmra.mrb[0].mxu0 %v1604
      %v1725 = vpop.f32.mrb[0].mxu0
      %v1726 = vadd.f32 0.0, %v1725
      %v1727 = vpop.f32.mrb[0].mxu0
      %1728 = vmatprep.mubr.f32.mxu0 0.0
      %1729 = vmatmul.mubr.f32.gmra.mrb[0].mxu0 %v1605
      %v1730 = vpop.f32.mrb[0].mxu0
      %v1731 = vadd.f32 0.0, %v1730
      %v1732 = vpop.f32.mrb[0].mxu0
      %1733 = vmatprep.mubr.f32.mxu0 0.0
      %1734 = vmatmul.mubr.f32.gmra.mrb[0].mxu0 %v1606
      %v1735 = vpop.f32.mrb[0].mxu0
      %v1736 = vadd.f32 0.0, %v1735
      %v1737 = vpop.f32.mrb[0].mxu0
      %1738 = vmatprep.mubr.f32.mxu0 0.0
      %1739 = vmatmul.mubr.f32.gmra.mrb[0].mxu0 %v1607
      %v1740 = vpop.f32.mrb[0].mxu0
      %v1741 = vadd.f32 0.0, %v1740
      %v1742 = vpop.f32.mrb[0].mxu0
      %1743 = vmatprep.mubr.f32.mxu0 0.0
      %1744 = vmatmul.mubr.f32.gmra.mrb[0].mxu0 %v1608
      %v1745 = vpop.f32.mrb[0].mxu0
      %v1746 = vadd.f32 0.0, %v1745
      %v1747 = vpop.f32.mrb[0].mxu0
      %1748 = vmatprep.mubr.f32.mxu0 0.0
      %1749 = vmatmul.mubr.f32.gmra.mrb[0].mxu0 %v1609
      %v1750 = vpop.f32.mrb[0].mxu0
      %v1751 = vadd.f32 0.0, %v1750
      %v1752 = vpop.f32.mrb[0].mxu0
      %1753 = vmatprep.mubr.f32.mxu0 0.0
      %1754 = vmatmul.mubr.f32.gmra.mrb[0].mxu0 %v1610
      %v1755 = vpop.f32.mrb[0].mxu0
      %v1756 = vadd.f32 0.0, %v1755
      %v1757 = vpop.f32.mrb[0].mxu0
      %1758 = vmatprep.mubr.f32.mxu0 0.0
      %1759 = vmatmul.mubr.f32.gmra.mrb[0].mxu0 %v1611
      %v1760 = vpop.f32.mrb[0].mxu0
      %v1761 = vadd.f32 0.0, %v1760
      %v1762 = vpop.f32.mrb[0].mxu0
      %1763 = vmatprep.mubr.f32.mxu0 0.0
      %1764 = vmatmul.mubr.f32.gmra.mrb[0].mxu0 %v1612
      %v1765 = vpop.f32.mrb[0].mxu0
      %v1766 = vadd.f32 0.0, %v1765
      %v1767 = vpop.f32.mrb[0].mxu0
      %1768 = vmatprep.mubr.f32.mxu0 0.0
      %1769 = vmatmul.mubr.f32.gmra.mrb[0].mxu0 %v1613
      %v1770 = vpop.f32.mrb[0].mxu0
      %v1771 = vadd.f32 0.0, %v1770
      %v1772 = vpop.f32.mrb[0].mxu0
      %1773 = vmatprep.mubr.f32.mxu0 0.0
      %1774 = vmatmul.mubr.f32.gmra.mrb[0].mxu0 %v1614
      %v1775 = vpop.f32.mrb[0].mxu0
      %v1776 = vadd.f32 0.0, %v1775
      %v1777 = vpop.f32.mrb[0].mxu0
      %1778 = vmatprep.mubr.f32.mxu0 0.0
      %1779 = vmatmul.mubr.f32.gmra.mrb[0].mxu0 %v1615
      %v1780 = vpop.f32.mrb[0].mxu0
      %v1781 = vadd.f32 0.0, %v1780
      %v1782 = vpop.f32.mrb[0].mxu0
      %1783 = vmatprep.mubr.f32.mxu0 0.0
      %1784 = vmatmul.mubr.f32.gmra.mrb[0].mxu0 %v1616
      %v1785 = vpop.f32.mrb[0].mxu0
      %v1786 = vadd.f32 0.0, %v1785
      %v1787 = vpop.f32.mrb[0].mxu0
      %1788 = vmatprep.mubr.f32.mxu0 0.0
      %1789 = vmatmul.mubr.f32.gmra.mrb[0].mxu0 %v1617
      %v1790 = vpop.f32.mrb[0].mxu0
      %v1791 = vadd.f32 0.0, %v1790
      %v1792 = vpop.f32.mrb[0].mxu0
      %1793 = vmatprep.mubr.f32.mxu0 0.0
      %1794 = vmatmul.mubr.f32.gmra.mrb[0].mxu0 %v1618
      %v1795 = vpop.f32.mrb[0].mxu0
      %v1796 = vadd.f32 0.0, %v1795
      %v1797 = vpop.f32.mrb[0].mxu0
      %1798 = vmatprep.mubr.f32.mxu0 0.0
      %1799 = vmatmul.mubr.f32.gmra.mrb[0].mxu0 %v1619
      %v1800 = vpop.f32.mrb[0].mxu0
      %v1801 = vadd.f32 0.0, %v1800
      %v1802 = vpop.f32.mrb[0].mxu0
      %1803 = vmatprep.mubr.f32.mxu0 0.0
      %1804 = vmatmul.mubr.f32.gmra.mrb[0].mxu0 %v1620
      %v1805 = vpop.f32.mrb[0].mxu0
      %v1806 = vadd.f32 0.0, %v1805
      %v1807 = vpop.f32.mrb[0].mxu0
      %1808 = vmatprep.mubr.f32.mxu0 0.0
      %1809 = vmatmul.mubr.f32.gmra.mrb[0].mxu0 %v1621
      %v1810 = vpop.f32.mrb[0].mxu0
      %v1811 = vadd.f32 0.0, %v1810
      %v1812 = vpop.f32.mrb[0].mxu0
      %1813 = vmatprep.mubr.f32.mxu0 0.0
      %1814 = vmatmul.mubr.f32.gmra.mrb[0].mxu0 %v1622
      %v1815 = vpop.f32.mrb[0].mxu0
      %v1816 = vadd.f32 0.0, %v1815
      %v1817 = vpop.f32.mrb[0].mxu0
      %1818 = vmatprep.mubr.f32.mxu0 0.0
      %1819 = vmatmul.mubr.f32.gmra.mrb[0].mxu0 %v1623
      %v1820 = vpop.f32.mrb[0].mxu0
      %v1821 = vadd.f32 0.0, %v1820
      %v1822 = vpop.f32.mrb[0].mxu0
      %1823 = vmatprep.mubr.f32.mxu0 0.0
      %1824 = vmatmul.mubr.f32.gmra.mrb[0].mxu0 %v1624
      %v1825 = vpop.f32.mrb[0].mxu0
      %v1826 = vadd.f32 0.0, %v1825
      %v1827 = vpop.f32.mrb[0].mxu0
      %1828 = vmatprep.mubr.f32.mxu0 0.0
      %1829 = vmatmul.mubr.f32.gmra.mrb[0].mxu0 %v1625
      %v1830 = vpop.f32.mrb[0].mxu0
      %v1831 = vadd.f32 0.0, %v1830
      %v1832 = vpop.f32.mrb[0].mxu0
      %1833 = vmatprep.mubr.f32.mxu0 0.0
      %1834 = vmatmul.mubr.f32.gmra.mrb[0].mxu0 %v1626
      %v1835 = vpop.f32.mrb[0].mxu0
      %v1836 = vadd.f32 0.0, %v1835
      %v1837 = vpop.f32.mrb[0].mxu0
      %1838 = vdwg.mxu0
      %v1839 = vld [vmem:[%s318] sm:$0xff]
      %v1840 = vld [vmem:[%s318 + $0x8] sm:$0xff]
      %v1841 = vld [vmem:[%s318 + $0x10] sm:$0xff]
      %v1842 = vld [vmem:[%s318 + $0x18] sm:$0xff]
      %v1843 = vld [vmem:[%s318 + $0x20] sm:$0xff]
      %v1844 = vld [vmem:[%s318 + $0x28] sm:$0xff]
      %v1845 = vld [vmem:[%s318 + $0x30] sm:$0xff]
      %v1846 = vld [vmem:[%s318 + $0x38] sm:$0xff]
      %v1847 = vld [vmem:[%s318 + $0x40] sm:$0xff]
      %v1848 = vld [vmem:[%s318 + $0x48] sm:$0xff]
      %v1849 = vld [vmem:[%s318 + $0x50] sm:$0xff]
      %v1850 = vld [vmem:[%s318 + $0x58] sm:$0xff]
      %v1851 = vld [vmem:[%s318 + $0x60] sm:$0xff]
      %v1852 = vld [vmem:[%s318 + $0x68] sm:$0xff]
      %v1853 = vld [vmem:[%s318 + $0x70] sm:$0xff]
      %v1854 = vld [vmem:[%s318 + $0x78] sm:$0xff]
      %v1855 = vld [vmem:[%s318 + $0x80] sm:$0xff]
      %v1856 = vld [vmem:[%s318 + $0x88] sm:$0xff]
      %v1857 = vld [vmem:[%s318 + $0x90] sm:$0xff]
      %v1858 = vld [vmem:[%s318 + $0x98] sm:$0xff]
      %v1859 = vld [vmem:[%s318 + $0xa0] sm:$0xff]
      %v1860 = vld [vmem:[%s318 + $0xa8] sm:$0xff]
      %v1861 = vld [vmem:[%s318 + $0xb0] sm:$0xff]
      %v1862 = vld [vmem:[%s318 + $0xb8] sm:$0xff]
      %v1863 = vld [vmem:[%s318 + $0xc0] sm:$0xff]
      %v1864 = vld [vmem:[%s318 + $0xc8] sm:$0xff]
      %v1865 = vadd.f32 %v1839, %v1711
      %v1866 = vadd.f32 %v1840, %v1716
      %v1867 = vadd.f32 %v1841, %v1721
      %v1868 = vadd.f32 %v1842, %v1726
      %v1869 = vadd.f32 %v1843, %v1731
      %v1870 = vadd.f32 %v1844, %v1736
      %v1871 = vadd.f32 %v1845, %v1741
      %v1872 = vadd.f32 %v1846, %v1746
      %v1873 = vadd.f32 %v1847, %v1751
      %v1874 = vadd.f32 %v1848, %v1756
      %v1875 = vadd.f32 %v1849, %v1761
      %v1876 = vadd.f32 %v1850, %v1766
      %v1877 = vadd.f32 %v1851, %v1771
      %v1878 = vadd.f32 %v1852, %v1776
      %v1879 = vadd.f32 %v1853, %v1781
      %v1880 = vadd.f32 %v1854, %v1786
      %v1881 = vadd.f32 %v1855, %v1791
      %v1882 = vadd.f32 %v1856, %v1796
      %v1883 = vadd.f32 %v1857, %v1801
      %v1884 = vadd.f32 %v1858, %v1806
      %v1885 = vadd.f32 %v1859, %v1811
      %v1886 = vadd.f32 %v1860, %v1816
      %v1887 = vadd.f32 %v1861, %v1821
      %v1888 = vadd.f32 %v1862, %v1826
      %v1889 = vadd.f32 %v1863, %v1831
      %v1890 = vadd.f32 %v1864, %v1836
      %1891 = vst [vmem:[%s318] sm:$0xff] %v1865
      %1892 = vst [vmem:[%s318 + $0x8] sm:$0xff] %v1866
      %1893 = vst [vmem:[%s318 + $0x10] sm:$0xff] %v1867
      %1894 = vst [vmem:[%s318 + $0x18] sm:$0xff] %v1868
      %1895 = vst [vmem:[%s318 + $0x20] sm:$0xff] %v1869
      %1896 = vst [vmem:[%s318 + $0x28] sm:$0xff] %v1870
      %1897 = vst [vmem:[%s318 + $0x30] sm:$0xff] %v1871
      %1898 = vst [vmem:[%s318 + $0x38] sm:$0xff] %v1872
      %1899 = vst [vmem:[%s318 + $0x40] sm:$0xff] %v1873
      %1900 = vst [vmem:[%s318 + $0x48] sm:$0xff] %v1874
      %1901 = vst [vmem:[%s318 + $0x50] sm:$0xff] %v1875
      %1902 = vst [vmem:[%s318 + $0x58] sm:$0xff] %v1876
      %1903 = vst [vmem:[%s318 + $0x60] sm:$0xff] %v1877
      %1904 = vst [vmem:[%s318 + $0x68] sm:$0xff] %v1878
      %1905 = vst [vmem:[%s318 + $0x70] sm:$0xff] %v1879
      %1906 = vst [vmem:[%s318 + $0x78] sm:$0xff] %v1880
      %1907 = vst [vmem:[%s318 + $0x80] sm:$0xff] %v1881
      %1908 = vst [vmem:[%s318 + $0x88] sm:$0xff] %v1882
      %1909 = vst [vmem:[%s318 + $0x90] sm:$0xff] %v1883
      %1910 = vst [vmem:[%s318 + $0x98] sm:$0xff] %v1884
      %1911 = vst [vmem:[%s318 + $0xa0] sm:$0xff] %v1885
      %1912 = vst [vmem:[%s318 + $0xa8] sm:$0xff] %v1886
      %1913 = vst [vmem:[%s318 + $0xb0] sm:$0xff] %v1887
      %1914 = vst [vmem:[%s318 + $0xb8] sm:$0xff] %v1888
      %1915 = vst [vmem:[%s318 + $0xc0] sm:$0xff] %v1889
      %1916 = vst [vmem:[%s318 + $0xc8] sm:$0xff] %v1890
      %v1917 = vld [vmem:[#allocation2 + $0x8] sm:$0xff]
      %v1918 = vld [vmem:[#allocation2 + $0x10] sm:$0xff]
      %v1919 = vld [vmem:[#allocation2 + $0x18] sm:$0xff]
      %v1920 = vld [vmem:[#allocation2 + $0x20] sm:$0xff]
      %v1921 = vld [vmem:[#allocation2 + $0x28] sm:$0xff]
      %v1922 = vld [vmem:[#allocation2 + $0x30] sm:$0xff]
      %v1923 = vld [vmem:[#allocation2 + $0x38] sm:$0xff]
      %v1924 = vld [vmem:[#allocation2 + $0x40] sm:$0xff]
      %v1925 = vld [vmem:[#allocation2 + $0x48] sm:$0xff]
      %v1926 = vld [vmem:[#allocation2 + $0x50] sm:$0xff]
      %v1927 = vld [vmem:[#allocation2 + $0x58] sm:$0xff]
      %v1928 = vld [vmem:[#allocation2 + $0x60] sm:$0xff]
      %v1929 = vld [vmem:[#allocation2 + $0x68] sm:$0xff]
      %v1930 = vld [vmem:[#allocation2 + $0x70] sm:$0xff]
      %v1931 = vld [vmem:[#allocation2 + $0x78] sm:$0xff]
      %v1932 = vld [vmem:[#allocation2 + $0x80] sm:$0xff]
      %v1933 = vld [vmem:[#allocation2 + $0x88] sm:$0xff]
      %v1934 = vld [vmem:[#allocation2 + $0x90] sm:$0xff]
      %v1935 = vld [vmem:[#allocation2 + $0x98] sm:$0xff]
      %v1936 = vld [vmem:[#allocation2 + $0xa0] sm:$0xff]
      %v1937 = vld [vmem:[#allocation2 + $0xa8] sm:$0xff]
      %v1938 = vld [vmem:[#allocation2 + $0xb0] sm:$0xff]
      %v1939 = vld [vmem:[#allocation2 + $0xb8] sm:$0xff]
      %v1940 = vld [vmem:[#allocation2 + $0xc0] sm:$0xff]
      %v1941 = vld [vmem:[#allocation2 + $0xc8] sm:$0xff]
      %v1942 = vld [vmem:[#allocation2 + $0xd0] sm:$0xff]
      %s1943 = scalar_lea.vmem %s6, 512
      %v1944 = vld [vmem:[%s1943] sm:$0xff]
      %v1945 = vld [vmem:[%s1943 + $0x8] sm:$0xff]
      %v1946 = vld [vmem:[%s1943 + $0x10] sm:$0xff]
      %v1947 = vld [vmem:[%s1943 + $0x18] sm:$0xff]
      %v1948 = vld [vmem:[%s1943 + $0x20] sm:$0xff]
      %v1949 = vld [vmem:[%s1943 + $0x28] sm:$0xff]
      %v1950 = vld [vmem:[%s1943 + $0x30] sm:$0xff]
      %v1951 = vld [vmem:[%s1943 + $0x38] sm:$0xff]
      %v1952 = vld [vmem:[%s1943 + $0x40] sm:$0xff]
      %v1953 = vld [vmem:[%s1943 + $0x48] sm:$0xff]
      %v1954 = vld [vmem:[%s1943 + $0x50] sm:$0xff]
      %v1955 = vld [vmem:[%s1943 + $0x58] sm:$0xff]
      %v1956 = vld [vmem:[%s1943 + $0x60] sm:$0xff]
      %v1957 = vld [vmem:[%s1943 + $0x68] sm:$0xff]
      %v1958 = vld [vmem:[%s1943 + $0x70] sm:$0xff]
      %v1959 = vld [vmem:[%s1943 + $0x78] sm:$0xff]
      %1960 = vmatprep.subr.mxu0 0.0
      %1961 = vmatpush1.msra.mxu0 %v1944
      %1962 = vmatprep.subr.mxu0 0.0
      %1963 = vmatpush1.msra.mxu0 %v1945
      %1964 = vmatprep.subr.mxu0 0.0
      %1965 = vmatpush1.msra.mxu0 %v1946
      %1966 = vmatprep.subr.mxu0 0.0
      %1967 = vmatpush1.msra.mxu0 %v1947
      %1968 = vmatprep.subr.mxu0 0.0
      %1969 = vmatpush1.msra.mxu0 %v1948
      %1970 = vmatprep.subr.mxu0 0.0
      %1971 = vmatpush1.msra.mxu0 %v1949
      %1972 = vmatprep.subr.mxu0 0.0
      %1973 = vmatpush1.msra.mxu0 %v1950
      %1974 = vmatprep.subr.mxu0 0.0
      %1975 = vmatpush1.msra.mxu0 %v1951
      %1976 = vmatprep.subr.mxu0 0.0
      %1977 = vmatpush1.msra.mxu0 %v1952
      %1978 = vmatprep.subr.mxu0 0.0
      %1979 = vmatpush1.msra.mxu0 %v1953
      %1980 = vmatprep.subr.mxu0 0.0
      %1981 = vmatpush1.msra.mxu0 %v1954
      %1982 = vmatprep.subr.mxu0 0.0
      %1983 = vmatpush1.msra.mxu0 %v1955
      %1984 = vmatprep.subr.mxu0 0.0
      %1985 = vmatpush1.msra.mxu0 %v1956
      %1986 = vmatprep.subr.mxu0 0.0
      %1987 = vmatpush1.msra.mxu0 %v1957
      %1988 = vmatprep.subr.mxu0 0.0
      %1989 = vmatpush1.msra.mxu0 %v1958
      %1990 = vmatprep.subr.mxu0 0.0
      %1991 = vmatpush1.msra.mxu0 %v1959
      %1992 = vmatprep.subr.mxu0 0.0
      %1993 = vmatpush1.msra.mxu0 0.0
      %1994 = vmatprep.subr.mxu0 0.0
      %1995 = vmatpush1.msra.mxu0 0.0
      %1996 = vmatprep.subr.mxu0 0.0
      %1997 = vmatpush1.msra.mxu0 0.0
      %1998 = vmatprep.subr.mxu0 0.0
      %1999 = vmatpush1.msra.mxu0 0.0
      %2000 = vmatprep.subr.mxu0 0.0
      %2001 = vmatpush1.msra.mxu0 0.0
      %2002 = vmatprep.subr.mxu0 0.0
      %2003 = vmatpush1.msra.mxu0 0.0
      %2004 = vmatprep.subr.mxu0 0.0
      %2005 = vmatpush1.msra.mxu0 0.0
      %2006 = vmatprep.subr.mxu0 0.0
      %2007 = vmatpush1.msra.mxu0 0.0
      %2008 = vmatprep.subr.mxu0 0.0
      %2009 = vmatpush1.msra.mxu0 0.0
      %2010 = vmatprep.subr.mxu0 0.0
      %2011 = vmatpush1.msra.mxu0 0.0
      %2012 = vmatprep.subr.mxu0 0.0
      %2013 = vmatpush1.msra.mxu0 0.0
      %2014 = vmatprep.subr.mxu0 0.0
      %2015 = vmatpush1.msra.mxu0 0.0
      %2016 = vmatprep.subr.mxu0 0.0
      %2017 = vmatpush1.msra.mxu0 0.0
      %2018 = vmatprep.subr.mxu0 0.0
      %2019 = vmatpush1.msra.mxu0 0.0
      %2020 = vmatprep.subr.mxu0 0.0
      %2021 = vmatpush1.msra.mxu0 0.0
      %2022 = vmatprep.subr.mxu0 0.0
      %2023 = vmatpush1.msra.mxu0 0.0
      %2024 = vmatprep.mubr.f32.mxu0 0.0
      %2025 = vmatmul.mubr.f32.gmra.mrb[0].mxu0 %v1917
      %v2026 = vpop.f32.mrb[0].mxu0
      %v2027 = vadd.f32 0.0, %v2026
      %v2028 = vpop.f32.mrb[0].mxu0
      %2029 = vmatprep.mubr.f32.mxu0 0.0
      %2030 = vmatmul.mubr.f32.gmra.mrb[0].mxu0 %v1918
      %v2031 = vpop.f32.mrb[0].mxu0
      %v2032 = vadd.f32 0.0, %v2031
      %v2033 = vpop.f32.mrb[0].mxu0
      %2034 = vmatprep.mubr.f32.mxu0 0.0
      %2035 = vmatmul.mubr.f32.gmra.mrb[0].mxu0 %v1919
      %v2036 = vpop.f32.mrb[0].mxu0
      %v2037 = vadd.f32 0.0, %v2036
      %v2038 = vpop.f32.mrb[0].mxu0
      %2039 = vmatprep.mubr.f32.mxu0 0.0
      %2040 = vmatmul.mubr.f32.gmra.mrb[0].mxu0 %v1920
      %v2041 = vpop.f32.mrb[0].mxu0
      %v2042 = vadd.f32 0.0, %v2041
      %v2043 = vpop.f32.mrb[0].mxu0
      %2044 = vmatprep.mubr.f32.mxu0 0.0
      %2045 = vmatmul.mubr.f32.gmra.mrb[0].mxu0 %v1921
      %v2046 = vpop.f32.mrb[0].mxu0
      %v2047 = vadd.f32 0.0, %v2046
      %v2048 = vpop.f32.mrb[0].mxu0
      %2049 = vmatprep.mubr.f32.mxu0 0.0
      %2050 = vmatmul.mubr.f32.gmra.mrb[0].mxu0 %v1922
      %v2051 = vpop.f32.mrb[0].mxu0
      %v2052 = vadd.f32 0.0, %v2051
      %v2053 = vpop.f32.mrb[0].mxu0
      %2054 = vmatprep.mubr.f32.mxu0 0.0
      %2055 = vmatmul.mubr.f32.gmra.mrb[0].mxu0 %v1923
      %v2056 = vpop.f32.mrb[0].mxu0
      %v2057 = vadd.f32 0.0, %v2056
      %v2058 = vpop.f32.mrb[0].mxu0
      %2059 = vmatprep.mubr.f32.mxu0 0.0
      %2060 = vmatmul.mubr.f32.gmra.mrb[0].mxu0 %v1924
      %v2061 = vpop.f32.mrb[0].mxu0
      %v2062 = vadd.f32 0.0, %v2061
      %v2063 = vpop.f32.mrb[0].mxu0
      %2064 = vmatprep.mubr.f32.mxu0 0.0
      %2065 = vmatmul.mubr.f32.gmra.mrb[0].mxu0 %v1925
      %v2066 = vpop.f32.mrb[0].mxu0
      %v2067 = vadd.f32 0.0, %v2066
      %v2068 = vpop.f32.mrb[0].mxu0
      %2069 = vmatprep.mubr.f32.mxu0 0.0
      %2070 = vmatmul.mubr.f32.gmra.mrb[0].mxu0 %v1926
      %v2071 = vpop.f32.mrb[0].mxu0
      %v2072 = vadd.f32 0.0, %v2071
      %v2073 = vpop.f32.mrb[0].mxu0
      %2074 = vmatprep.mubr.f32.mxu0 0.0
      %2075 = vmatmul.mubr.f32.gmra.mrb[0].mxu0 %v1927
      %v2076 = vpop.f32.mrb[0].mxu0
      %v2077 = vadd.f32 0.0, %v2076
      %v2078 = vpop.f32.mrb[0].mxu0
      %2079 = vmatprep.mubr.f32.mxu0 0.0
      %2080 = vmatmul.mubr.f32.gmra.mrb[0].mxu0 %v1928
      %v2081 = vpop.f32.mrb[0].mxu0
      %v2082 = vadd.f32 0.0, %v2081
      %v2083 = vpop.f32.mrb[0].mxu0
      %2084 = vmatprep.mubr.f32.mxu0 0.0
      %2085 = vmatmul.mubr.f32.gmra.mrb[0].mxu0 %v1929
      %v2086 = vpop.f32.mrb[0].mxu0
      %v2087 = vadd.f32 0.0, %v2086
      %v2088 = vpop.f32.mrb[0].mxu0
      %2089 = vmatprep.mubr.f32.mxu0 0.0
      %2090 = vmatmul.mubr.f32.gmra.mrb[0].mxu0 %v1930
      %v2091 = vpop.f32.mrb[0].mxu0
      %v2092 = vadd.f32 0.0, %v2091
      %v2093 = vpop.f32.mrb[0].mxu0
      %2094 = vmatprep.mubr.f32.mxu0 0.0
      %2095 = vmatmul.mubr.f32.gmra.mrb[0].mxu0 %v1931
      %v2096 = vpop.f32.mrb[0].mxu0
      %v2097 = vadd.f32 0.0, %v2096
      %v2098 = vpop.f32.mrb[0].mxu0
      %2099 = vmatprep.mubr.f32.mxu0 0.0
      %2100 = vmatmul.mubr.f32.gmra.mrb[0].mxu0 %v1932
      %v2101 = vpop.f32.mrb[0].mxu0
      %v2102 = vadd.f32 0.0, %v2101
      %v2103 = vpop.f32.mrb[0].mxu0
      %2104 = vmatprep.mubr.f32.mxu0 0.0
      %2105 = vmatmul.mubr.f32.gmra.mrb[0].mxu0 %v1933
      %v2106 = vpop.f32.mrb[0].mxu0
      %v2107 = vadd.f32 0.0, %v2106
      %v2108 = vpop.f32.mrb[0].mxu0
      %2109 = vmatprep.mubr.f32.mxu0 0.0
      %2110 = vmatmul.mubr.f32.gmra.mrb[0].mxu0 %v1934
      %v2111 = vpop.f32.mrb[0].mxu0
      %v2112 = vadd.f32 0.0, %v2111
      %v2113 = vpop.f32.mrb[0].mxu0
      %2114 = vmatprep.mubr.f32.mxu0 0.0
      %2115 = vmatmul.mubr.f32.gmra.mrb[0].mxu0 %v1935
      %v2116 = vpop.f32.mrb[0].mxu0
      %v2117 = vadd.f32 0.0, %v2116
      %v2118 = vpop.f32.mrb[0].mxu0
      %2119 = vmatprep.mubr.f32.mxu0 0.0
      %2120 = vmatmul.mubr.f32.gmra.mrb[0].mxu0 %v1936
      %v2121 = vpop.f32.mrb[0].mxu0
      %v2122 = vadd.f32 0.0, %v2121
      %v2123 = vpop.f32.mrb[0].mxu0
      %2124 = vmatprep.mubr.f32.mxu0 0.0
      %2125 = vmatmul.mubr.f32.gmra.mrb[0].mxu0 %v1937
      %v2126 = vpop.f32.mrb[0].mxu0
      %v2127 = vadd.f32 0.0, %v2126
      %v2128 = vpop.f32.mrb[0].mxu0
      %2129 = vmatprep.mubr.f32.mxu0 0.0
      %2130 = vmatmul.mubr.f32.gmra.mrb[0].mxu0 %v1938
      %v2131 = vpop.f32.mrb[0].mxu0
      %v2132 = vadd.f32 0.0, %v2131
      %v2133 = vpop.f32.mrb[0].mxu0
      %2134 = vmatprep.mubr.f32.mxu0 0.0
      %2135 = vmatmul.mubr.f32.gmra.mrb[0].mxu0 %v1939
      %v2136 = vpop.f32.mrb[0].mxu0
      %v2137 = vadd.f32 0.0, %v2136
      %v2138 = vpop.f32.mrb[0].mxu0
      %2139 = vmatprep.mubr.f32.mxu0 0.0
      %2140 = vmatmul.mubr.f32.gmra.mrb[0].mxu0 %v1940
      %v2141 = vpop.f32.mrb[0].mxu0
      %v2142 = vadd.f32 0.0, %v2141
      %v2143 = vpop.f32.mrb[0].mxu0
      %2144 = vmatprep.mubr.f32.mxu0 0.0
      %2145 = vmatmul.mubr.f32.gmra.mrb[0].mxu0 %v1941
      %v2146 = vpop.f32.mrb[0].mxu0
      %v2147 = vadd.f32 0.0, %v2146
      %v2148 = vpop.f32.mrb[0].mxu0
      %2149 = vmatprep.mubr.f32.mxu0 0.0
      %2150 = vmatmul.mubr.f32.gmra.mrb[0].mxu0 %v1942
      %v2151 = vpop.f32.mrb[0].mxu0
      %v2152 = vadd.f32 0.0, %v2151
      %v2153 = vpop.f32.mrb[0].mxu0
      %2154 = vdwg.mxu0
      %v2155 = vld [vmem:[%s318] sm:$0xff]
      %v2156 = vld [vmem:[%s318 + $0x8] sm:$0xff]
      %v2157 = vld [vmem:[%s318 + $0x10] sm:$0xff]
      %v2158 = vld [vmem:[%s318 + $0x18] sm:$0xff]
      %v2159 = vld [vmem:[%s318 + $0x20] sm:$0xff]
      %v2160 = vld [vmem:[%s318 + $0x28] sm:$0xff]
      %v2161 = vld [vmem:[%s318 + $0x30] sm:$0xff]
      %v2162 = vld [vmem:[%s318 + $0x38] sm:$0xff]
      %v2163 = vld [vmem:[%s318 + $0x40] sm:$0xff]
      %v2164 = vld [vmem:[%s318 + $0x48] sm:$0xff]
      %v2165 = vld [vmem:[%s318 + $0x50] sm:$0xff]
      %v2166 = vld [vmem:[%s318 + $0x58] sm:$0xff]
      %v2167 = vld [vmem:[%s318 + $0x60] sm:$0xff]
      %v2168 = vld [vmem:[%s318 + $0x68] sm:$0xff]
      %v2169 = vld [vmem:[%s318 + $0x70] sm:$0xff]
      %v2170 = vld [vmem:[%s318 + $0x78] sm:$0xff]
      %v2171 = vld [vmem:[%s318 + $0x80] sm:$0xff]
      %v2172 = vld [vmem:[%s318 + $0x88] sm:$0xff]
      %v2173 = vld [vmem:[%s318 + $0x90] sm:$0xff]
      %v2174 = vld [vmem:[%s318 + $0x98] sm:$0xff]
      %v2175 = vld [vmem:[%s318 + $0xa0] sm:$0xff]
      %v2176 = vld [vmem:[%s318 + $0xa8] sm:$0xff]
      %v2177 = vld [vmem:[%s318 + $0xb0] sm:$0xff]
      %v2178 = vld [vmem:[%s318 + $0xb8] sm:$0xff]
      %v2179 = vld [vmem:[%s318 + $0xc0] sm:$0xff]
      %v2180 = vld [vmem:[%s318 + $0xc8] sm:$0xff]
      %v2181 = vadd.f32 %v2155, %v2027
      %v2182 = vadd.f32 %v2156, %v2032
      %v2183 = vadd.f32 %v2157, %v2037
      %v2184 = vadd.f32 %v2158, %v2042
      %v2185 = vadd.f32 %v2159, %v2047
      %v2186 = vadd.f32 %v2160, %v2052
      %v2187 = vadd.f32 %v2161, %v2057
      %v2188 = vadd.f32 %v2162, %v2062
      %v2189 = vadd.f32 %v2163, %v2067
      %v2190 = vadd.f32 %v2164, %v2072
      %v2191 = vadd.f32 %v2165, %v2077
      %v2192 = vadd.f32 %v2166, %v2082
      %v2193 = vadd.f32 %v2167, %v2087
      %v2194 = vadd.f32 %v2168, %v2092
      %v2195 = vadd.f32 %v2169, %v2097
      %v2196 = vadd.f32 %v2170, %v2102
      %v2197 = vadd.f32 %v2171, %v2107
      %v2198 = vadd.f32 %v2172, %v2112
      %v2199 = vadd.f32 %v2173, %v2117
      %v2200 = vadd.f32 %v2174, %v2122
      %v2201 = vadd.f32 %v2175, %v2127
      %v2202 = vadd.f32 %v2176, %v2132
      %v2203 = vadd.f32 %v2177, %v2137
      %v2204 = vadd.f32 %v2178, %v2142
      %v2205 = vadd.f32 %v2179, %v2147
      %v2206 = vadd.f32 %v2180, %v2152
      %2207 = vst [vmem:[%s318] sm:$0xff] %v2181
      %2208 = vst [vmem:[%s318 + $0x8] sm:$0xff] %v2182
      %2209 = vst [vmem:[%s318 + $0x10] sm:$0xff] %v2183
      %2210 = vst [vmem:[%s318 + $0x18] sm:$0xff] %v2184
      %2211 = vst [vmem:[%s318 + $0x20] sm:$0xff] %v2185
      %2212 = vst [vmem:[%s318 + $0x28] sm:$0xff] %v2186
      %2213 = vst [vmem:[%s318 + $0x30] sm:$0xff] %v2187
      %2214 = vst [vmem:[%s318 + $0x38] sm:$0xff] %v2188
      %2215 = vst [vmem:[%s318 + $0x40] sm:$0xff] %v2189
      %2216 = vst [vmem:[%s318 + $0x48] sm:$0xff] %v2190
      %2217 = vst [vmem:[%s318 + $0x50] sm:$0xff] %v2191
      %2218 = vst [vmem:[%s318 + $0x58] sm:$0xff] %v2192
      %2219 = vst [vmem:[%s318 + $0x60] sm:$0xff] %v2193
      %2220 = vst [vmem:[%s318 + $0x68] sm:$0xff] %v2194
      %2221 = vst [vmem:[%s318 + $0x70] sm:$0xff] %v2195
      %2222 = vst [vmem:[%s318 + $0x78] sm:$0xff] %v2196
      %2223 = vst [vmem:[%s318 + $0x80] sm:$0xff] %v2197
      %2224 = vst [vmem:[%s318 + $0x88] sm:$0xff] %v2198
      %2225 = vst [vmem:[%s318 + $0x90] sm:$0xff] %v2199
      %2226 = vst [vmem:[%s318 + $0x98] sm:$0xff] %v2200
      %2227 = vst [vmem:[%s318 + $0xa0] sm:$0xff] %v2201
      %2228 = vst [vmem:[%s318 + $0xa8] sm:$0xff] %v2202
      %2229 = vst [vmem:[%s318 + $0xb0] sm:$0xff] %v2203
      %2230 = vst [vmem:[%s318 + $0xb8] sm:$0xff] %v2204
      %2231 = vst [vmem:[%s318 + $0xc0] sm:$0xff] %v2205
      %2232 = vst [vmem:[%s318 + $0xc8] sm:$0xff] %v2206
      %v2233 = vld [vmem:[#allocation2 + $0x7] sm:$0xff]
      %v2234 = vld [vmem:[#allocation2 + $0xf] sm:$0xff]
      %v2235 = vld [vmem:[#allocation2 + $0x17] sm:$0xff]
      %v2236 = vld [vmem:[#allocation2 + $0x1f] sm:$0xff]
      %v2237 = vld [vmem:[#allocation2 + $0x27] sm:$0xff]
      %v2238 = vld [vmem:[#allocation2 + $0x2f] sm:$0xff]
      %v2239 = vld [vmem:[#allocation2 + $0x37] sm:$0xff]
      %v2240 = vld [vmem:[#allocation2 + $0x3f] sm:$0xff]
      %v2241 = vld [vmem:[#allocation2 + $0x47] sm:$0xff]
      %v2242 = vld [vmem:[#allocation2 + $0x4f] sm:$0xff]
      %v2243 = vld [vmem:[#allocation2 + $0x57] sm:$0xff]
      %v2244 = vld [vmem:[#allocation2 + $0x5f] sm:$0xff]
      %v2245 = vld [vmem:[#allocation2 + $0x67] sm:$0xff]
      %v2246 = vld [vmem:[#allocation2 + $0x6f] sm:$0xff]
      %v2247 = vld [vmem:[#allocation2 + $0x77] sm:$0xff]
      %v2248 = vld [vmem:[#allocation2 + $0x7f] sm:$0xff]
      %v2249 = vld [vmem:[#allocation2 + $0x87] sm:$0xff]
      %v2250 = vld [vmem:[#allocation2 + $0x8f] sm:$0xff]
      %v2251 = vld [vmem:[#allocation2 + $0x97] sm:$0xff]
      %v2252 = vld [vmem:[#allocation2 + $0x9f] sm:$0xff]
      %v2253 = vld [vmem:[#allocation2 + $0xa7] sm:$0xff]
      %v2254 = vld [vmem:[#allocation2 + $0xaf] sm:$0xff]
      %v2255 = vld [vmem:[#allocation2 + $0xb7] sm:$0xff]
      %v2256 = vld [vmem:[#allocation2 + $0xbf] sm:$0xff]
      %v2257 = vld [vmem:[#allocation2 + $0xc7] sm:$0xff]
      %v2258 = vld [vmem:[#allocation2 + $0xcf] sm:$0xff]
      %s2259 = scalar_lea.vmem %s6, 640
      %v2260 = vld [vmem:[%s2259] sm:$0xff]
      %v2261 = vld [vmem:[%s2259 + $0x8] sm:$0xff]
      %v2262 = vld [vmem:[%s2259 + $0x10] sm:$0xff]
      %v2263 = vld [vmem:[%s2259 + $0x18] sm:$0xff]
      %v2264 = vld [vmem:[%s2259 + $0x20] sm:$0xff]
      %v2265 = vld [vmem:[%s2259 + $0x28] sm:$0xff]
      %v2266 = vld [vmem:[%s2259 + $0x30] sm:$0xff]
      %v2267 = vld [vmem:[%s2259 + $0x38] sm:$0xff]
      %v2268 = vld [vmem:[%s2259 + $0x40] sm:$0xff]
      %v2269 = vld [vmem:[%s2259 + $0x48] sm:$0xff]
      %v2270 = vld [vmem:[%s2259 + $0x50] sm:$0xff]
      %v2271 = vld [vmem:[%s2259 + $0x58] sm:$0xff]
      %v2272 = vld [vmem:[%s2259 + $0x60] sm:$0xff]
      %v2273 = vld [vmem:[%s2259 + $0x68] sm:$0xff]
      %v2274 = vld [vmem:[%s2259 + $0x70] sm:$0xff]
      %v2275 = vld [vmem:[%s2259 + $0x78] sm:$0xff]
      %2276 = vmatprep.subr.mxu0 0.0
      %2277 = vmatpush1.msra.mxu0 %v2260
      %2278 = vmatprep.subr.mxu0 0.0
      %2279 = vmatpush1.msra.mxu0 %v2261
      %2280 = vmatprep.subr.mxu0 0.0
      %2281 = vmatpush1.msra.mxu0 %v2262
      %2282 = vmatprep.subr.mxu0 0.0
      %2283 = vmatpush1.msra.mxu0 %v2263
      %2284 = vmatprep.subr.mxu0 0.0
      %2285 = vmatpush1.msra.mxu0 %v2264
      %2286 = vmatprep.subr.mxu0 0.0
      %2287 = vmatpush1.msra.mxu0 %v2265
      %2288 = vmatprep.subr.mxu0 0.0
      %2289 = vmatpush1.msra.mxu0 %v2266
      %2290 = vmatprep.subr.mxu0 0.0
      %2291 = vmatpush1.msra.mxu0 %v2267
      %2292 = vmatprep.subr.mxu0 0.0
      %2293 = vmatpush1.msra.mxu0 %v2268
      %2294 = vmatprep.subr.mxu0 0.0
      %2295 = vmatpush1.msra.mxu0 %v2269
      %2296 = vmatprep.subr.mxu0 0.0
      %2297 = vmatpush1.msra.mxu0 %v2270
      %2298 = vmatprep.subr.mxu0 0.0
      %2299 = vmatpush1.msra.mxu0 %v2271
      %2300 = vmatprep.subr.mxu0 0.0
      %2301 = vmatpush1.msra.mxu0 %v2272
      %2302 = vmatprep.subr.mxu0 0.0
      %2303 = vmatpush1.msra.mxu0 %v2273
      %2304 = vmatprep.subr.mxu0 0.0
      %2305 = vmatpush1.msra.mxu0 %v2274
      %2306 = vmatprep.subr.mxu0 0.0
      %2307 = vmatpush1.msra.mxu0 %v2275
      %2308 = vmatprep.subr.mxu0 0.0
      %2309 = vmatpush1.msra.mxu0 0.0
      %2310 = vmatprep.subr.mxu0 0.0
      %2311 = vmatpush1.msra.mxu0 0.0
      %2312 = vmatprep.subr.mxu0 0.0
      %2313 = vmatpush1.msra.mxu0 0.0
      %2314 = vmatprep.subr.mxu0 0.0
      %2315 = vmatpush1.msra.mxu0 0.0
      %2316 = vmatprep.subr.mxu0 0.0
      %2317 = vmatpush1.msra.mxu0 0.0
      %2318 = vmatprep.subr.mxu0 0.0
      %2319 = vmatpush1.msra.mxu0 0.0
      %2320 = vmatprep.subr.mxu0 0.0
      %2321 = vmatpush1.msra.mxu0 0.0
      %2322 = vmatprep.subr.mxu0 0.0
      %2323 = vmatpush1.msra.mxu0 0.0
      %2324 = vmatprep.subr.mxu0 0.0
      %2325 = vmatpush1.msra.mxu0 0.0
      %2326 = vmatprep.subr.mxu0 0.0
      %2327 = vmatpush1.msra.mxu0 0.0
      %2328 = vmatprep.subr.mxu0 0.0
      %2329 = vmatpush1.msra.mxu0 0.0
      %2330 = vmatprep.subr.mxu0 0.0
      %2331 = vmatpush1.msra.mxu0 0.0
      %2332 = vmatprep.subr.mxu0 0.0
      %2333 = vmatpush1.msra.mxu0 0.0
      %2334 = vmatprep.subr.mxu0 0.0
      %2335 = vmatpush1.msra.mxu0 0.0
      %2336 = vmatprep.subr.mxu0 0.0
      %2337 = vmatpush1.msra.mxu0 0.0
      %2338 = vmatprep.subr.mxu0 0.0
      %2339 = vmatpush1.msra.mxu0 0.0
      %2340 = vmatprep.mubr.f32.mxu0 0.0
      %2341 = vmatmul.mubr.f32.gmra.mrb[0].mxu0 %v2233
      %v2342 = vpop.f32.mrb[0].mxu0
      %v2343 = vadd.f32 0.0, %v2342
      %v2344 = vpop.f32.mrb[0].mxu0
      %2345 = vmatprep.mubr.f32.mxu0 0.0
      %2346 = vmatmul.mubr.f32.gmra.mrb[0].mxu0 %v2234
      %v2347 = vpop.f32.mrb[0].mxu0
      %v2348 = vadd.f32 0.0, %v2347
      %v2349 = vpop.f32.mrb[0].mxu0
      %2350 = vmatprep.mubr.f32.mxu0 0.0
      %2351 = vmatmul.mubr.f32.gmra.mrb[0].mxu0 %v2235
      %v2352 = vpop.f32.mrb[0].mxu0
      %v2353 = vadd.f32 0.0, %v2352
      %v2354 = vpop.f32.mrb[0].mxu0
      %2355 = vmatprep.mubr.f32.mxu0 0.0
      %2356 = vmatmul.mubr.f32.gmra.mrb[0].mxu0 %v2236
      %v2357 = vpop.f32.mrb[0].mxu0
      %v2358 = vadd.f32 0.0, %v2357
      %v2359 = vpop.f32.mrb[0].mxu0
      %2360 = vmatprep.mubr.f32.mxu0 0.0
      %2361 = vmatmul.mubr.f32.gmra.mrb[0].mxu0 %v2237
      %v2362 = vpop.f32.mrb[0].mxu0
      %v2363 = vadd.f32 0.0, %v2362
      %v2364 = vpop.f32.mrb[0].mxu0
      %2365 = vmatprep.mubr.f32.mxu0 0.0
      %2366 = vmatmul.mubr.f32.gmra.mrb[0].mxu0 %v2238
      %v2367 = vpop.f32.mrb[0].mxu0
      %v2368 = vadd.f32 0.0, %v2367
      %v2369 = vpop.f32.mrb[0].mxu0
      %2370 = vmatprep.mubr.f32.mxu0 0.0
      %2371 = vmatmul.mubr.f32.gmra.mrb[0].mxu0 %v2239
      %v2372 = vpop.f32.mrb[0].mxu0
      %v2373 = vadd.f32 0.0, %v2372
      %v2374 = vpop.f32.mrb[0].mxu0
      %2375 = vmatprep.mubr.f32.mxu0 0.0
      %2376 = vmatmul.mubr.f32.gmra.mrb[0].mxu0 %v2240
      %v2377 = vpop.f32.mrb[0].mxu0
      %v2378 = vadd.f32 0.0, %v2377
      %v2379 = vpop.f32.mrb[0].mxu0
      %2380 = vmatprep.mubr.f32.mxu0 0.0
      %2381 = vmatmul.mubr.f32.gmra.mrb[0].mxu0 %v2241
      %v2382 = vpop.f32.mrb[0].mxu0
      %v2383 = vadd.f32 0.0, %v2382
      %v2384 = vpop.f32.mrb[0].mxu0
      %2385 = vmatprep.mubr.f32.mxu0 0.0
      %2386 = vmatmul.mubr.f32.gmra.mrb[0].mxu0 %v2242
      %v2387 = vpop.f32.mrb[0].mxu0
      %v2388 = vadd.f32 0.0, %v2387
      %v2389 = vpop.f32.mrb[0].mxu0
      %2390 = vmatprep.mubr.f32.mxu0 0.0
      %2391 = vmatmul.mubr.f32.gmra.mrb[0].mxu0 %v2243
      %v2392 = vpop.f32.mrb[0].mxu0
      %v2393 = vadd.f32 0.0, %v2392
      %v2394 = vpop.f32.mrb[0].mxu0
      %2395 = vmatprep.mubr.f32.mxu0 0.0
      %2396 = vmatmul.mubr.f32.gmra.mrb[0].mxu0 %v2244
      %v2397 = vpop.f32.mrb[0].mxu0
      %v2398 = vadd.f32 0.0, %v2397
      %v2399 = vpop.f32.mrb[0].mxu0
      %2400 = vmatprep.mubr.f32.mxu0 0.0
      %2401 = vmatmul.mubr.f32.gmra.mrb[0].mxu0 %v2245
      %v2402 = vpop.f32.mrb[0].mxu0
      %v2403 = vadd.f32 0.0, %v2402
      %v2404 = vpop.f32.mrb[0].mxu0
      %2405 = vmatprep.mubr.f32.mxu0 0.0
      %2406 = vmatmul.mubr.f32.gmra.mrb[0].mxu0 %v2246
      %v2407 = vpop.f32.mrb[0].mxu0
      %v2408 = vadd.f32 0.0, %v2407
      %v2409 = vpop.f32.mrb[0].mxu0
      %2410 = vmatprep.mubr.f32.mxu0 0.0
      %2411 = vmatmul.mubr.f32.gmra.mrb[0].mxu0 %v2247
      %v2412 = vpop.f32.mrb[0].mxu0
      %v2413 = vadd.f32 0.0, %v2412
      %v2414 = vpop.f32.mrb[0].mxu0
      %2415 = vmatprep.mubr.f32.mxu0 0.0
      %2416 = vmatmul.mubr.f32.gmra.mrb[0].mxu0 %v2248
      %v2417 = vpop.f32.mrb[0].mxu0
      %v2418 = vadd.f32 0.0, %v2417
      %v2419 = vpop.f32.mrb[0].mxu0
      %2420 = vmatprep.mubr.f32.mxu0 0.0
      %2421 = vmatmul.mubr.f32.gmra.mrb[0].mxu0 %v2249
      %v2422 = vpop.f32.mrb[0].mxu0
      %v2423 = vadd.f32 0.0, %v2422
      %v2424 = vpop.f32.mrb[0].mxu0
      %2425 = vmatprep.mubr.f32.mxu0 0.0
      %2426 = vmatmul.mubr.f32.gmra.mrb[0].mxu0 %v2250
      %v2427 = vpop.f32.mrb[0].mxu0
      %v2428 = vadd.f32 0.0, %v2427
      %v2429 = vpop.f32.mrb[0].mxu0
      %2430 = vmatprep.mubr.f32.mxu0 0.0
      %2431 = vmatmul.mubr.f32.gmra.mrb[0].mxu0 %v2251
      %v2432 = vpop.f32.mrb[0].mxu0
      %v2433 = vadd.f32 0.0, %v2432
      %v2434 = vpop.f32.mrb[0].mxu0
      %2435 = vmatprep.mubr.f32.mxu0 0.0
      %2436 = vmatmul.mubr.f32.gmra.mrb[0].mxu0 %v2252
      %v2437 = vpop.f32.mrb[0].mxu0
      %v2438 = vadd.f32 0.0, %v2437
      %v2439 = vpop.f32.mrb[0].mxu0
      %2440 = vmatprep.mubr.f32.mxu0 0.0
      %2441 = vmatmul.mubr.f32.gmra.mrb[0].mxu0 %v2253
      %v2442 = vpop.f32.mrb[0].mxu0
      %v2443 = vadd.f32 0.0, %v2442
      %v2444 = vpop.f32.mrb[0].mxu0
      %2445 = vmatprep.mubr.f32.mxu0 0.0
      %2446 = vmatmul.mubr.f32.gmra.mrb[0].mxu0 %v2254
      %v2447 = vpop.f32.mrb[0].mxu0
      %v2448 = vadd.f32 0.0, %v2447
      %v2449 = vpop.f32.mrb[0].mxu0
      %2450 = vmatprep.mubr.f32.mxu0 0.0
      %2451 = vmatmul.mubr.f32.gmra.mrb[0].mxu0 %v2255
      %v2452 = vpop.f32.mrb[0].mxu0
      %v2453 = vadd.f32 0.0, %v2452
      %v2454 = vpop.f32.mrb[0].mxu0
      %2455 = vmatprep.mubr.f32.mxu0 0.0
      %2456 = vmatmul.mubr.f32.gmra.mrb[0].mxu0 %v2256
      %v2457 = vpop.f32.mrb[0].mxu0
      %v2458 = vadd.f32 0.0, %v2457
      %v2459 = vpop.f32.mrb[0].mxu0
      %2460 = vmatprep.mubr.f32.mxu0 0.0
      %2461 = vmatmul.mubr.f32.gmra.mrb[0].mxu0 %v2257
      %v2462 = vpop.f32.mrb[0].mxu0
      %v2463 = vadd.f32 0.0, %v2462
      %v2464 = vpop.f32.mrb[0].mxu0
      %2465 = vmatprep.mubr.f32.mxu0 0.0
      %2466 = vmatmul.mubr.f32.gmra.mrb[0].mxu0 %v2258
      %v2467 = vpop.f32.mrb[0].mxu0
      %v2468 = vadd.f32 0.0, %v2467
      %v2469 = vpop.f32.mrb[0].mxu0
      %2470 = vdwg.mxu0
      %v2471 = vld [vmem:[%s318] sm:$0xff]
      %v2472 = vld [vmem:[%s318 + $0x8] sm:$0xff]
      %v2473 = vld [vmem:[%s318 + $0x10] sm:$0xff]
      %v2474 = vld [vmem:[%s318 + $0x18] sm:$0xff]
      %v2475 = vld [vmem:[%s318 + $0x20] sm:$0xff]
      %v2476 = vld [vmem:[%s318 + $0x28] sm:$0xff]
      %v2477 = vld [vmem:[%s318 + $0x30] sm:$0xff]
      %v2478 = vld [vmem:[%s318 + $0x38] sm:$0xff]
      %v2479 = vld [vmem:[%s318 + $0x40] sm:$0xff]
      %v2480 = vld [vmem:[%s318 + $0x48] sm:$0xff]
      %v2481 = vld [vmem:[%s318 + $0x50] sm:$0xff]
      %v2482 = vld [vmem:[%s318 + $0x58] sm:$0xff]
      %v2483 = vld [vmem:[%s318 + $0x60] sm:$0xff]
      %v2484 = vld [vmem:[%s318 + $0x68] sm:$0xff]
      %v2485 = vld [vmem:[%s318 + $0x70] sm:$0xff]
      %v2486 = vld [vmem:[%s318 + $0x78] sm:$0xff]
      %v2487 = vld [vmem:[%s318 + $0x80] sm:$0xff]
      %v2488 = vld [vmem:[%s318 + $0x88] sm:$0xff]
      %v2489 = vld [vmem:[%s318 + $0x90] sm:$0xff]
      %v2490 = vld [vmem:[%s318 + $0x98] sm:$0xff]
      %v2491 = vld [vmem:[%s318 + $0xa0] sm:$0xff]
      %v2492 = vld [vmem:[%s318 + $0xa8] sm:$0xff]
      %v2493 = vld [vmem:[%s318 + $0xb0] sm:$0xff]
      %v2494 = vld [vmem:[%s318 + $0xb8] sm:$0xff]
      %v2495 = vld [vmem:[%s318 + $0xc0] sm:$0xff]
      %v2496 = vld [vmem:[%s318 + $0xc8] sm:$0xff]
      %v2497 = vadd.f32 %v2471, %v2343
      %v2498 = vadd.f32 %v2472, %v2348
      %v2499 = vadd.f32 %v2473, %v2353
      %v2500 = vadd.f32 %v2474, %v2358
      %v2501 = vadd.f32 %v2475, %v2363
      %v2502 = vadd.f32 %v2476, %v2368
      %v2503 = vadd.f32 %v2477, %v2373
      %v2504 = vadd.f32 %v2478, %v2378
      %v2505 = vadd.f32 %v2479, %v2383
      %v2506 = vadd.f32 %v2480, %v2388
      %v2507 = vadd.f32 %v2481, %v2393
      %v2508 = vadd.f32 %v2482, %v2398
      %v2509 = vadd.f32 %v2483, %v2403
      %v2510 = vadd.f32 %v2484, %v2408
      %v2511 = vadd.f32 %v2485, %v2413
      %v2512 = vadd.f32 %v2486, %v2418
      %v2513 = vadd.f32 %v2487, %v2423
      %v2514 = vadd.f32 %v2488, %v2428
      %v2515 = vadd.f32 %v2489, %v2433
      %v2516 = vadd.f32 %v2490, %v2438
      %v2517 = vadd.f32 %v2491, %v2443
      %v2518 = vadd.f32 %v2492, %v2448
      %v2519 = vadd.f32 %v2493, %v2453
      %v2520 = vadd.f32 %v2494, %v2458
      %v2521 = vadd.f32 %v2495, %v2463
      %v2522 = vadd.f32 %v2496, %v2468
      %2523 = vst [vmem:[%s318] sm:$0xff] %v2497
      %2524 = vst [vmem:[%s318 + $0x8] sm:$0xff] %v2498
      %2525 = vst [vmem:[%s318 + $0x10] sm:$0xff] %v2499
      %2526 = vst [vmem:[%s318 + $0x18] sm:$0xff] %v2500
      %2527 = vst [vmem:[%s318 + $0x20] sm:$0xff] %v2501
      %2528 = vst [vmem:[%s318 + $0x28] sm:$0xff] %v2502
      %2529 = vst [vmem:[%s318 + $0x30] sm:$0xff] %v2503
      %2530 = vst [vmem:[%s318 + $0x38] sm:$0xff] %v2504
      %2531 = vst [vmem:[%s318 + $0x40] sm:$0xff] %v2505
      %2532 = vst [vmem:[%s318 + $0x48] sm:$0xff] %v2506
      %2533 = vst [vmem:[%s318 + $0x50] sm:$0xff] %v2507
      %2534 = vst [vmem:[%s318 + $0x58] sm:$0xff] %v2508
      %2535 = vst [vmem:[%s318 + $0x60] sm:$0xff] %v2509
      %2536 = vst [vmem:[%s318 + $0x68] sm:$0xff] %v2510
      %2537 = vst [vmem:[%s318 + $0x70] sm:$0xff] %v2511
      %2538 = vst [vmem:[%s318 + $0x78] sm:$0xff] %v2512
      %2539 = vst [vmem:[%s318 + $0x80] sm:$0xff] %v2513
      %2540 = vst [vmem:[%s318 + $0x88] sm:$0xff] %v2514
      %2541 = vst [vmem:[%s318 + $0x90] sm:$0xff] %v2515
      %2542 = vst [vmem:[%s318 + $0x98] sm:$0xff] %v2516
      %2543 = vst [vmem:[%s318 + $0xa0] sm:$0xff] %v2517
      %2544 = vst [vmem:[%s318 + $0xa8] sm:$0xff] %v2518
      %2545 = vst [vmem:[%s318 + $0xb0] sm:$0xff] %v2519
      %2546 = vst [vmem:[%s318 + $0xb8] sm:$0xff] %v2520
      %2547 = vst [vmem:[%s318 + $0xc0] sm:$0xff] %v2521
      %2548 = vst [vmem:[%s318 + $0xc8] sm:$0xff] %v2522
      %v2549 = vld [vmem:[%s318] sm:$0xff]
      %v2550 = vld [vmem:[%s318 + $0x8] sm:$0xff]
      %v2551 = vld [vmem:[%s318 + $0x10] sm:$0xff]
      %v2552 = vld [vmem:[%s318 + $0x18] sm:$0xff]
      %v2553 = vld [vmem:[%s318 + $0x20] sm:$0xff]
      %v2554 = vld [vmem:[%s318 + $0x28] sm:$0xff]
      %v2555 = vld [vmem:[%s318 + $0x30] sm:$0xff]
      %v2556 = vld [vmem:[%s318 + $0x38] sm:$0xff]
      %v2557 = vld [vmem:[%s318 + $0x40] sm:$0xff]
      %v2558 = vld [vmem:[%s318 + $0x48] sm:$0xff]
      %v2559 = vld [vmem:[%s318 + $0x50] sm:$0xff]
      %v2560 = vld [vmem:[%s318 + $0x58] sm:$0xff]
      %v2561 = vld [vmem:[%s318 + $0x60] sm:$0xff]
      %v2562 = vld [vmem:[%s318 + $0x68] sm:$0xff]
      %v2563 = vld [vmem:[%s318 + $0x70] sm:$0xff]
      %v2564 = vld [vmem:[%s318 + $0x78] sm:$0xff]
      %v2565 = vld [vmem:[%s318 + $0x80] sm:$0xff]
      %v2566 = vld [vmem:[%s318 + $0x88] sm:$0xff]
      %v2567 = vld [vmem:[%s318 + $0x90] sm:$0xff]
      %v2568 = vld [vmem:[%s318 + $0x98] sm:$0xff]
      %v2569 = vld [vmem:[%s318 + $0xa0] sm:$0xff]
      %v2570 = vld [vmem:[%s318 + $0xa8] sm:$0xff]
      %v2571 = vld [vmem:[%s318 + $0xb0] sm:$0xff]
      %v2572 = vld [vmem:[%s318 + $0xb8] sm:$0xff]
      %v2573 = vld [vmem:[%s318 + $0xc0] sm:$0xff]
      %v2574 = vld [vmem:[%s318 + $0xc8] sm:$0xff]
      %vm2575 = vcmp.gt.f32.partialorder %v2549, 0.0
      %vm2576 = vcmp.gt.f32.partialorder %v2550, 0.0
      %vm2577 = vcmp.gt.f32.partialorder %v2551, 0.0
      %vm2578 = vcmp.gt.f32.partialorder %v2552, 0.0
      %vm2579 = vcmp.gt.f32.partialorder %v2553, 0.0
      %vm2580 = vcmp.gt.f32.partialorder %v2554, 0.0
      %vm2581 = vcmp.gt.f32.partialorder %v2555, 0.0
      %vm2582 = vcmp.gt.f32.partialorder %v2556, 0.0
      %vm2583 = vcmp.gt.f32.partialorder %v2557, 0.0
      %vm2584 = vcmp.gt.f32.partialorder %v2558, 0.0
      %vm2585 = vcmp.gt.f32.partialorder %v2559, 0.0
      %vm2586 = vcmp.gt.f32.partialorder %v2560, 0.0
      %vm2587 = vcmp.gt.f32.partialorder %v2561, 0.0
      %vm2588 = vcmp.gt.f32.partialorder %v2562, 0.0
      %vm2589 = vcmp.gt.f32.partialorder %v2563, 0.0
      %vm2590 = vcmp.gt.f32.partialorder %v2564, 0.0
      %vm2591 = vcmp.gt.f32.partialorder %v2565, 0.0
      %vm2592 = vcmp.gt.f32.partialorder %v2566, 0.0
      %vm2593 = vcmp.gt.f32.partialorder %v2567, 0.0
      %vm2594 = vcmp.gt.f32.partialorder %v2568, 0.0
      %vm2595 = vcmp.gt.f32.partialorder %v2569, 0.0
      %vm2596 = vcmp.gt.f32.partialorder %v2570, 0.0
      %vm2597 = vcmp.gt.f32.partialorder %v2571, 0.0
      %vm2598 = vcmp.gt.f32.partialorder %v2572, 0.0
      %vm2599 = vcmp.gt.f32.partialorder %v2573, 0.0
      %vm2600 = vcmp.gt.f32.partialorder %v2574, 0.0
      %v2601 = vmul.f32 %v2549, -1.65
      %v2602 = vmul.f32 %v2550, -1.65
      %v2603 = vmul.f32 %v2551, -1.65
      %v2604 = vmul.f32 %v2552, -1.65
      %v2605 = vmul.f32 %v2553, -1.65
      %v2606 = vmul.f32 %v2554, -1.65
      %v2607 = vmul.f32 %v2555, -1.65
      %v2608 = vmul.f32 %v2556, -1.65
      %v2609 = vmul.f32 %v2557, -1.65
      %v2610 = vmul.f32 %v2558, -1.65
      %v2611 = vmul.f32 %v2559, -1.65
      %v2612 = vmul.f32 %v2560, -1.65
      %v2613 = vmul.f32 %v2561, -1.65
      %v2614 = vmul.f32 %v2562, -1.65
      %v2615 = vmul.f32 %v2563, -1.65
      %v2616 = vmul.f32 %v2564, -1.65
      %v2617 = vmul.f32 %v2565, -1.65
      %v2618 = vmul.f32 %v2566, -1.65
      %v2619 = vmul.f32 %v2567, -1.65
      %v2620 = vmul.f32 %v2568, -1.65
      %v2621 = vmul.f32 %v2569, -1.65
      %v2622 = vmul.f32 %v2570, -1.65
      %v2623 = vmul.f32 %v2571, -1.65
      %v2624 = vmul.f32 %v2572, -1.65
      %v2625 = vmul.f32 %v2573, -1.65
      %v2626 = vmul.f32 %v2574, -1.65
      %v2627 = vsel %vm2575, %v2549, %v2601
      %v2628 = vsel %vm2576, %v2550, %v2602
      %v2629 = vsel %vm2577, %v2551, %v2603
      %v2630 = vsel %vm2578, %v2552, %v2604
      %v2631 = vsel %vm2579, %v2553, %v2605
      %v2632 = vsel %vm2580, %v2554, %v2606
      %v2633 = vsel %vm2581, %v2555, %v2607
      %v2634 = vsel %vm2582, %v2556, %v2608
      %v2635 = vsel %vm2583, %v2557, %v2609
      %v2636 = vsel %vm2584, %v2558, %v2610
      %v2637 = vsel %vm2585, %v2559, %v2611
      %v2638 = vsel %vm2586, %v2560, %v2612
      %v2639 = vsel %vm2587, %v2561, %v2613
      %v2640 = vsel %vm2588, %v2562, %v2614
      %v2641 = vsel %vm2589, %v2563, %v2615
      %v2642 = vsel %vm2590, %v2564, %v2616
      %v2643 = vsel %vm2591, %v2565, %v2617
      %v2644 = vsel %vm2592, %v2566, %v2618
      %v2645 = vsel %vm2593, %v2567, %v2619
      %v2646 = vsel %vm2594, %v2568, %v2620
      %v2647 = vsel %vm2595, %v2569, %v2621
      %v2648 = vsel %vm2596, %v2570, %v2622
      %v2649 = vsel %vm2597, %v2571, %v2623
      %v2650 = vsel %vm2598, %v2572, %v2624
      %v2651 = vsel %vm2599, %v2573, %v2625
      %v2652 = vsel %vm2600, %v2574, %v2626
      %vm2653 = vcmp.gt.f32.partialorder %v2627, 0.0
      %vm2654 = vcmp.gt.f32.partialorder %v2628, 0.0
      %vm2655 = vcmp.gt.f32.partialorder %v2629, 0.0
      %vm2656 = vcmp.gt.f32.partialorder %v2630, 0.0
      %vm2657 = vcmp.gt.f32.partialorder %v2631, 0.0
      %vm2658 = vcmp.gt.f32.partialorder %v2632, 0.0
      %vm2659 = vcmp.gt.f32.partialorder %v2633, 0.0
      %vm2660 = vcmp.gt.f32.partialorder %v2634, 0.0
      %vm2661 = vcmp.gt.f32.partialorder %v2635, 0.0
      %vm2662 = vcmp.gt.f32.partialorder %v2636, 0.0
      %vm2663 = vcmp.gt.f32.partialorder %v2637, 0.0
      %vm2664 = vcmp.gt.f32.partialorder %v2638, 0.0
      %vm2665 = vcmp.gt.f32.partialorder %v2639, 0.0
      %vm2666 = vcmp.gt.f32.partialorder %v2640, 0.0
      %vm2667 = vcmp.gt.f32.partialorder %v2641, 0.0
      %vm2668 = vcmp.gt.f32.partialorder %v2642, 0.0
      %vm2669 = vcmp.gt.f32.partialorder %v2643, 0.0
      %vm2670 = vcmp.gt.f32.partialorder %v2644, 0.0
      %vm2671 = vcmp.gt.f32.partialorder %v2645, 0.0
      %vm2672 = vcmp.gt.f32.partialorder %v2646, 0.0
      %vm2673 = vcmp.gt.f32.partialorder %v2647, 0.0
      %vm2674 = vcmp.gt.f32.partialorder %v2648, 0.0
      %vm2675 = vcmp.gt.f32.partialorder %v2649, 0.0
      %vm2676 = vcmp.gt.f32.partialorder %v2650, 0.0
      %vm2677 = vcmp.gt.f32.partialorder %v2651, 0.0
      %vm2678 = vcmp.gt.f32.partialorder %v2652, 0.0
      %v2679 = vmul.f32 %v2627, 0.5
      %v2680 = vmul.f32 %v2628, 0.5
      %v2681 = vmul.f32 %v2629, 0.5
      %v2682 = vmul.f32 %v2630, 0.5
      %v2683 = vmul.f32 %v2631, 0.5
      %v2684 = vmul.f32 %v2632, 0.5
      %v2685 = vmul.f32 %v2633, 0.5
      %v2686 = vmul.f32 %v2634, 0.5
      %v2687 = vmul.f32 %v2635, 0.5
      %v2688 = vmul.f32 %v2636, 0.5
      %v2689 = vmul.f32 %v2637, 0.5
      %v2690 = vmul.f32 %v2638, 0.5
      %v2691 = vmul.f32 %v2639, 0.5
      %v2692 = vmul.f32 %v2640, 0.5
      %v2693 = vmul.f32 %v2641, 0.5
      %v2694 = vmul.f32 %v2642, 0.5
      %v2695 = vmul.f32 %v2643, 0.5
      %v2696 = vmul.f32 %v2644, 0.5
      %v2697 = vmul.f32 %v2645, 0.5
      %v2698 = vmul.f32 %v2646, 0.5
      %v2699 = vmul.f32 %v2647, 0.5
      %v2700 = vmul.f32 %v2648, 0.5
      %v2701 = vmul.f32 %v2649, 0.5
      %v2702 = vmul.f32 %v2650, 0.5
      %v2703 = vmul.f32 %v2651, 0.5
      %v2704 = vmul.f32 %v2652, 0.5
      %v2705 = vsel %vm2653, %v2627, %v2679
      %v2706 = vsel %vm2654, %v2628, %v2680
      %v2707 = vsel %vm2655, %v2629, %v2681
      %v2708 = vsel %vm2656, %v2630, %v2682
      %v2709 = vsel %vm2657, %v2631, %v2683
      %v2710 = vsel %vm2658, %v2632, %v2684
      %v2711 = vsel %vm2659, %v2633, %v2685
      %v2712 = vsel %vm2660, %v2634, %v2686
      %v2713 = vsel %vm2661, %v2635, %v2687
      %v2714 = vsel %vm2662, %v2636, %v2688
      %v2715 = vsel %vm2663, %v2637, %v2689
      %v2716 = vsel %vm2664, %v2638, %v2690
      %v2717 = vsel %vm2665, %v2639, %v2691
      %v2718 = vsel %vm2666, %v2640, %v2692
      %v2719 = vsel %vm2667, %v2641, %v2693
      %v2720 = vsel %vm2668, %v2642, %v2694
      %v2721 = vsel %vm2669, %v2643, %v2695
      %v2722 = vsel %vm2670, %v2644, %v2696
      %v2723 = vsel %vm2671, %v2645, %v2697
      %v2724 = vsel %vm2672, %v2646, %v2698
      %v2725 = vsel %vm2673, %v2647, %v2699
      %v2726 = vsel %vm2674, %v2648, %v2700
      %v2727 = vsel %vm2675, %v2649, %v2701
      %v2728 = vsel %vm2676, %v2650, %v2702
      %v2729 = vsel %vm2677, %v2651, %v2703
      %v2730 = vsel %vm2678, %v2652, %v2704
      %2731 = vst [vmem:[%s318] sm:$0xff] %v2705
      %2732 = vst [vmem:[%s318 + $0x8] sm:$0xff] %v2706
      %2733 = vst [vmem:[%s318 + $0x10] sm:$0xff] %v2707
      %2734 = vst [vmem:[%s318 + $0x18] sm:$0xff] %v2708
      %2735 = vst [vmem:[%s318 + $0x20] sm:$0xff] %v2709
      %2736 = vst [vmem:[%s318 + $0x28] sm:$0xff] %v2710
      %2737 = vst [vmem:[%s318 + $0x30] sm:$0xff] %v2711
      %2738 = vst [vmem:[%s318 + $0x38] sm:$0xff] %v2712
      %2739 = vst [vmem:[%s318 + $0x40] sm:$0xff] %v2713
      %2740 = vst [vmem:[%s318 + $0x48] sm:$0xff] %v2714
      %2741 = vst [vmem:[%s318 + $0x50] sm:$0xff] %v2715
      %2742 = vst [vmem:[%s318 + $0x58] sm:$0xff] %v2716
      %2743 = vst [vmem:[%s318 + $0x60] sm:$0xff] %v2717
      %2744 = vst [vmem:[%s318 + $0x68] sm:$0xff] %v2718
      %2745 = vst [vmem:[%s318 + $0x70] sm:$0xff] %v2719
      %2746 = vst [vmem:[%s318 + $0x78] sm:$0xff] %v2720
      %2747 = vst [vmem:[%s318 + $0x80] sm:$0xff] %v2721
      %2748 = vst [vmem:[%s318 + $0x88] sm:$0xff] %v2722
      %2749 = vst [vmem:[%s318 + $0x90] sm:$0xff] %v2723
      %2750 = vst [vmem:[%s318 + $0x98] sm:$0xff] %v2724
      %2751 = vst [vmem:[%s318 + $0xa0] sm:$0xff] %v2725
      %2752 = vst [vmem:[%s318 + $0xa8] sm:$0xff] %v2726
      %2753 = vst [vmem:[%s318 + $0xb0] sm:$0xff] %v2727
      %2754 = vst [vmem:[%s318 + $0xb8] sm:$0xff] %v2728
      %2755 = vst [vmem:[%s318 + $0xc0] sm:$0xff] %v2729
      %2756 = vst [vmem:[%s318 + $0xc8] sm:$0xff] %v2730
      %p2757 = scmp.lt.s32.totalorder %s18, 1
      %s2758 = scalar_select %p2757, %s18, 1
      %s2759 = smul.addr %s2758, 26
      %s2760 = smul.addr %s2759, 8
      %s2761 = scalar_lea.vmem %s7, %s2760
      // Predicated region
      $region49: #{model_forward.1} parent=47 // pred_check
        %p2762 = pneg %p198
      $region50: #{model_forward.1} parent=47 // pred_check_branch
        %2764 = sbr.rel (%p2762) target = $region52
      $region51: #{model_forward.1} parent=47 // pred_region
        _
      $region52: #{model_forward.1} parent=47 // pred_fallthru
        _
    $region48: #{model_forward.1} parent=5 // pred_fallthru
      _
    %p2765 = scmp.le.s32.totalorder 2, %s13
    // Predicated region
    $region53: #{model_forward.1} parent=5 // pred_check
      %p2766 = pneg %p2765
    $region54: #{model_forward.1} parent=5 // pred_check_branch
      %2768 = sbr.rel (%p2766) target = $region56
    $region55: #{model_forward.1} parent=5 // pred_region
      %s2769 = ssub.s32 %s13, 2
      // Predicated region
      $region57: #{model_forward.1} parent=55 // pred_check
        %p2770 = pneg %p204
      $region58: #{model_forward.1} parent=55 // pred_check_branch
        %2772 = sbr.rel (%p2770) target = $region60
      $region59: #{model_forward.1} parent=55 // pred_region
        %p2773 = scmp.lt.s32.totalorder %s19, 1
        %s2774 = scalar_select %p2773, %s19, 1
        %s2775 = smul.addr %s2774, 26
        %s2776 = smul.addr %s2775, 8
        %s2777 = scalar_lea.vmem %s7, %s2776
      $region60: #{model_forward.1} parent=55 // pred_fallthru
        _
    $region56: #{model_forward.1} parent=5 // pred_fallthru
      _
  $region6: #{model_forward.1} parent=0 // loop_footer
    %s17 = sadd.s32 1, %s13
  $region7: #{model_forward.1} parent=0 // loop_footer_branch
    %12 = sbr.rel target = $region3
  $region8: #{model_forward.1} parent=0 // loop_exit
    _

</llo_original>
